<compile_context>
chip_gen: v7x
topology: tpu7x:2x2x1
jax: 0.10.0
libtpu: 0.0.40
codegen_flags: <defaults>
</compile_context>

<pallas_src>
import numpy as np
import jax
import jax.numpy as jnp
from jax.experimental import pallas as pl
from jax.experimental.pallas import tpu as pltpu

_SUB = 16  # bf16 sublane packing: keep all row counts / slice offsets aligned


def _round_up(x, m):
    return ((x + m - 1) // m) * m


# ----------------------------------------------------------------------------
# Fused kernel: conv1 -> conv2 -> conv3 -> fc1 -> fc2 for ONE batch element.
#
# Layouts (matmul-only, no in-kernel reshapes / transposes):
#   * activations are (spatial_row_major, channels) matrices, rows padded to 16
#   * sK_ref is a stacked 0/1 selection matrix: row (w*sp_out_pad + p) picks the
#     input spatial row feeding window element w of output position p
#     (in-VMEM im2col as ONE matmul; batch-independent)
#   * wK_ref[w] is the (c_in, c_out) weight slice for window element w
#   * w4_ref[s] holds fc1's weight rows for conv3 spatial position s, which
#     reproduces torch's NCHW flatten order exactly.
# ----------------------------------------------------------------------------
def _qhead_kernel(p1_ref, w1_ref, b1_ref,
                  s2_ref, w2_ref, b2_ref,
                  s3_ref, w3_ref, b3_ref,
                  w4_ref, b4_ref,
                  w5_ref, b5_ref,
                  o_ref):
    f32 = jnp.float32
    bf16 = jnp.bfloat16

    def mm(a, b):                                # bf16 MXU, f32 accumulate
        return jnp.dot(a, b, preferred_element_type=f32)

    # ---- conv1: im2col matmul (patches built in wrapper) + bias + ReLU ------
    a1 = jnp.maximum(mm(p1_ref[...], w1_ref[...]) + b1_ref[...], 0.0)
    a1 = a1.astype(bf16)                                        # (SP1, 32)

    # ---- conv2: single stacked-gather matmul, then 16 weight matmuls --------
    # (cast is exact: each selection row has a single 1.0)
    g2 = mm(s2_ref[...], a1).astype(bf16)                       # (K2*SP2, 32)
    k2 = w2_ref.shape[0]
    sp2 = g2.shape[0] // k2                                     # multiple of 16
    acc2 = jnp.zeros((sp2, w2_ref.shape[2]), f32)
    for w in range(k2):          # short static loop (16); fori_loop at scale
        acc2 = acc2 + mm(g2[w * sp2:(w + 1) * sp2, :], w2_ref[w])
    a2 = jnp.maximum(acc2 + b2_ref[...], 0.0).astype(bf16)      # (SP2, 64)

    # ---- conv3: same scheme (3x3, stride 1) ---------------------------------
    g3 = mm(s3_ref[...], a2).astype(bf16)                       # (K3*SP3, 64)
    k3 = w3_ref.shape[0]
    sp3 = g3.shape[0] // k3
    acc3 = jnp.zeros((sp3, w3_ref.shape[2]), f32)
    for w in range(k3):
        acc3 = acc3 + mm(g3[w * sp3:(w + 1) * sp3, :], w3_ref[w])
    a3 = jnp.maximum(acc3 + b3_ref[...], 0.0).astype(bf16)      # (SP3, 64)

    # ---- fc1: accumulate over REAL conv3 spatial positions (NCHW order) -----
    n_sp = w4_ref.shape[0]       # single iteration at the demo shape (h3=1)
    acc4 = jnp.zeros((1, w4_ref.shape[2]), f32)
    for s in range(n_sp):
        acc4 = acc4 + mm(a3[s:s + 1, :], w4_ref[s])
    a4 = jnp.maximum(acc4 + b4_ref[...], 0.0).astype(bf16)      # (1, 512)

    # ---- fc2: lane-dense (128-wide) output store ----------------------------
    o_ref[...] = (mm(a4, w5_ref[...]) + b5_ref[...]).astype(o_ref.dtype)


# ----------------------------------------------------------------------------
# Glue (plain JAX / numpy; runs once at pack time or on the tiny raw input)
# ----------------------------------------------------------------------------
def _im2col_nchw(x, kh, kw, stride, rows_pad):
    """(N,C,H,W) -> (N, rows_pad, kh*kw*C); rows = (oh,ow) row-major per
    element, cols = (i, j, c); zero-padded rows beyond oh*ow."""
    n, c, h, w = x.shape
    oh = (h - kh) // stride + 1
    ow = (w - kw) // stride + 1
    cols = []
    for i in range(kh):
        for j in range(kw):
            cols.append(x[:, :, i:i + stride * oh:stride, j:j + stride * ow:stride])
    pat = jnp.stack(cols, axis=1)               # (n, kh*kw, c, oh, ow)
    pat = pat.transpose(0, 3, 4, 1, 2)          # (n, oh, ow, kh*kw, c)
    pat = pat.reshape(n, oh * ow, kh * kw * c)
    if rows_pad > oh * ow:
        pat = jnp.pad(pat, ((0, 0), (0, rows_pad - oh * ow), (0, 0)))
    return pat
    # TODO(synk): at 84x84 this im2col (4x the raw input) should be built
    # in-kernel from the raw NCHW input to avoid the extra HBM round trip.


def _build_selection_stacked(h_in, w_in, h_out, w_out, kh, kw, stride,
                             sp_out_pad, sp_in_pad):
    """Batch-independent stacked 0/1 gather matrix (kh*kw*sp_out_pad, sp_in_pad).
    Row (w*sp_out_pad + p*w_out + q) selects the input spatial row feeding
    window element w of output position (p, q).  Padding rows are all-zero."""
    sel = np.zeros((kh * kw * sp_out_pad, sp_in_pad), np.float32)
    for i in range(kh):
        for j in range(kw):
            widx = i * kw + j
            for p in range(h_out):
                for q in range(w_out):
                    ro = widx * sp_out_pad + p * w_out + q
                    ri = (stride * p + i) * w_in + (stride * q + j)
                    sel[ro, ri] = 1.0
    return sel


# ----------------------------------------------------------------------------
# Parameters (synthetic, deterministic, PyTorch-default-style init) + packing
# ----------------------------------------------------------------------------
def init_params(key, in_channels, spatial, num_actions):
    ks = jax.random.split(key, 10)

    def u(k, shape, fan_in):
        bound = 1.0 / jnp.sqrt(fan_in)
        return jax.random.uniform(k, shape, jnp.float32, -bound, bound)

    h1 = (spatial - 8) // 4 + 1
    h2 = (h1 - 4) // 2 + 1
    h3 = (h2 - 3) // 1 + 1
    feat = 64 * h3 * h3

    return dict(
        c1w=u(ks[0], (32, in_channels, 8, 8), in_channels * 64),
        c1b=u(ks[1], (32,), in_channels * 64),
        c2w=u(ks[2], (64, 32, 4, 4), 32 * 16),
        c2b=u(ks[3], (64,), 32 * 16),
        c3w=u(ks[4], (64, 64, 3, 3), 64 * 9),
        c3b=u(ks[5], (64,), 64 * 9),
        fc1w=u(ks[6], (feat, 512), feat),        # stored as (in, out) = W^T
        fc1b=u(ks[7], (512,), feat),
        fc2w=u(ks[8], (512, num_actions), 512),
        fc2b=u(ks[9], (num_actions,), 512),
    )


def pack_params(params, in_channels, spatial, num_actions):
    """Reorder / pad weights once (free) into the kernel's layouts."""
    h1 = (spatial - 8) // 4 + 1
    h2 = (h1 - 4) // 2 + 1
    h3 = (h2 - 3) // 1 + 1
    sp1, sp2, sp3 = h1 * h1, h2 * h2, h3 * h3
    sp1_pad = _round_up(sp1, _SUB)
    sp2_pad = _round_up(sp2, _SUB)
    sp3_pad = _round_up(sp3, _SUB)
    n_pad = _round_up(num_actions, 128)
    bf16, f32 = jnp.bfloat16, jnp.float32

    # conv weights -> per-window (c_in, c_out) slices; conv1 flattened to 2D
    # with row order (i, j, c) matching the im2col column order.
    w1 = params["c1w"].transpose(2, 3, 1, 0).reshape(8 * 8 * in_channels, 32)
    w2 = params["c2w"].transpose(2, 3, 1, 0).reshape(4 * 4, 32, 64)
    w3 = params["c3w"].transpose(2, 3, 1, 0).reshape(3 * 3, 64, 64)
    # fc1: torch flattens conv3 NCHW -> feature index c*sp3 + s; regroup rows
    # per conv3 spatial position so the kernel never transposes activations.
    w4 = params["fc1w"].reshape(64, sp3, 512).transpose(1, 0, 2)
    # fc2: pad output columns to a lane-dense 128.
    w5 = jnp.zeros((512, n_pad), f32).at[:, :num_actions].set(params["fc2w"])
    b5 = jnp.zeros((1, n_pad), f32).at[:, :num_actions].set(params["fc2b"])

    s2 = _build_selection_stacked(h1, h1, h2, h2, 4, 4, 2, sp2_pad, sp1_pad)
    s3 = _build_selection_stacked(h2, h2, h3, h3, 3, 3, 1, sp3_pad, sp2_pad)

    packed = dict(
        w1=w1.astype(bf16), b1=params["c1b"].reshape(1, 32).astype(f32),
        s2=jnp.asarray(s2, bf16), w2=w2.astype(bf16),
        b2=params["c2b"].reshape(1, 64).astype(f32),
        s3=jnp.asarray(s3, bf16), w3=w3.astype(bf16),
        b3=params["c3b"].reshape(1, 64).astype(f32),
        w4=w4.astype(bf16), b4=params["fc1b"].reshape(1, 512).astype(f32),
        w5=w5.astype(bf16), b5=b5,
    )
    cfg = dict(in_channels=in_channels, spatial=spatial,
               num_actions=num_actions, h1=h1, h2=h2, h3=h3,
               sp1_pad=sp1_pad, sp2_pad=sp2_pad, sp3_pad=sp3_pad, n_pad=n_pad)
    return packed, cfg


# ----------------------------------------------------------------------------
# Forward
# ----------------------------------------------------------------------------
def make_forward(cfg):
    sp1_pad, sp2_pad, sp3_pad = cfg["sp1_pad"], cfg["sp2_pad"], cfg["sp3_pad"]
    k1 = 8 * 8 * cfg["in_channels"]
    n_pad = cfg["n_pad"]
    num_actions = cfg["num_actions"]
    sp3 = cfg["h3"] * cfg["h3"]

    per_elem_flops = 2 * (sp1_pad * k1 * 32                    # conv1
                          + 16 * sp2_pad * sp1_pad * 32        # conv2 gather
                          + 16 * sp2_pad * 32 * 64             # conv2 weights
                          + 9 * sp3_pad * sp2_pad * 64         # conv3 gather
                          + 9 * sp3_pad * 64 * 64              # conv3 weights
                          + sp3 * 64 * 512                     # fc1
                          + 512 * n_pad)                       # fc2

    @jax.jit
    def forward(packed, x):
        """x: (N, C, H, W) float32 -> (N, num_actions) float32."""
        n = x.shape[0]
        p1 = _im2col_nchw(x, 8, 8, 4, sp1_pad).astype(jnp.bfloat16)

        const_args = (packed["w1"], packed["b1"],
                      packed["s2"], packed["w2"], packed["b2"],
                      packed["s3"], packed["w3"], packed["b3"],
                      packed["w4"], packed["b4"],
                      packed["w5"], packed["b5"])

        def const_spec(a):
            nd = a.ndim
            return pl.BlockSpec(a.shape, lambda b, _nd=nd: (0,) * _nd)

        in_specs = ([pl.BlockSpec((None, sp1_pad, k1), lambda b: (b, 0, 0))]
                    + [const_spec(a) for a in const_args])

        const_bytes = sum(a.size * a.dtype.itemsize for a in const_args)
        bytes_accessed = const_bytes + p1.size * 2 + n * n_pad * 4

        out = pl.pallas_call(
            _qhead_kernel,
            out_shape=jax.ShapeDtypeStruct((n, 1, n_pad), jnp.float32),
            grid=(n,),                            # one batch element per step
            in_specs=in_specs,
            out_specs=pl.BlockSpec((None, 1, n_pad), lambda b: (b, 0, 0)),
            compiler_params=pltpu.CompilerParams(
                dimension_semantics=("parallel",),      # v7x: 2 TCs split batch
                vmem_limit_bytes=48 * 1024 * 1024),     # >16MiB v5e default, <64MiB v7x phys
            cost_estimate=pl.CostEstimate(
                flops=int(per_elem_flops) * n, transcendentals=0,
                bytes_accessed=int(bytes_accessed)),
        )(p1, *const_args)
        return out.reshape(n, n_pad)[:, :num_actions]

    return forward


# ----------------------------------------------------------------------------
# Pure-JAX f32 reference (mirrors the PyTorch module) for validation
# ----------------------------------------------------------------------------
def reference_forward(params, x):
    dn = ("NCHW", "OIHW", "NCHW")
    y = x
    for w, b, s in ((params["c1w"], params["c1b"], 4),
                    (params["c2w"], params["c2b"], 2),
                    (params["c3w"], params["c3b"], 1)):
        y = jax.lax.conv_general_dilated(y, w, (s, s), "VALID",
                                         dimension_numbers=dn)
        y = jax.nn.relu(y + b[None, :, None, None])
    y = y.reshape(y.shape[0], -1)                  # torch NCHW flatten
    y = jax.nn.relu(y @ params["fc1w"] + params["fc1b"])
    return y @ params["fc2w"] + params["fc2b"]


if __name__ == "__main__":
    # Small replay-minibatch of 8 (fills MXU sublanes and the parallel grid),
    # 4 stacked frames, 36x36 observations (minimum valid for this conv stack:
    # 36 -> 8 -> 3 -> 1, feature = 64), 6 discrete actions.
    BATCH, C, H, W, NUM_ACTIONS = 8, 4, 36, 36, 6

    key = jax.random.PRNGKey(0)
    pkey, xkey = jax.random.split(key)
    params = init_params(pkey, C, H, NUM_ACTIONS)
    x = jax.random.normal(xkey, (BATCH, C, H, W), jnp.float32)

    packed, cfg = pack_params(params, C, H, NUM_ACTIONS)
    forward = make_forward(cfg)

    q_values = forward(packed, x)
    jax.block_until_ready(q_values)
    assert q_values.shape == (BATCH, NUM_ACTIONS)
    assert q_values.dtype == jnp.float32

    q_ref = reference_forward(params, x)
    np.testing.assert_allclose(np.asarray(q_values), np.asarray(q_ref),
                               rtol=5e-2, atol=5e-2)   # bf16 MXU tolerance
    print("KERNEL_OK")
</pallas_src>

<mosaic_0001>
module attributes {stable_mosaic.version = 11 : i64} {
  func.func @_qhead_kernel(%arg0: i32, %arg1: memref<1x64x256xbf16, #tpu.memory_space<vmem>>, %arg2: memref<256x32xbf16, #tpu.memory_space<vmem>>, %arg3: memref<1x32xf32, #tpu.memory_space<vmem>>, %arg4: memref<256x64xbf16, #tpu.memory_space<vmem>>, %arg5: memref<16x32x64xbf16, #tpu.memory_space<vmem>>, %arg6: memref<1x64xf32, #tpu.memory_space<vmem>>, %arg7: memref<144x16xbf16, #tpu.memory_space<vmem>>, %arg8: memref<9x64x64xbf16, #tpu.memory_space<vmem>>, %arg9: memref<1x64xf32, #tpu.memory_space<vmem>>, %arg10: memref<1x64x512xbf16, #tpu.memory_space<vmem>>, %arg11: memref<1x512xf32, #tpu.memory_space<vmem>>, %arg12: memref<512x128xbf16, #tpu.memory_space<vmem>>, %arg13: memref<1x128xf32, #tpu.memory_space<vmem>>, %arg14: memref<1x1x128xf32, #tpu.memory_space<vmem>>) attributes {dimension_semantics = [#tpu.dimension_semantics<parallel>], iteration_bounds = array<i64: 8>, scalar_prefetch = 0 : i64, scratch_operands = 0 : i64, tpu.core_type = #tpu.core_type<tc>, window_params = [{transform_indices = @transform_0, window_bounds = array<i64: 1, 64, 256>}, {pipeline_mode = #tpu.pipeline_mode<synchronous>, transform_indices = @transform_1, window_bounds = array<i64: 256, 32>}, {pipeline_mode = #tpu.pipeline_mode<synchronous>, transform_indices = @transform_2, window_bounds = array<i64: 1, 32>}, {pipeline_mode = #tpu.pipeline_mode<synchronous>, transform_indices = @transform_3, window_bounds = array<i64: 256, 64>}, {pipeline_mode = #tpu.pipeline_mode<synchronous>, transform_indices = @transform_4, window_bounds = array<i64: 16, 32, 64>}, {pipeline_mode = #tpu.pipeline_mode<synchronous>, transform_indices = @transform_5, window_bounds = array<i64: 1, 64>}, {pipeline_mode = #tpu.pipeline_mode<synchronous>, transform_indices = @transform_6, window_bounds = array<i64: 144, 16>}, {pipeline_mode = #tpu.pipeline_mode<synchronous>, transform_indices = @transform_7, window_bounds = array<i64: 9, 64, 64>}, {pipeline_mode = #tpu.pipeline_mode<synchronous>, transform_indices = @transform_8, window_bounds = array<i64: 1, 64>}, {pipeline_mode = #tpu.pipeline_mode<synchronous>, transform_indices = @transform_9, window_bounds = array<i64: 1, 64, 512>}, {pipeline_mode = #tpu.pipeline_mode<synchronous>, transform_indices = @transform_10, window_bounds = array<i64: 1, 512>}, {pipeline_mode = #tpu.pipeline_mode<synchronous>, transform_indices = @transform_11, window_bounds = array<i64: 512, 128>}, {pipeline_mode = #tpu.pipeline_mode<synchronous>, transform_indices = @transform_12, window_bounds = array<i64: 1, 128>}, {transform_indices = @transform_13, window_bounds = array<i64: 1, 1, 128>}]} {
    %c0 = arith.constant 0 : index
    %c0_0 = arith.constant 0 : index
    %c0_1 = arith.constant 0 : index
    %0 = vector.load %arg1[%c0, %c0_0, %c0_1] : memref<1x64x256xbf16, #tpu.memory_space<vmem>>, vector<1x64x256xbf16>
    %1 = vector.shape_cast %0 : vector<1x64x256xbf16> to vector<64x256xbf16>
    %c0_2 = arith.constant 0 : index
    %c0_3 = arith.constant 0 : index
    %2 = vector.load %arg2[%c0_2, %c0_3] : memref<256x32xbf16, #tpu.memory_space<vmem>>, vector<256x32xbf16>
    %cst = arith.constant dense<0.000000e+00> : vector<64x32xf32>
    %3 = tpu.matmul %1, %2, %cst {dimension_numbers = #tpu.dot_dimension_numbers<[1], [0], [0], [1], [0, 0, 1, 1], [], []>} : vector<64x256xbf16>, vector<256x32xbf16>, vector<64x32xf32> -> vector<64x32xf32>
    %c0_4 = arith.constant 0 : index
    %c0_5 = arith.constant 0 : index
    %4 = vector.load %arg3[%c0_4, %c0_5] : memref<1x32xf32, #tpu.memory_space<vmem>>, vector<1x32xf32>
    %5 = vector.broadcast %4 : vector<1x32xf32> to vector<64x32xf32>
    %6 = arith.addf %3, %5 : vector<64x32xf32>
    %cst_6 = arith.constant 0.000000e+00 : f32
    %7 = vector.broadcast %cst_6 : f32 to vector<64x32xf32>
    %8 = arith.maximumf %6, %7 : vector<64x32xf32>
    %9 = arith.truncf %8 : vector<64x32xf32> to vector<64x32xbf16>
    %c0_7 = arith.constant 0 : index
    %c0_8 = arith.constant 0 : index
    %10 = vector.load %arg4[%c0_7, %c0_8] : memref<256x64xbf16, #tpu.memory_space<vmem>>, vector<256x64xbf16>
    %cst_9 = arith.constant dense<0.000000e+00> : vector<256x32xf32>
    %11 = tpu.matmul %10, %9, %cst_9 {dimension_numbers = #tpu.dot_dimension_numbers<[1], [0], [0], [1], [0, 0, 1, 1], [], []>} : vector<256x64xbf16>, vector<64x32xbf16>, vector<256x32xf32> -> vector<256x32xf32>
    %12 = arith.truncf %11 : vector<256x32xf32> to vector<256x32xbf16>
    %cst_10 = arith.constant 0.000000e+00 : f32
    %13 = vector.broadcast %cst_10 : f32 to vector<16x64xf32>
    %14 = vector.extract_strided_slice %12 {offsets = [0, 0], sizes = [16, 32], strides = [1, 1]} : vector<256x32xbf16> to vector<16x32xbf16>
    %c0_11 = arith.constant 0 : index
    %c0_12 = arith.constant 0 : index
    %c0_13 = arith.constant 0 : index
    %15 = vector.load %arg5[%c0_11, %c0_12, %c0_13] : memref<16x32x64xbf16, #tpu.memory_space<vmem>>, vector<1x32x64xbf16>
    %16 = vector.shape_cast %15 : vector<1x32x64xbf16> to vector<32x64xbf16>
    %cst_14 = arith.constant dense<0.000000e+00> : vector<16x64xf32>
    %17 = tpu.matmul %14, %16, %cst_14 {dimension_numbers = #tpu.dot_dimension_numbers<[1], [0], [0], [1], [0, 0, 1, 1], [], []>} : vector<16x32xbf16>, vector<32x64xbf16>, vector<16x64xf32> -> vector<16x64xf32>
    %18 = arith.addf %13, %17 : vector<16x64xf32>
    %19 = vector.extract_strided_slice %12 {offsets = [16, 0], sizes = [16, 32], strides = [1, 1]} : vector<256x32xbf16> to vector<16x32xbf16>
    %c1 = arith.constant 1 : index
    %c0_15 = arith.constant 0 : index
    %c0_16 = arith.constant 0 : index
    %20 = vector.load %arg5[%c1, %c0_15, %c0_16] : memref<16x32x64xbf16, #tpu.memory_space<vmem>>, vector<1x32x64xbf16>
    %21 = vector.shape_cast %20 : vector<1x32x64xbf16> to vector<32x64xbf16>
    %cst_17 = arith.constant dense<0.000000e+00> : vector<16x64xf32>
    %22 = tpu.matmul %19, %21, %cst_17 {dimension_numbers = #tpu.dot_dimension_numbers<[1], [0], [0], [1], [0, 0, 1, 1], [], []>} : vector<16x32xbf16>, vector<32x64xbf16>, vector<16x64xf32> -> vector<16x64xf32>
    %23 = arith.addf %18, %22 : vector<16x64xf32>
    %24 = vector.extract_strided_slice %12 {offsets = [32, 0], sizes = [16, 32], strides = [1, 1]} : vector<256x32xbf16> to vector<16x32xbf16>
    %c2 = arith.constant 2 : index
    %c0_18 = arith.constant 0 : index
    %c0_19 = arith.constant 0 : index
    %25 = vector.load %arg5[%c2, %c0_18, %c0_19] : memref<16x32x64xbf16, #tpu.memory_space<vmem>>, vector<1x32x64xbf16>
    %26 = vector.shape_cast %25 : vector<1x32x64xbf16> to vector<32x64xbf16>
    %cst_20 = arith.constant dense<0.000000e+00> : vector<16x64xf32>
    %27 = tpu.matmul %24, %26, %cst_20 {dimension_numbers = #tpu.dot_dimension_numbers<[1], [0], [0], [1], [0, 0, 1, 1], [], []>} : vector<16x32xbf16>, vector<32x64xbf16>, vector<16x64xf32> -> vector<16x64xf32>
    %28 = arith.addf %23, %27 : vector<16x64xf32>
    %29 = vector.extract_strided_slice %12 {offsets = [48, 0], sizes = [16, 32], strides = [1, 1]} : vector<256x32xbf16> to vector<16x32xbf16>
    %c3 = arith.constant 3 : index
    %c0_21 = arith.constant 0 : index
    %c0_22 = arith.constant 0 : index
    %30 = vector.load %arg5[%c3, %c0_21, %c0_22] : memref<16x32x64xbf16, #tpu.memory_space<vmem>>, vector<1x32x64xbf16>
    %31 = vector.shape_cast %30 : vector<1x32x64xbf16> to vector<32x64xbf16>
    %cst_23 = arith.constant dense<0.000000e+00> : vector<16x64xf32>
    %32 = tpu.matmul %29, %31, %cst_23 {dimension_numbers = #tpu.dot_dimension_numbers<[1], [0], [0], [1], [0, 0, 1, 1], [], []>} : vector<16x32xbf16>, vector<32x64xbf16>, vector<16x64xf32> -> vector<16x64xf32>
    %33 = arith.addf %28, %32 : vector<16x64xf32>
    %34 = vector.extract_strided_slice %12 {offsets = [64, 0], sizes = [16, 32], strides = [1, 1]} : vector<256x32xbf16> to vector<16x32xbf16>
    %c4 = arith.constant 4 : index
    %c0_24 = arith.constant 0 : index
    %c0_25 = arith.constant 0 : index
    %35 = vector.load %arg5[%c4, %c0_24, %c0_25] : memref<16x32x64xbf16, #tpu.memory_space<vmem>>, vector<1x32x64xbf16>
    %36 = vector.shape_cast %35 : vector<1x32x64xbf16> to vector<32x64xbf16>
    %cst_26 = arith.constant dense<0.000000e+00> : vector<16x64xf32>
    %37 = tpu.matmul %34, %36, %cst_26 {dimension_numbers = #tpu.dot_dimension_numbers<[1], [0], [0], [1], [0, 0, 1, 1], [], []>} : vector<16x32xbf16>, vector<32x64xbf16>, vector<16x64xf32> -> vector<16x64xf32>
    %38 = arith.addf %33, %37 : vector<16x64xf32>
    %39 = vector.extract_strided_slice %12 {offsets = [80, 0], sizes = [16, 32], strides = [1, 1]} : vector<256x32xbf16> to vector<16x32xbf16>
    %c5 = arith.constant 5 : index
    %c0_27 = arith.constant 0 : index
    %c0_28 = arith.constant 0 : index
    %40 = vector.load %arg5[%c5, %c0_27, %c0_28] : memref<16x32x64xbf16, #tpu.memory_space<vmem>>, vector<1x32x64xbf16>
    %41 = vector.shape_cast %40 : vector<1x32x64xbf16> to vector<32x64xbf16>
    %cst_29 = arith.constant dense<0.000000e+00> : vector<16x64xf32>
    %42 = tpu.matmul %39, %41, %cst_29 {dimension_numbers = #tpu.dot_dimension_numbers<[1], [0], [0], [1], [0, 0, 1, 1], [], []>} : vector<16x32xbf16>, vector<32x64xbf16>, vector<16x64xf32> -> vector<16x64xf32>
    %43 = arith.addf %38, %42 : vector<16x64xf32>
    %44 = vector.extract_strided_slice %12 {offsets = [96, 0], sizes = [16, 32], strides = [1, 1]} : vector<256x32xbf16> to vector<16x32xbf16>
    %c6 = arith.constant 6 : index
    %c0_30 = arith.constant 0 : index
    %c0_31 = arith.constant 0 : index
    %45 = vector.load %arg5[%c6, %c0_30, %c0_31] : memref<16x32x64xbf16, #tpu.memory_space<vmem>>, vector<1x32x64xbf16>
    %46 = vector.shape_cast %45 : vector<1x32x64xbf16> to vector<32x64xbf16>
    %cst_32 = arith.constant dense<0.000000e+00> : vector<16x64xf32>
    %47 = tpu.matmul %44, %46, %cst_32 {dimension_numbers = #tpu.dot_dimension_numbers<[1], [0], [0], [1], [0, 0, 1, 1], [], []>} : vector<16x32xbf16>, vector<32x64xbf16>, vector<16x64xf32> -> vector<16x64xf32>
    %48 = arith.addf %43, %47 : vector<16x64xf32>
    %49 = vector.extract_strided_slice %12 {offsets = [112, 0], sizes = [16, 32], strides = [1, 1]} : vector<256x32xbf16> to vector<16x32xbf16>
    %c7 = arith.constant 7 : index
    %c0_33 = arith.constant 0 : index
    %c0_34 = arith.constant 0 : index
    %50 = vector.load %arg5[%c7, %c0_33, %c0_34] : memref<16x32x64xbf16, #tpu.memory_space<vmem>>, vector<1x32x64xbf16>
    %51 = vector.shape_cast %50 : vector<1x32x64xbf16> to vector<32x64xbf16>
    %cst_35 = arith.constant dense<0.000000e+00> : vector<16x64xf32>
    %52 = tpu.matmul %49, %51, %cst_35 {dimension_numbers = #tpu.dot_dimension_numbers<[1], [0], [0], [1], [0, 0, 1, 1], [], []>} : vector<16x32xbf16>, vector<32x64xbf16>, vector<16x64xf32> -> vector<16x64xf32>
    %53 = arith.addf %48, %52 : vector<16x64xf32>
    %54 = vector.extract_strided_slice %12 {offsets = [128, 0], sizes = [16, 32], strides = [1, 1]} : vector<256x32xbf16> to vector<16x32xbf16>
    %c8 = arith.constant 8 : index
    %c0_36 = arith.constant 0 : index
    %c0_37 = arith.constant 0 : index
    %55 = vector.load %arg5[%c8, %c0_36, %c0_37] : memref<16x32x64xbf16, #tpu.memory_space<vmem>>, vector<1x32x64xbf16>
    %56 = vector.shape_cast %55 : vector<1x32x64xbf16> to vector<32x64xbf16>
    %cst_38 = arith.constant dense<0.000000e+00> : vector<16x64xf32>
    %57 = tpu.matmul %54, %56, %cst_38 {dimension_numbers = #tpu.dot_dimension_numbers<[1], [0], [0], [1], [0, 0, 1, 1], [], []>} : vector<16x32xbf16>, vector<32x64xbf16>, vector<16x64xf32> -> vector<16x64xf32>
    %58 = arith.addf %53, %57 : vector<16x64xf32>
    %59 = vector.extract_strided_slice %12 {offsets = [144, 0], sizes = [16, 32], strides = [1, 1]} : vector<256x32xbf16> to vector<16x32xbf16>
    %c9 = arith.constant 9 : index
    %c0_39 = arith.constant 0 : index
    %c0_40 = arith.constant 0 : index
    %60 = vector.load %arg5[%c9, %c0_39, %c0_40] : memref<16x32x64xbf16, #tpu.memory_space<vmem>>, vector<1x32x64xbf16>
    %61 = vector.shape_cast %60 : vector<1x32x64xbf16> to vector<32x64xbf16>
    %cst_41 = arith.constant dense<0.000000e+00> : vector<16x64xf32>
    %62 = tpu.matmul %59, %61, %cst_41 {dimension_numbers = #tpu.dot_dimension_numbers<[1], [0], [0], [1], [0, 0, 1, 1], [], []>} : vector<16x32xbf16>, vector<32x64xbf16>, vector<16x64xf32> -> vector<16x64xf32>
    %63 = arith.addf %58, %62 : vector<16x64xf32>
    %64 = vector.extract_strided_slice %12 {offsets = [160, 0], sizes = [16, 32], strides = [1, 1]} : vector<256x32xbf16> to vector<16x32xbf16>
    %c10 = arith.constant 10 : index
    %c0_42 = arith.constant 0 : index
    %c0_43 = arith.constant 0 : index
    %65 = vector.load %arg5[%c10, %c0_42, %c0_43] : memref<16x32x64xbf16, #tpu.memory_space<vmem>>, vector<1x32x64xbf16>
    %66 = vector.shape_cast %65 : vector<1x32x64xbf16> to vector<32x64xbf16>
    %cst_44 = arith.constant dense<0.000000e+00> : vector<16x64xf32>
    %67 = tpu.matmul %64, %66, %cst_44 {dimension_numbers = #tpu.dot_dimension_numbers<[1], [0], [0], [1], [0, 0, 1, 1], [], []>} : vector<16x32xbf16>, vector<32x64xbf16>, vector<16x64xf32> -> vector<16x64xf32>
    %68 = arith.addf %63, %67 : vector<16x64xf32>
    %69 = vector.extract_strided_slice %12 {offsets = [176, 0], sizes = [16, 32], strides = [1, 1]} : vector<256x32xbf16> to vector<16x32xbf16>
    %c11 = arith.constant 11 : index
    %c0_45 = arith.constant 0 : index
    %c0_46 = arith.constant 0 : index
    %70 = vector.load %arg5[%c11, %c0_45, %c0_46] : memref<16x32x64xbf16, #tpu.memory_space<vmem>>, vector<1x32x64xbf16>
    %71 = vector.shape_cast %70 : vector<1x32x64xbf16> to vector<32x64xbf16>
    %cst_47 = arith.constant dense<0.000000e+00> : vector<16x64xf32>
    %72 = tpu.matmul %69, %71, %cst_47 {dimension_numbers = #tpu.dot_dimension_numbers<[1], [0], [0], [1], [0, 0, 1, 1], [], []>} : vector<16x32xbf16>, vector<32x64xbf16>, vector<16x64xf32> -> vector<16x64xf32>
    %73 = arith.addf %68, %72 : vector<16x64xf32>
    %74 = vector.extract_strided_slice %12 {offsets = [192, 0], sizes = [16, 32], strides = [1, 1]} : vector<256x32xbf16> to vector<16x32xbf16>
    %c12 = arith.constant 12 : index
    %c0_48 = arith.constant 0 : index
    %c0_49 = arith.constant 0 : index
    %75 = vector.load %arg5[%c12, %c0_48, %c0_49] : memref<16x32x64xbf16, #tpu.memory_space<vmem>>, vector<1x32x64xbf16>
    %76 = vector.shape_cast %75 : vector<1x32x64xbf16> to vector<32x64xbf16>
    %cst_50 = arith.constant dense<0.000000e+00> : vector<16x64xf32>
    %77 = tpu.matmul %74, %76, %cst_50 {dimension_numbers = #tpu.dot_dimension_numbers<[1], [0], [0], [1], [0, 0, 1, 1], [], []>} : vector<16x32xbf16>, vector<32x64xbf16>, vector<16x64xf32> -> vector<16x64xf32>
    %78 = arith.addf %73, %77 : vector<16x64xf32>
    %79 = vector.extract_strided_slice %12 {offsets = [208, 0], sizes = [16, 32], strides = [1, 1]} : vector<256x32xbf16> to vector<16x32xbf16>
    %c13 = arith.constant 13 : index
    %c0_51 = arith.constant 0 : index
    %c0_52 = arith.constant 0 : index
    %80 = vector.load %arg5[%c13, %c0_51, %c0_52] : memref<16x32x64xbf16, #tpu.memory_space<vmem>>, vector<1x32x64xbf16>
    %81 = vector.shape_cast %80 : vector<1x32x64xbf16> to vector<32x64xbf16>
    %cst_53 = arith.constant dense<0.000000e+00> : vector<16x64xf32>
    %82 = tpu.matmul %79, %81, %cst_53 {dimension_numbers = #tpu.dot_dimension_numbers<[1], [0], [0], [1], [0, 0, 1, 1], [], []>} : vector<16x32xbf16>, vector<32x64xbf16>, vector<16x64xf32> -> vector<16x64xf32>
    %83 = arith.addf %78, %82 : vector<16x64xf32>
    %84 = vector.extract_strided_slice %12 {offsets = [224, 0], sizes = [16, 32], strides = [1, 1]} : vector<256x32xbf16> to vector<16x32xbf16>
    %c14 = arith.constant 14 : index
    %c0_54 = arith.constant 0 : index
    %c0_55 = arith.constant 0 : index
    %85 = vector.load %arg5[%c14, %c0_54, %c0_55] : memref<16x32x64xbf16, #tpu.memory_space<vmem>>, vector<1x32x64xbf16>
    %86 = vector.shape_cast %85 : vector<1x32x64xbf16> to vector<32x64xbf16>
    %cst_56 = arith.constant dense<0.000000e+00> : vector<16x64xf32>
    %87 = tpu.matmul %84, %86, %cst_56 {dimension_numbers = #tpu.dot_dimension_numbers<[1], [0], [0], [1], [0, 0, 1, 1], [], []>} : vector<16x32xbf16>, vector<32x64xbf16>, vector<16x64xf32> -> vector<16x64xf32>
    %88 = arith.addf %83, %87 : vector<16x64xf32>
    %89 = vector.extract_strided_slice %12 {offsets = [240, 0], sizes = [16, 32], strides = [1, 1]} : vector<256x32xbf16> to vector<16x32xbf16>
    %c15 = arith.constant 15 : index
    %c0_57 = arith.constant 0 : index
    %c0_58 = arith.constant 0 : index
    %90 = vector.load %arg5[%c15, %c0_57, %c0_58] : memref<16x32x64xbf16, #tpu.memory_space<vmem>>, vector<1x32x64xbf16>
    %91 = vector.shape_cast %90 : vector<1x32x64xbf16> to vector<32x64xbf16>
    %cst_59 = arith.constant dense<0.000000e+00> : vector<16x64xf32>
    %92 = tpu.matmul %89, %91, %cst_59 {dimension_numbers = #tpu.dot_dimension_numbers<[1], [0], [0], [1], [0, 0, 1, 1], [], []>} : vector<16x32xbf16>, vector<32x64xbf16>, vector<16x64xf32> -> vector<16x64xf32>
    %93 = arith.addf %88, %92 : vector<16x64xf32>
    %c0_60 = arith.constant 0 : index
    %c0_61 = arith.constant 0 : index
    %94 = vector.load %arg6[%c0_60, %c0_61] : memref<1x64xf32, #tpu.memory_space<vmem>>, vector<1x64xf32>
    %95 = vector.broadcast %94 : vector<1x64xf32> to vector<16x64xf32>
    %96 = arith.addf %93, %95 : vector<16x64xf32>
    %cst_62 = arith.constant 0.000000e+00 : f32
    %97 = vector.broadcast %cst_62 : f32 to vector<16x64xf32>
    %98 = arith.maximumf %96, %97 : vector<16x64xf32>
    %99 = arith.truncf %98 : vector<16x64xf32> to vector<16x64xbf16>
    %c0_63 = arith.constant 0 : index
    %c0_64 = arith.constant 0 : index
    %100 = vector.load %arg7[%c0_63, %c0_64] : memref<144x16xbf16, #tpu.memory_space<vmem>>, vector<144x16xbf16>
    %cst_65 = arith.constant dense<0.000000e+00> : vector<144x64xf32>
    %101 = tpu.matmul %100, %99, %cst_65 {dimension_numbers = #tpu.dot_dimension_numbers<[1], [0], [0], [1], [0, 0, 1, 1], [], []>} : vector<144x16xbf16>, vector<16x64xbf16>, vector<144x64xf32> -> vector<144x64xf32>
    %102 = arith.truncf %101 : vector<144x64xf32> to vector<144x64xbf16>
    %cst_66 = arith.constant 0.000000e+00 : f32
    %103 = vector.broadcast %cst_66 : f32 to vector<16x64xf32>
    %104 = vector.extract_strided_slice %102 {offsets = [0, 0], sizes = [16, 64], strides = [1, 1]} : vector<144x64xbf16> to vector<16x64xbf16>
    %c0_67 = arith.constant 0 : index
    %c0_68 = arith.constant 0 : index
    %c0_69 = arith.constant 0 : index
    %105 = vector.load %arg8[%c0_67, %c0_68, %c0_69] : memref<9x64x64xbf16, #tpu.memory_space<vmem>>, vector<1x64x64xbf16>
    %106 = vector.shape_cast %105 : vector<1x64x64xbf16> to vector<64x64xbf16>
    %cst_70 = arith.constant dense<0.000000e+00> : vector<16x64xf32>
    %107 = tpu.matmul %104, %106, %cst_70 {dimension_numbers = #tpu.dot_dimension_numbers<[1], [0], [0], [1], [0, 0, 1, 1], [], []>} : vector<16x64xbf16>, vector<64x64xbf16>, vector<16x64xf32> -> vector<16x64xf32>
    %108 = arith.addf %103, %107 : vector<16x64xf32>
    %109 = vector.extract_strided_slice %102 {offsets = [16, 0], sizes = [16, 64], strides = [1, 1]} : vector<144x64xbf16> to vector<16x64xbf16>
    %c1_71 = arith.constant 1 : index
    %c0_72 = arith.constant 0 : index
    %c0_73 = arith.constant 0 : index
    %110 = vector.load %arg8[%c1_71, %c0_72, %c0_73] : memref<9x64x64xbf16, #tpu.memory_space<vmem>>, vector<1x64x64xbf16>
    %111 = vector.shape_cast %110 : vector<1x64x64xbf16> to vector<64x64xbf16>
    %cst_74 = arith.constant dense<0.000000e+00> : vector<16x64xf32>
    %112 = tpu.matmul %109, %111, %cst_74 {dimension_numbers = #tpu.dot_dimension_numbers<[1], [0], [0], [1], [0, 0, 1, 1], [], []>} : vector<16x64xbf16>, vector<64x64xbf16>, vector<16x64xf32> -> vector<16x64xf32>
    %113 = arith.addf %108, %112 : vector<16x64xf32>
    %114 = vector.extract_strided_slice %102 {offsets = [32, 0], sizes = [16, 64], strides = [1, 1]} : vector<144x64xbf16> to vector<16x64xbf16>
    %c2_75 = arith.constant 2 : index
    %c0_76 = arith.constant 0 : index
    %c0_77 = arith.constant 0 : index
    %115 = vector.load %arg8[%c2_75, %c0_76, %c0_77] : memref<9x64x64xbf16, #tpu.memory_space<vmem>>, vector<1x64x64xbf16>
    %116 = vector.shape_cast %115 : vector<1x64x64xbf16> to vector<64x64xbf16>
    %cst_78 = arith.constant dense<0.000000e+00> : vector<16x64xf32>
    %117 = tpu.matmul %114, %116, %cst_78 {dimension_numbers = #tpu.dot_dimension_numbers<[1], [0], [0], [1], [0, 0, 1, 1], [], []>} : vector<16x64xbf16>, vector<64x64xbf16>, vector<16x64xf32> -> vector<16x64xf32>
    %118 = arith.addf %113, %117 : vector<16x64xf32>
    %119 = vector.extract_strided_slice %102 {offsets = [48, 0], sizes = [16, 64], strides = [1, 1]} : vector<144x64xbf16> to vector<16x64xbf16>
    %c3_79 = arith.constant 3 : index
    %c0_80 = arith.constant 0 : index
    %c0_81 = arith.constant 0 : index
    %120 = vector.load %arg8[%c3_79, %c0_80, %c0_81] : memref<9x64x64xbf16, #tpu.memory_space<vmem>>, vector<1x64x64xbf16>
    %121 = vector.shape_cast %120 : vector<1x64x64xbf16> to vector<64x64xbf16>
    %cst_82 = arith.constant dense<0.000000e+00> : vector<16x64xf32>
    %122 = tpu.matmul %119, %121, %cst_82 {dimension_numbers = #tpu.dot_dimension_numbers<[1], [0], [0], [1], [0, 0, 1, 1], [], []>} : vector<16x64xbf16>, vector<64x64xbf16>, vector<16x64xf32> -> vector<16x64xf32>
    %123 = arith.addf %118, %122 : vector<16x64xf32>
    %124 = vector.extract_strided_slice %102 {offsets = [64, 0], sizes = [16, 64], strides = [1, 1]} : vector<144x64xbf16> to vector<16x64xbf16>
    %c4_83 = arith.constant 4 : index
    %c0_84 = arith.constant 0 : index
    %c0_85 = arith.constant 0 : index
    %125 = vector.load %arg8[%c4_83, %c0_84, %c0_85] : memref<9x64x64xbf16, #tpu.memory_space<vmem>>, vector<1x64x64xbf16>
    %126 = vector.shape_cast %125 : vector<1x64x64xbf16> to vector<64x64xbf16>
    %cst_86 = arith.constant dense<0.000000e+00> : vector<16x64xf32>
    %127 = tpu.matmul %124, %126, %cst_86 {dimension_numbers = #tpu.dot_dimension_numbers<[1], [0], [0], [1], [0, 0, 1, 1], [], []>} : vector<16x64xbf16>, vector<64x64xbf16>, vector<16x64xf32> -> vector<16x64xf32>
    %128 = arith.addf %123, %127 : vector<16x64xf32>
    %129 = vector.extract_strided_slice %102 {offsets = [80, 0], sizes = [16, 64], strides = [1, 1]} : vector<144x64xbf16> to vector<16x64xbf16>
    %c5_87 = arith.constant 5 : index
    %c0_88 = arith.constant 0 : index
    %c0_89 = arith.constant 0 : index
    %130 = vector.load %arg8[%c5_87, %c0_88, %c0_89] : memref<9x64x64xbf16, #tpu.memory_space<vmem>>, vector<1x64x64xbf16>
    %131 = vector.shape_cast %130 : vector<1x64x64xbf16> to vector<64x64xbf16>
    %cst_90 = arith.constant dense<0.000000e+00> : vector<16x64xf32>
    %132 = tpu.matmul %129, %131, %cst_90 {dimension_numbers = #tpu.dot_dimension_numbers<[1], [0], [0], [1], [0, 0, 1, 1], [], []>} : vector<16x64xbf16>, vector<64x64xbf16>, vector<16x64xf32> -> vector<16x64xf32>
    %133 = arith.addf %128, %132 : vector<16x64xf32>
    %134 = vector.extract_strided_slice %102 {offsets = [96, 0], sizes = [16, 64], strides = [1, 1]} : vector<144x64xbf16> to vector<16x64xbf16>
    %c6_91 = arith.constant 6 : index
    %c0_92 = arith.constant 0 : index
    %c0_93 = arith.constant 0 : index
    %135 = vector.load %arg8[%c6_91, %c0_92, %c0_93] : memref<9x64x64xbf16, #tpu.memory_space<vmem>>, vector<1x64x64xbf16>
    %136 = vector.shape_cast %135 : vector<1x64x64xbf16> to vector<64x64xbf16>
    %cst_94 = arith.constant dense<0.000000e+00> : vector<16x64xf32>
    %137 = tpu.matmul %134, %136, %cst_94 {dimension_numbers = #tpu.dot_dimension_numbers<[1], [0], [0], [1], [0, 0, 1, 1], [], []>} : vector<16x64xbf16>, vector<64x64xbf16>, vector<16x64xf32> -> vector<16x64xf32>
    %138 = arith.addf %133, %137 : vector<16x64xf32>
    %139 = vector.extract_strided_slice %102 {offsets = [112, 0], sizes = [16, 64], strides = [1, 1]} : vector<144x64xbf16> to vector<16x64xbf16>
    %c7_95 = arith.constant 7 : index
    %c0_96 = arith.constant 0 : index
    %c0_97 = arith.constant 0 : index
    %140 = vector.load %arg8[%c7_95, %c0_96, %c0_97] : memref<9x64x64xbf16, #tpu.memory_space<vmem>>, vector<1x64x64xbf16>
    %141 = vector.shape_cast %140 : vector<1x64x64xbf16> to vector<64x64xbf16>
    %cst_98 = arith.constant dense<0.000000e+00> : vector<16x64xf32>
    %142 = tpu.matmul %139, %141, %cst_98 {dimension_numbers = #tpu.dot_dimension_numbers<[1], [0], [0], [1], [0, 0, 1, 1], [], []>} : vector<16x64xbf16>, vector<64x64xbf16>, vector<16x64xf32> -> vector<16x64xf32>
    %143 = arith.addf %138, %142 : vector<16x64xf32>
    %144 = vector.extract_strided_slice %102 {offsets = [128, 0], sizes = [16, 64], strides = [1, 1]} : vector<144x64xbf16> to vector<16x64xbf16>
    %c8_99 = arith.constant 8 : index
    %c0_100 = arith.constant 0 : index
    %c0_101 = arith.constant 0 : index
    %145 = vector.load %arg8[%c8_99, %c0_100, %c0_101] : memref<9x64x64xbf16, #tpu.memory_space<vmem>>, vector<1x64x64xbf16>
    %146 = vector.shape_cast %145 : vector<1x64x64xbf16> to vector<64x64xbf16>
    %cst_102 = arith.constant dense<0.000000e+00> : vector<16x64xf32>
    %147 = tpu.matmul %144, %146, %cst_102 {dimension_numbers = #tpu.dot_dimension_numbers<[1], [0], [0], [1], [0, 0, 1, 1], [], []>} : vector<16x64xbf16>, vector<64x64xbf16>, vector<16x64xf32> -> vector<16x64xf32>
    %148 = arith.addf %143, %147 : vector<16x64xf32>
    %c0_103 = arith.constant 0 : index
    %c0_104 = arith.constant 0 : index
    %149 = vector.load %arg9[%c0_103, %c0_104] : memref<1x64xf32, #tpu.memory_space<vmem>>, vector<1x64xf32>
    %150 = vector.broadcast %149 : vector<1x64xf32> to vector<16x64xf32>
    %151 = arith.addf %148, %150 : vector<16x64xf32>
    %cst_105 = arith.constant 0.000000e+00 : f32
    %152 = vector.broadcast %cst_105 : f32 to vector<16x64xf32>
    %153 = arith.maximumf %151, %152 : vector<16x64xf32>
    %154 = arith.truncf %153 : vector<16x64xf32> to vector<16x64xbf16>
    %cst_106 = arith.constant 0.000000e+00 : f32
    %155 = vector.broadcast %cst_106 : f32 to vector<1x512xf32>
    %156 = vector.extract_strided_slice %154 {offsets = [0, 0], sizes = [1, 64], strides = [1, 1]} : vector<16x64xbf16> to vector<1x64xbf16>
    %c0_107 = arith.constant 0 : index
    %c0_108 = arith.constant 0 : index
    %c0_109 = arith.constant 0 : index
    %157 = vector.load %arg10[%c0_107, %c0_108, %c0_109] : memref<1x64x512xbf16, #tpu.memory_space<vmem>>, vector<1x64x512xbf16>
    %158 = vector.shape_cast %157 : vector<1x64x512xbf16> to vector<64x512xbf16>
    %cst_110 = arith.constant dense<0.000000e+00> : vector<1x512xf32>
    %159 = tpu.matmul %156, %158, %cst_110 {dimension_numbers = #tpu.dot_dimension_numbers<[1], [0], [0], [1], [0, 0, 1, 1], [], []>} : vector<1x64xbf16>, vector<64x512xbf16>, vector<1x512xf32> -> vector<1x512xf32>
    %160 = arith.addf %155, %159 : vector<1x512xf32>
    %c0_111 = arith.constant 0 : index
    %c0_112 = arith.constant 0 : index
    %161 = vector.load %arg11[%c0_111, %c0_112] : memref<1x512xf32, #tpu.memory_space<vmem>>, vector<1x512xf32>
    %162 = arith.addf %160, %161 : vector<1x512xf32>
    %cst_113 = arith.constant 0.000000e+00 : f32
    %163 = vector.broadcast %cst_113 : f32 to vector<1x512xf32>
    %164 = arith.maximumf %162, %163 : vector<1x512xf32>
    %165 = arith.truncf %164 : vector<1x512xf32> to vector<1x512xbf16>
    %c0_114 = arith.constant 0 : index
    %c0_115 = arith.constant 0 : index
    %166 = vector.load %arg12[%c0_114, %c0_115] : memref<512x128xbf16, #tpu.memory_space<vmem>>, vector<512x128xbf16>
    %cst_116 = arith.constant dense<0.000000e+00> : vector<1x128xf32>
    %167 = tpu.matmul %165, %166, %cst_116 {dimension_numbers = #tpu.dot_dimension_numbers<[1], [0], [0], [1], [0, 0, 1, 1], [], []>} : vector<1x512xbf16>, vector<512x128xbf16>, vector<1x128xf32> -> vector<1x128xf32>
    %c0_117 = arith.constant 0 : index
    %c0_118 = arith.constant 0 : index
    %168 = vector.load %arg13[%c0_117, %c0_118] : memref<1x128xf32, #tpu.memory_space<vmem>>, vector<1x128xf32>
    %169 = arith.addf %167, %168 : vector<1x128xf32>
    %c0_119 = arith.constant 0 : index
    %c0_120 = arith.constant 0 : index
    %c0_121 = arith.constant 0 : index
    %170 = vector.load %arg14[%c0_119, %c0_120, %c0_121] : memref<1x1x128xf32, #tpu.memory_space<vmem>>, vector<1x1x128xf32>
    %171 = vector.shape_cast %170 : vector<1x1x128xf32> to vector<1x128xf32>
    %172 = vector.shape_cast %169 : vector<1x128xf32> to vector<1x1x128xf32>
    tpu.vector_store %arg14[%c0_119, %c0_120, %c0_121], %172 {strides = array<i32>} : memref<1x1x128xf32, #tpu.memory_space<vmem>>, vector<1x1x128xf32>,
    return
  }
  func.func @transform_0(%arg0: i32) -> (i32, i32, i32) {
    %c0_i32 = arith.constant 0 : i32
    %c0_i32_0 = arith.constant 0 : i32
    %c0_i32_1 = arith.constant 0 : i32
    return %arg0, %c0_i32, %c0_i32_0 : i32, i32, i32
  }
  func.func @transform_1(%arg0: i32) -> (i32, i32) {
    %c0_i32 = arith.constant 0 : i32
    %c0_i32_0 = arith.constant 0 : i32
    %c0_i32_1 = arith.constant 0 : i32
    return %c0_i32, %c0_i32_0 : i32, i32
  }
  func.func @transform_2(%arg0: i32) -> (i32, i32) {
    %c0_i32 = arith.constant 0 : i32
    %c0_i32_0 = arith.constant 0 : i32
    %c0_i32_1 = arith.constant 0 : i32
    return %c0_i32, %c0_i32_0 : i32, i32
  }
  func.func @transform_3(%arg0: i32) -> (i32, i32) {
    %c0_i32 = arith.constant 0 : i32
    %c0_i32_0 = arith.constant 0 : i32
    %c0_i32_1 = arith.constant 0 : i32
    return %c0_i32, %c0_i32_0 : i32, i32
  }
  func.func @transform_4(%arg0: i32) -> (i32, i32, i32) {
    %c0_i32 = arith.constant 0 : i32
    %c0_i32_0 = arith.constant 0 : i32
    %c0_i32_1 = arith.constant 0 : i32
    %c0_i32_2 = arith.constant 0 : i32
    return %c0_i32, %c0_i32_0, %c0_i32_1 : i32, i32, i32
  }
  func.func @transform_5(%arg0: i32) -> (i32, i32) {
    %c0_i32 = arith.constant 0 : i32
    %c0_i32_0 = arith.constant 0 : i32
    %c0_i32_1 = arith.constant 0 : i32
    return %c0_i32, %c0_i32_0 : i32, i32
  }
  func.func @transform_6(%arg0: i32) -> (i32, i32) {
    %c0_i32 = arith.constant 0 : i32
    %c0_i32_0 = arith.constant 0 : i32
    %c0_i32_1 = arith.constant 0 : i32
    return %c0_i32, %c0_i32_0 : i32, i32
  }
  func.func @transform_7(%arg0: i32) -> (i32, i32, i32) {
    %c0_i32 = arith.constant 0 : i32
    %c0_i32_0 = arith.constant 0 : i32
    %c0_i32_1 = arith.constant 0 : i32
    %c0_i32_2 = arith.constant 0 : i32
    return %c0_i32, %c0_i32_0, %c0_i32_1 : i32, i32, i32
  }
  func.func @transform_8(%arg0: i32) -> (i32, i32) {
    %c0_i32 = arith.constant 0 : i32
    %c0_i32_0 = arith.constant 0 : i32
    %c0_i32_1 = arith.constant 0 : i32
    return %c0_i32, %c0_i32_0 : i32, i32
  }
  func.func @transform_9(%arg0: i32) -> (i32, i32, i32) {
    %c0_i32 = arith.constant 0 : i32
    %c0_i32_0 = arith.constant 0 : i32
    %c0_i32_1 = arith.constant 0 : i32
    %c0_i32_2 = arith.constant 0 : i32
    return %c0_i32, %c0_i32_0, %c0_i32_1 : i32, i32, i32
  }
  func.func @transform_10(%arg0: i32) -> (i32, i32) {
    %c0_i32 = arith.constant 0 : i32
    %c0_i32_0 = arith.constant 0 : i32
    %c0_i32_1 = arith.constant 0 : i32
    return %c0_i32, %c0_i32_0 : i32, i32
  }
  func.func @transform_11(%arg0: i32) -> (i32, i32) {
    %c0_i32 = arith.constant 0 : i32
    %c0_i32_0 = arith.constant 0 : i32
    %c0_i32_1 = arith.constant 0 : i32
    return %c0_i32, %c0_i32_0 : i32, i32
  }
  func.func @transform_12(%arg0: i32) -> (i32, i32) {
    %c0_i32 = arith.constant 0 : i32
    %c0_i32_0 = arith.constant 0 : i32
    %c0_i32_1 = arith.constant 0 : i32
    return %c0_i32, %c0_i32_0 : i32, i32
  }
  func.func @transform_13(%arg0: i32) -> (i32, i32, i32) {
    %c0_i32 = arith.constant 0 : i32
    %c0_i32_0 = arith.constant 0 : i32
    %c0_i32_1 = arith.constant 0 : i32
    return %arg0, %c0_i32, %c0_i32_0 : i32, i32, i32
  }
}

</mosaic_0001>

<llo_original>
// kernel: forward.1
$region0: #{forward.1}
  #allocation0 [shape = 'u32[]', space=smem, size = 0x4, offset = 0x4, fixed_abs, tag = 'smem constant byte address 0x4 - core index']
  #allocation1 [shape = 'u32[144,128]{1,0:T(1,128)}', space=vmem, size = 0x12000, scoped, tag = 'internal scratch']
  %s0 = inlined_call_operand.vmem [shape: bf16[8,64,256], index: 0, kind: input, shape index: {}]
  %s1 = inlined_call_operand.vmem [shape: bf16[256,32], index: 1, kind: input, shape index: {}]
  %s2 = inlined_call_operand.vmem [shape: f32[1,32], index: 2, kind: input, shape index: {}]
  %s3 = inlined_call_operand.vmem [shape: bf16[256,64], index: 3, kind: input, shape index: {}]
  %s4 = inlined_call_operand.vmem [shape: bf16[16,32,64], index: 4, kind: input, shape index: {}]
  %s5 = inlined_call_operand.vmem [shape: f32[1,64], index: 5, kind: input, shape index: {}]
  %s6 = inlined_call_operand.vmem [shape: bf16[144,16], index: 6, kind: input, shape index: {}]
  %s7 = inlined_call_operand.vmem [shape: bf16[9,64,64], index: 7, kind: input, shape index: {}]
  %s8 = inlined_call_operand.vmem [shape: f32[1,64], index: 8, kind: input, shape index: {}]
  %s9 = inlined_call_operand.vmem [shape: bf16[1,64,512], index: 9, kind: input, shape index: {}]
  %s10 = inlined_call_operand.vmem [shape: f32[1,512], index: 10, kind: input, shape index: {}]
  %s11 = inlined_call_operand.vmem [shape: bf16[512,128], index: 11, kind: input, shape index: {}]
  %s12 = inlined_call_operand.vmem [shape: f32[1,128], index: 12, kind: input, shape index: {}]
  %s13 = inlined_call_operand.hbm [shape: f32[8,1,128], index: 13, kind: output, shape index: {}]
  %s14 = sld [smem:[#allocation0]]
  $region85: #{forward.1} parent=0
    _
  %s16 = ssub.s32 1, %s14
  %s17 = scalar_select 0, %s16, %s14
  $region1: #{forward.1} parent=0
    #allocation2 [shape = 'u8[1024]{0}', space=vmem, size = 0x400, scoped, tag = 'output window, operand 0']
    #allocation3 [shape = 's32[2]{0}', space=sflag, size = 0x8, scoped, tag = 'scoped memory for forward.1']
    %18 = vsyncpa [#allocation3], 0
    %s19 = scalar_lea.sflag [#allocation3], 1
    %20 = vsyncpa %s19, 0
    loop: start=0, step=1, limit=10
    $region2: #{forward.1} parent=1 // loop_pre_header
      _
    $region3: #{forward.1} parent=1 // loop_header
      %s22 = sphi 0, %s26
      %p23 = scmp.ge.s32.totalorder %s22, 10
      %s32 = sphi 0, %s34
      %s35 = sphi 0, %s32
      %s36 = sphi 0, %s35
      %s52 = sphi 0, %s36
      %s56 = sphi 0, %s56
      %s58 = sphi 0, %s56
      %s59 = sphi 0, %s58
      %s73 = sphi 0, %s59
      %s77 = sphi 0, %s77
      %s79 = sphi 0, %s77
      %s80 = sphi 0, %s79
      %s94 = sphi 0, %s80
      %s98 = sphi 0, %s98
      %s100 = sphi 0, %s98
      %s101 = sphi 0, %s100
      %s115 = sphi 0, %s101
      %s119 = sphi 0, %s119
      %s121 = sphi 0, %s119
      %s122 = sphi 0, %s121
      %s136 = sphi 0, %s122
      %s140 = sphi 0, %s140
      %s142 = sphi 0, %s140
      %s143 = sphi 0, %s142
      %s157 = sphi 0, %s143
      %s161 = sphi 0, %s161
      %s163 = sphi 0, %s161
      %s164 = sphi 0, %s163
      %s178 = sphi 0, %s164
      %s182 = sphi 0, %s182
      %s184 = sphi 0, %s182
      %s185 = sphi 0, %s184
      %s199 = sphi 0, %s185
      %s203 = sphi 0, %s203
      %s205 = sphi 0, %s203
      %s206 = sphi 0, %s205
      %s220 = sphi 0, %s206
      %s224 = sphi 0, %s224
      %s226 = sphi 0, %s224
      %s227 = sphi 0, %s226
      %s241 = sphi 0, %s227
      %s245 = sphi 0, %s245
      %s247 = sphi 0, %s245
      %s248 = sphi 0, %s247
      %s262 = sphi 0, %s248
      %s266 = sphi 0, %s266
      %s268 = sphi 0, %s266
      %s269 = sphi 0, %s268
      %s283 = sphi 0, %s269
      %s287 = sphi 0, %s287
      %s289 = sphi 0, %s287
      %s290 = sphi 0, %s289
      %s304 = sphi 0, %s290
      %s310 = sphi 0, %s312
      %s313 = sphi 0, %s310
      %s314 = sphi 0, %s313
      %s330 = sphi 0, %s314
    $region4: #{forward.1} parent=1 // loop_header_branch
      %25 = sbr.rel (%p23) target = $region8
    $region5: #{forward.1} parent=1 // loop_body
      %s27 = ssub.s32 %s22, 1
      %s28 = ssub.s32 %s22, 2
      %s29 = sadd.s32 %s22, 1
      %s30 = ssub.s32 %s22, %s29
      %p31 = scmp.eq.s32.totalorder %s30, 0
      %s33 = sadd.s32 %s32, 1
      %s34 = scalar_select %p31, %s32, %s33
      %p37 = pneg %p31
      %p38 = scmp.eq.s32.totalorder %s22, 7
      %p39 = por %p37, %p38
      %p40 = scmp.ne.s32.totalorder %s32, %s35
      %p41 = scmp.eq.s32.totalorder %s22, 0
      %p42 = por %p40, %p41
      %p43 = scmp.ne.s32.totalorder %s32, %s35
      %p44 = scmp.eq.s32.totalorder %s27, 7
      %p45 = por %p43, %p44
      %p46 = scmp.ne.s32.totalorder %s35, %s36
      %p47 = scmp.eq.s32.totalorder %s27, 0
      %p48 = por %p46, %p47
      %p49 = scmp.ne.s32.totalorder %s35, %s36
      %p50 = scmp.eq.s32.totalorder %s28, 7
      %p51 = por %p49, %p50
      %p53 = scmp.ne.s32.totalorder %s36, %s52
      %p54 = scmp.eq.s32.totalorder %s28, 0
      %p55 = por %p53, %p54
      %s57 = sadd.s32 %s56, 1
      %p60 = scmp.eq.s32.totalorder %s22, 7
      %p61 = scmp.ne.s32.totalorder %s56, %s58
      %p62 = scmp.eq.s32.totalorder %s22, 0
      %p63 = por %p61, %p62
      %p64 = scmp.ne.s32.totalorder %s56, %s58
      %p65 = scmp.eq.s32.totalorder %s27, 7
      %p66 = por %p64, %p65
      %p67 = scmp.ne.s32.totalorder %s58, %s59
      %p68 = scmp.eq.s32.totalorder %s27, 0
      %p69 = por %p67, %p68
      %p70 = scmp.ne.s32.totalorder %s58, %s59
      %p71 = scmp.eq.s32.totalorder %s28, 7
      %p72 = por %p70, %p71
      %p74 = scmp.ne.s32.totalorder %s59, %s73
      %p75 = scmp.eq.s32.totalorder %s28, 0
      %p76 = por %p74, %p75
      %s78 = sadd.s32 %s77, 1
      %p81 = scmp.eq.s32.totalorder %s22, 7
      %p82 = scmp.ne.s32.totalorder %s77, %s79
      %p83 = scmp.eq.s32.totalorder %s22, 0
      %p84 = por %p82, %p83
      %p85 = scmp.ne.s32.totalorder %s77, %s79
      %p86 = scmp.eq.s32.totalorder %s27, 7
      %p87 = por %p85, %p86
      %p88 = scmp.ne.s32.totalorder %s79, %s80
      %p89 = scmp.eq.s32.totalorder %s27, 0
      %p90 = por %p88, %p89
      %p91 = scmp.ne.s32.totalorder %s79, %s80
      %p92 = scmp.eq.s32.totalorder %s28, 7
      %p93 = por %p91, %p92
      %p95 = scmp.ne.s32.totalorder %s80, %s94
      %p96 = scmp.eq.s32.totalorder %s28, 0
      %p97 = por %p95, %p96
      %s99 = sadd.s32 %s98, 1
      %p102 = scmp.eq.s32.totalorder %s22, 7
      %p103 = scmp.ne.s32.totalorder %s98, %s100
      %p104 = scmp.eq.s32.totalorder %s22, 0
      %p105 = por %p103, %p104
      %p106 = scmp.ne.s32.totalorder %s98, %s100
      %p107 = scmp.eq.s32.totalorder %s27, 7
      %p108 = por %p106, %p107
      %p109 = scmp.ne.s32.totalorder %s100, %s101
      %p110 = scmp.eq.s32.totalorder %s27, 0
      %p111 = por %p109, %p110
      %p112 = scmp.ne.s32.totalorder %s100, %s101
      %p113 = scmp.eq.s32.totalorder %s28, 7
      %p114 = por %p112, %p113
      %p116 = scmp.ne.s32.totalorder %s101, %s115
      %p117 = scmp.eq.s32.totalorder %s28, 0
      %p118 = por %p116, %p117
      %s120 = sadd.s32 %s119, 1
      %p123 = scmp.eq.s32.totalorder %s22, 7
      %p124 = scmp.ne.s32.totalorder %s119, %s121
      %p125 = scmp.eq.s32.totalorder %s22, 0
      %p126 = por %p124, %p125
      %p127 = scmp.ne.s32.totalorder %s119, %s121
      %p128 = scmp.eq.s32.totalorder %s27, 7
      %p129 = por %p127, %p128
      %p130 = scmp.ne.s32.totalorder %s121, %s122
      %p131 = scmp.eq.s32.totalorder %s27, 0
      %p132 = por %p130, %p131
      %p133 = scmp.ne.s32.totalorder %s121, %s122
      %p134 = scmp.eq.s32.totalorder %s28, 7
      %p135 = por %p133, %p134
      %p137 = scmp.ne.s32.totalorder %s122, %s136
      %p138 = scmp.eq.s32.totalorder %s28, 0
      %p139 = por %p137, %p138
      %s141 = sadd.s32 %s140, 1
      %p144 = scmp.eq.s32.totalorder %s22, 7
      %p145 = scmp.ne.s32.totalorder %s140, %s142
      %p146 = scmp.eq.s32.totalorder %s22, 0
      %p147 = por %p145, %p146
      %p148 = scmp.ne.s32.totalorder %s140, %s142
      %p149 = scmp.eq.s32.totalorder %s27, 7
      %p150 = por %p148, %p149
      %p151 = scmp.ne.s32.totalorder %s142, %s143
      %p152 = scmp.eq.s32.totalorder %s27, 0
      %p153 = por %p151, %p152
      %p154 = scmp.ne.s32.totalorder %s142, %s143
      %p155 = scmp.eq.s32.totalorder %s28, 7
      %p156 = por %p154, %p155
      %p158 = scmp.ne.s32.totalorder %s143, %s157
      %p159 = scmp.eq.s32.totalorder %s28, 0
      %p160 = por %p158, %p159
      %s162 = sadd.s32 %s161, 1
      %p165 = scmp.eq.s32.totalorder %s22, 7
      %p166 = scmp.ne.s32.totalorder %s161, %s163
      %p167 = scmp.eq.s32.totalorder %s22, 0
      %p168 = por %p166, %p167
      %p169 = scmp.ne.s32.totalorder %s161, %s163
      %p170 = scmp.eq.s32.totalorder %s27, 7
      %p171 = por %p169, %p170
      %p172 = scmp.ne.s32.totalorder %s163, %s164
      %p173 = scmp.eq.s32.totalorder %s27, 0
      %p174 = por %p172, %p173
      %p175 = scmp.ne.s32.totalorder %s163, %s164
      %p176 = scmp.eq.s32.totalorder %s28, 7
      %p177 = por %p175, %p176
      %p179 = scmp.ne.s32.totalorder %s164, %s178
      %p180 = scmp.eq.s32.totalorder %s28, 0
      %p181 = por %p179, %p180
      %s183 = sadd.s32 %s182, 1
      %p186 = scmp.eq.s32.totalorder %s22, 7
      %p187 = scmp.ne.s32.totalorder %s182, %s184
      %p188 = scmp.eq.s32.totalorder %s22, 0
      %p189 = por %p187, %p188
      %p190 = scmp.ne.s32.totalorder %s182, %s184
      %p191 = scmp.eq.s32.totalorder %s27, 7
      %p192 = por %p190, %p191
      %p193 = scmp.ne.s32.totalorder %s184, %s185
      %p194 = scmp.eq.s32.totalorder %s27, 0
      %p195 = por %p193, %p194
      %p196 = scmp.ne.s32.totalorder %s184, %s185
      %p197 = scmp.eq.s32.totalorder %s28, 7
      %p198 = por %p196, %p197
      %p200 = scmp.ne.s32.totalorder %s185, %s199
      %p201 = scmp.eq.s32.totalorder %s28, 0
      %p202 = por %p200, %p201
      %s204 = sadd.s32 %s203, 1
      %p207 = scmp.eq.s32.totalorder %s22, 7
      %p208 = scmp.ne.s32.totalorder %s203, %s205
      %p209 = scmp.eq.s32.totalorder %s22, 0
      %p210 = por %p208, %p209
      %p211 = scmp.ne.s32.totalorder %s203, %s205
      %p212 = scmp.eq.s32.totalorder %s27, 7
      %p213 = por %p211, %p212
      %p214 = scmp.ne.s32.totalorder %s205, %s206
      %p215 = scmp.eq.s32.totalorder %s27, 0
      %p216 = por %p214, %p215
      %p217 = scmp.ne.s32.totalorder %s205, %s206
      %p218 = scmp.eq.s32.totalorder %s28, 7
      %p219 = por %p217, %p218
      %p221 = scmp.ne.s32.totalorder %s206, %s220
      %p222 = scmp.eq.s32.totalorder %s28, 0
      %p223 = por %p221, %p222
      %s225 = sadd.s32 %s224, 1
      %p228 = scmp.eq.s32.totalorder %s22, 7
      %p229 = scmp.ne.s32.totalorder %s224, %s226
      %p230 = scmp.eq.s32.totalorder %s22, 0
      %p231 = por %p229, %p230
      %p232 = scmp.ne.s32.totalorder %s224, %s226
      %p233 = scmp.eq.s32.totalorder %s27, 7
      %p234 = por %p232, %p233
      %p235 = scmp.ne.s32.totalorder %s226, %s227
      %p236 = scmp.eq.s32.totalorder %s27, 0
      %p237 = por %p235, %p236
      %p238 = scmp.ne.s32.totalorder %s226, %s227
      %p239 = scmp.eq.s32.totalorder %s28, 7
      %p240 = por %p238, %p239
      %p242 = scmp.ne.s32.totalorder %s227, %s241
      %p243 = scmp.eq.s32.totalorder %s28, 0
      %p244 = por %p242, %p243
      %s246 = sadd.s32 %s245, 1
      %p249 = scmp.eq.s32.totalorder %s22, 7
      %p250 = scmp.ne.s32.totalorder %s245, %s247
      %p251 = scmp.eq.s32.totalorder %s22, 0
      %p252 = por %p250, %p251
      %p253 = scmp.ne.s32.totalorder %s245, %s247
      %p254 = scmp.eq.s32.totalorder %s27, 7
      %p255 = por %p253, %p254
      %p256 = scmp.ne.s32.totalorder %s247, %s248
      %p257 = scmp.eq.s32.totalorder %s27, 0
      %p258 = por %p256, %p257
      %p259 = scmp.ne.s32.totalorder %s247, %s248
      %p260 = scmp.eq.s32.totalorder %s28, 7
      %p261 = por %p259, %p260
      %p263 = scmp.ne.s32.totalorder %s248, %s262
      %p264 = scmp.eq.s32.totalorder %s28, 0
      %p265 = por %p263, %p264
      %s267 = sadd.s32 %s266, 1
      %p270 = scmp.eq.s32.totalorder %s22, 7
      %p271 = scmp.ne.s32.totalorder %s266, %s268
      %p272 = scmp.eq.s32.totalorder %s22, 0
      %p273 = por %p271, %p272
      %p274 = scmp.ne.s32.totalorder %s266, %s268
      %p275 = scmp.eq.s32.totalorder %s27, 7
      %p276 = por %p274, %p275
      %p277 = scmp.ne.s32.totalorder %s268, %s269
      %p278 = scmp.eq.s32.totalorder %s27, 0
      %p279 = por %p277, %p278
      %p280 = scmp.ne.s32.totalorder %s268, %s269
      %p281 = scmp.eq.s32.totalorder %s28, 7
      %p282 = por %p280, %p281
      %p284 = scmp.ne.s32.totalorder %s269, %s283
      %p285 = scmp.eq.s32.totalorder %s28, 0
      %p286 = por %p284, %p285
      %s288 = sadd.s32 %s287, 1
      %p291 = scmp.eq.s32.totalorder %s22, 7
      %p292 = scmp.ne.s32.totalorder %s287, %s289
      %p293 = scmp.eq.s32.totalorder %s22, 0
      %p294 = por %p292, %p293
      %p295 = scmp.ne.s32.totalorder %s287, %s289
      %p296 = scmp.eq.s32.totalorder %s27, 7
      %p297 = por %p295, %p296
      %p298 = scmp.ne.s32.totalorder %s289, %s290
      %p299 = scmp.eq.s32.totalorder %s27, 0
      %p300 = por %p298, %p299
      %p301 = scmp.ne.s32.totalorder %s289, %s290
      %p302 = scmp.eq.s32.totalorder %s28, 7
      %p303 = por %p301, %p302
      %p305 = scmp.ne.s32.totalorder %s290, %s304
      %p306 = scmp.eq.s32.totalorder %s28, 0
      %p307 = por %p305, %p306
      %s308 = ssub.s32 %s22, %s29
      %p309 = scmp.eq.s32.totalorder %s308, 0
      %s311 = sadd.s32 %s310, 1
      %s312 = scalar_select %p309, %s310, %s311
      %p315 = pneg %p309
      %p316 = scmp.eq.s32.totalorder %s22, 7
      %p317 = por %p315, %p316
      %p318 = scmp.ne.s32.totalorder %s310, %s313
      %p319 = scmp.eq.s32.totalorder %s22, 0
      %p320 = por %p318, %p319
      %p321 = scmp.ne.s32.totalorder %s310, %s313
      %p322 = scmp.eq.s32.totalorder %s27, 7
      %p323 = por %p321, %p322
      %p324 = scmp.ne.s32.totalorder %s313, %s314
      %p325 = scmp.eq.s32.totalorder %s27, 0
      %p326 = por %p324, %p325
      %p327 = scmp.ne.s32.totalorder %s313, %s314
      %p328 = scmp.eq.s32.totalorder %s28, 7
      %p329 = por %p327, %p328
      %p331 = scmp.ne.s32.totalorder %s314, %s330
      %p332 = scmp.eq.s32.totalorder %s28, 0
      %p333 = por %p331, %p332
      %p334 = scmp.le.s32.totalorder 1, %s22
      %p335 = scmp.lt.s32.totalorder %s22, 9
      %p336 = pnand %p334, %p335
      %p337 = pneg %p336
      // Predicated region
      $region9: #{forward.1} parent=5 // pred_check
        _
      $region10: #{forward.1} parent=5 // pred_check_branch
        %339 = sbr.rel (%p336) target = $region12
      $region11: #{forward.1} parent=5 // pred_region
        %s340 = ssub.s32 %s22, 1
        // Predicated region
        $region13: #{forward.1} parent=11 // pred_check
          %p341 = pneg %p69
        $region14: #{forward.1} parent=11 // pred_check_branch
          %343 = sbr.rel (%p341) target = $region16
        $region15: #{forward.1} parent=11 // pred_region
          _
        $region16: #{forward.1} parent=11 // pred_fallthru
          _
        // Predicated region
        $region17: #{forward.1} parent=11 // pred_check
          %p344 = pneg %p90
        $region18: #{forward.1} parent=11 // pred_check_branch
          %346 = sbr.rel (%p344) target = $region20
        $region19: #{forward.1} parent=11 // pred_region
          _
        $region20: #{forward.1} parent=11 // pred_fallthru
          _
        // Predicated region
        $region21: #{forward.1} parent=11 // pred_check
          %p347 = pneg %p111
        $region22: #{forward.1} parent=11 // pred_check_branch
          %349 = sbr.rel (%p347) target = $region24
        $region23: #{forward.1} parent=11 // pred_region
          _
        $region24: #{forward.1} parent=11 // pred_fallthru
          _
        // Predicated region
        $region25: #{forward.1} parent=11 // pred_check
          %p350 = pneg %p132
        $region26: #{forward.1} parent=11 // pred_check_branch
          %352 = sbr.rel (%p350) target = $region28
        $region27: #{forward.1} parent=11 // pred_region
          _
        $region28: #{forward.1} parent=11 // pred_fallthru
          _
        // Predicated region
        $region29: #{forward.1} parent=11 // pred_check
          %p353 = pneg %p153
        $region30: #{forward.1} parent=11 // pred_check_branch
          %355 = sbr.rel (%p353) target = $region32
        $region31: #{forward.1} parent=11 // pred_region
          _
        $region32: #{forward.1} parent=11 // pred_fallthru
          _
        // Predicated region
        $region33: #{forward.1} parent=11 // pred_check
          %p356 = pneg %p174
        $region34: #{forward.1} parent=11 // pred_check_branch
          %358 = sbr.rel (%p356) target = $region36
        $region35: #{forward.1} parent=11 // pred_region
          _
        $region36: #{forward.1} parent=11 // pred_fallthru
          _
        // Predicated region
        $region37: #{forward.1} parent=11 // pred_check
          %p359 = pneg %p195
        $region38: #{forward.1} parent=11 // pred_check_branch
          %361 = sbr.rel (%p359) target = $region40
        $region39: #{forward.1} parent=11 // pred_region
          _
        $region40: #{forward.1} parent=11 // pred_fallthru
          _
        // Predicated region
        $region41: #{forward.1} parent=11 // pred_check
          %p362 = pneg %p216
        $region42: #{forward.1} parent=11 // pred_check_branch
          %364 = sbr.rel (%p362) target = $region44
        $region43: #{forward.1} parent=11 // pred_region
          _
        $region44: #{forward.1} parent=11 // pred_fallthru
          _
        // Predicated region
        $region45: #{forward.1} parent=11 // pred_check
          %p365 = pneg %p237
        $region46: #{forward.1} parent=11 // pred_check_branch
          %367 = sbr.rel (%p365) target = $region48
        $region47: #{forward.1} parent=11 // pred_region
          _
        $region48: #{forward.1} parent=11 // pred_fallthru
          _
        // Predicated region
        $region49: #{forward.1} parent=11 // pred_check
          %p368 = pneg %p258
        $region50: #{forward.1} parent=11 // pred_check_branch
          %370 = sbr.rel (%p368) target = $region52
        $region51: #{forward.1} parent=11 // pred_region
          _
        $region52: #{forward.1} parent=11 // pred_fallthru
          _
        // Predicated region
        $region53: #{forward.1} parent=11 // pred_check
          %p371 = pneg %p279
        $region54: #{forward.1} parent=11 // pred_check_branch
          %373 = sbr.rel (%p371) target = $region56
        $region55: #{forward.1} parent=11 // pred_region
          _
        $region56: #{forward.1} parent=11 // pred_fallthru
          _
        // Predicated region
        $region57: #{forward.1} parent=11 // pred_check
          %p374 = pneg %p300
        $region58: #{forward.1} parent=11 // pred_check_branch
          %376 = sbr.rel (%p374) target = $region60
        $region59: #{forward.1} parent=11 // pred_region
          _
        $region60: #{forward.1} parent=11 // pred_fallthru
          _
      $region12: #{forward.1} parent=5 // pred_fallthru
        _
      %p377 = scmp.lt.s32.totalorder %s22, 8
      // Predicated region
      $region61: #{forward.1} parent=5 // pred_check
        %p378 = pneg %p377
      $region62: #{forward.1} parent=5 // pred_check_branch
        %380 = sbr.rel (%p378) target = $region64
      $region63: #{forward.1} parent=5 // pred_region
        // Predicated region
        $region65: #{forward.1} parent=63 // pred_check
          %p381 = pneg %p42
        $region66: #{forward.1} parent=63 // pred_check_branch
          %383 = sbr.rel (%p381) target = $region68
        $region67: #{forward.1} parent=63 // pred_region
          %p384 = scmp.lt.s32.totalorder %s22, 7
          %s385 = scalar_select %p384, %s22, 7
          %s386 = smul.addr %s385, 16
          %s387 = smul.addr %s386, 4
          %s388 = scalar_lea.vmem %s0, %s387
        $region68: #{forward.1} parent=63 // pred_fallthru
          _
      $region64: #{forward.1} parent=5 // pred_fallthru
        _
      %p389 = scmp.le.s32.totalorder 1, %s22
      %p390 = scmp.lt.s32.totalorder %s22, 9
      %p391 = pnand %p389, %p390
      %p392 = pneg %p391
      // Predicated region
      $region69: #{forward.1} parent=5 // pred_check
        _
      $region70: #{forward.1} parent=5 // pred_check_branch
        %394 = sbr.rel (%p391) target = $region72
      $region71: #{forward.1} parent=5 // pred_region
        %s395 = ssub.s32 %s22, 1
        %p396 = scmp.lt.s32.totalorder %s27, 7
        %s397 = scalar_select %p396, %s27, 7
        %s398 = smul.addr %s397, 16
        %s399 = smul.addr %s398, 4
        %s400 = scalar_lea.vmem %s0, %s399
        %p401 = pneg %p48
        %p402 = pneg %p45
        %p403 = pneg %p69
        %p404 = pneg %p66
        %p405 = pneg %p90
        %p406 = pneg %p87
        %p407 = pneg %p111
        %p408 = pneg %p108
        %p409 = pneg %p132
        %p410 = pneg %p129
        %p411 = pneg %p153
        %p412 = pneg %p150
        %p413 = pneg %p174
        %p414 = pneg %p171
        %p415 = pneg %p195
        %p416 = pneg %p192
        %p417 = pneg %p216
        %p418 = pneg %p213
        %p419 = pneg %p237
        %p420 = pneg %p234
        %p421 = pneg %p258
        %p422 = pneg %p255
        %p423 = pneg %p279
        %p424 = pneg %p276
        %p425 = pneg %p300
        %p426 = pneg %p297
        %p427 = pneg %p326
        %p428 = pneg %p323
        %s429 = sand.u32 %s313, 1
        %s430 = scalar_lea.sflag [#allocation3], %s429
        %s431 = sand.u32 %s313, 1
        %s432 = scalar_lea.vmem [#allocation2], %s431
        %p433 = scmp.lt.s32.totalorder %s27, 7
        %s434 = scalar_select %p433, %s27, 7
        %s435 = smul.addr %s434, 16
        %s436 = smul.addr %s435, 4
        %s437 = scalar_lea.vmem %s0, %s436
        %v439 = vld [vmem:[%s437] sm:$0xff]
        %v440 = vld [vmem:[%s437 + $0x8] sm:$0xff]
        %v441 = vld [vmem:[%s437 + $0x10] sm:$0xff]
        %v442 = vld [vmem:[%s437 + $0x18] sm:$0xff]
        %v443 = vld [vmem:[%s437 + $0x20] sm:$0xff]
        %v444 = vld [vmem:[%s437 + $0x28] sm:$0xff]
        %v445 = vld [vmem:[%s437 + $0x30] sm:$0xff]
        %v446 = vld [vmem:[%s437 + $0x38] sm:$0xff]
        %v447 = vld [vmem:[%s1] sm:$0xf]
        %v448 = vld [vmem:[%s1 + $0x4] sm:$0xf]
        %v449 = vld [vmem:[%s1 + $0x8] sm:$0xf]
        %v450 = vld [vmem:[%s1 + $0xc] sm:$0xf]
        %v451 = vld [vmem:[%s1 + $0x10] sm:$0xf]
        %v452 = vld [vmem:[%s1 + $0x14] sm:$0xf]
        %v453 = vld [vmem:[%s1 + $0x18] sm:$0xf]
        %v454 = vld [vmem:[%s1 + $0x1c] sm:$0xf]
        %v455 = vld [vmem:[%s1 + $0x20] sm:$0xf]
        %v456 = vld [vmem:[%s1 + $0x24] sm:$0xf]
        %v457 = vld [vmem:[%s1 + $0x28] sm:$0xf]
        %v458 = vld [vmem:[%s1 + $0x2c] sm:$0xf]
        %v459 = vld [vmem:[%s1 + $0x30] sm:$0xf]
        %v460 = vld [vmem:[%s1 + $0x34] sm:$0xf]
        %v461 = vld [vmem:[%s1 + $0x38] sm:$0xf]
        %v462 = vld [vmem:[%s1 + $0x3c] sm:$0xf]
        %v463 = vld [vmem:[%s1 + $0x40] sm:$0xf]
        %v464 = vld [vmem:[%s1 + $0x44] sm:$0xf]
        %v465 = vld [vmem:[%s1 + $0x48] sm:$0xf]
        %v466 = vld [vmem:[%s1 + $0x4c] sm:$0xf]
        %v467 = vld [vmem:[%s1 + $0x50] sm:$0xf]
        %v468 = vld [vmem:[%s1 + $0x54] sm:$0xf]
        %v469 = vld [vmem:[%s1 + $0x58] sm:$0xf]
        %v470 = vld [vmem:[%s1 + $0x5c] sm:$0xf]
        %v471 = vld [vmem:[%s1 + $0x60] sm:$0xf]
        %v472 = vld [vmem:[%s1 + $0x64] sm:$0xf]
        %v473 = vld [vmem:[%s1 + $0x68] sm:$0xf]
        %v474 = vld [vmem:[%s1 + $0x6c] sm:$0xf]
        %v475 = vld [vmem:[%s1 + $0x70] sm:$0xf]
        %v476 = vld [vmem:[%s1 + $0x74] sm:$0xf]
        %v477 = vld [vmem:[%s1 + $0x78] sm:$0xf]
        %v478 = vld [vmem:[%s1 + $0x7c] sm:$0xf]
        %v479 = vld [vmem:[%s2] sm:$0x1]
        %v481 = vlaneseq
        %v482 = vshrl.u32 %v481, 7
        %v483 = vsub.s32 0, %v482
        %v484 = vrot.slane %v479, %v483
        %v494 = vunpack.c.l.b16 %v439
        %v495 = vunpack.c.h.b16 %v439
        %v496 = vunpack.c.l.b16 %v440
        %v497 = vunpack.c.h.b16 %v440
        %v498 = vunpack.c.l.b16 %v441
        %v499 = vunpack.c.h.b16 %v441
        %v500 = vunpack.c.l.b16 %v442
        %v501 = vunpack.c.h.b16 %v442
        %v502 = vunpack.c.l.b16 %v443
        %v503 = vunpack.c.h.b16 %v443
        %v504 = vunpack.c.l.b16 %v444
        %v505 = vunpack.c.h.b16 %v444
        %v506 = vunpack.c.l.b16 %v445
        %v507 = vunpack.c.h.b16 %v445
        %v508 = vunpack.c.l.b16 %v446
        %v509 = vunpack.c.h.b16 %v446
        %v510 = vpack.c.b16 %v496, %v494
        %v511 = vpack.c.b16 %v497, %v495
        %v512 = vpack.c.b16 %v500, %v498
        %v513 = vpack.c.b16 %v501, %v499
        %v514 = vpack.c.b16 %v504, %v502
        %v515 = vpack.c.b16 %v505, %v503
        %v516 = vpack.c.b16 %v508, %v506
        %v517 = vpack.c.b16 %v509, %v507
        %v558 = vunpack.c.l.b16 %v447
        %v559 = vunpack.c.l.b16 %v448
        %v560 = vunpack.c.l.b16 %v449
        %v561 = vunpack.c.l.b16 %v450
        %v562 = vunpack.c.l.b16 %v451
        %v563 = vunpack.c.l.b16 %v452
        %v564 = vunpack.c.l.b16 %v453
        %v565 = vunpack.c.l.b16 %v454
        %v566 = vunpack.c.l.b16 %v455
        %v567 = vunpack.c.l.b16 %v456
        %v568 = vunpack.c.l.b16 %v457
        %v569 = vunpack.c.l.b16 %v458
        %v570 = vunpack.c.l.b16 %v459
        %v571 = vunpack.c.l.b16 %v460
        %v572 = vunpack.c.l.b16 %v461
        %v573 = vunpack.c.l.b16 %v462
        %v574 = vunpack.c.l.b16 %v463
        %v575 = vunpack.c.l.b16 %v464
        %v576 = vunpack.c.l.b16 %v465
        %v577 = vunpack.c.l.b16 %v466
        %v578 = vunpack.c.l.b16 %v467
        %v579 = vunpack.c.l.b16 %v468
        %v580 = vunpack.c.l.b16 %v469
        %v581 = vunpack.c.l.b16 %v470
        %v582 = vunpack.c.l.b16 %v471
        %v583 = vunpack.c.l.b16 %v472
        %v584 = vunpack.c.l.b16 %v473
        %v585 = vunpack.c.l.b16 %v474
        %v586 = vunpack.c.l.b16 %v475
        %v587 = vunpack.c.l.b16 %v476
        %v588 = vunpack.c.l.b16 %v477
        %v589 = vunpack.c.l.b16 %v478
        %v590 = vpack.c.b16 %v559, %v558
        %v591 = vpack.c.b16 %v561, %v560
        %v592 = vpack.c.b16 %v563, %v562
        %v593 = vpack.c.b16 %v565, %v564
        %v594 = vpack.c.b16 %v567, %v566
        %v595 = vpack.c.b16 %v569, %v568
        %v596 = vpack.c.b16 %v571, %v570
        %v597 = vpack.c.b16 %v573, %v572
        %v598 = vpack.c.b16 %v575, %v574
        %v599 = vpack.c.b16 %v577, %v576
        %v600 = vpack.c.b16 %v579, %v578
        %v601 = vpack.c.b16 %v581, %v580
        %v602 = vpack.c.b16 %v583, %v582
        %v603 = vpack.c.b16 %v585, %v584
        %v604 = vpack.c.b16 %v587, %v586
        %v605 = vpack.c.b16 %v589, %v588
        %622 = vmatprep.subr.bf16.mxu0 0
        %623 = vmatpush1.bf16.msra.mxu0 %v590
        %624 = vmatprep.subr.bf16.mxu0 0
        %625 = vmatpush1.bf16.msra.mxu0 %v591
        %626 = vmatprep.subr.bf16.mxu0 0
        %627 = vmatpush1.bf16.msra.mxu0 %v592
        %628 = vmatprep.subr.bf16.mxu0 0
        %629 = vmatpush1.bf16.msra.mxu0 %v593
        %630 = vmatprep.subr.bf16.mxu0 0
        %631 = vmatpush1.bf16.msra.mxu0 %v594
        %632 = vmatprep.subr.bf16.mxu0 0
        %633 = vmatpush1.bf16.msra.mxu0 %v595
        %634 = vmatprep.subr.bf16.mxu0 0
        %635 = vmatpush1.bf16.msra.mxu0 %v596
        %636 = vmatprep.subr.bf16.mxu0 0
        %637 = vmatpush1.bf16.msra.mxu0 %v597
        %638 = vmatprep.subr.bf16.mxu0 0
        %639 = vmatpush1.bf16.msra.mxu0 %v598
        %640 = vmatprep.subr.bf16.mxu0 0
        %641 = vmatpush1.bf16.msra.mxu0 %v599
        %642 = vmatprep.subr.bf16.mxu0 0
        %643 = vmatpush1.bf16.msra.mxu0 %v600
        %644 = vmatprep.subr.bf16.mxu0 0
        %645 = vmatpush1.bf16.msra.mxu0 %v601
        %646 = vmatprep.subr.bf16.mxu0 0
        %647 = vmatpush1.bf16.msra.mxu0 %v602
        %648 = vmatprep.subr.bf16.mxu0 0
        %649 = vmatpush1.bf16.msra.mxu0 %v603
        %650 = vmatprep.subr.bf16.mxu0 0
        %651 = vmatpush1.bf16.msra.mxu0 %v604
        %652 = vmatprep.subr.bf16.mxu0 0
        %653 = vmatpush1.bf16.msra.mxu0 %v605
        %654 = vmatprep.mubr.bf16.mxu0 %v511
        %655 = vmatmul.mubr.bf16.gmra.mrb[0].mxu0 %v510
        %v656 = vpop.f32.mrb[0].mxu0
        %v657 = vadd.f32 %v484, %v656
        %v658 = vpop.f32.mrb[0].mxu0
        %v659 = vpop.f32.mrb[0].mxu0
        %v660 = vadd.f32 %v484, %v659
        %v661 = vpop.f32.mrb[0].mxu0
        %662 = vmatprep.mubr.bf16.mxu0 %v513
        %663 = vmatmul.mubr.bf16.gmra.mrb[0].mxu0 %v512
        %v664 = vpop.f32.mrb[0].mxu0
        %v665 = vadd.f32 %v484, %v664
        %v666 = vpop.f32.mrb[0].mxu0
        %v667 = vpop.f32.mrb[0].mxu0
        %v668 = vadd.f32 %v484, %v667
        %v669 = vpop.f32.mrb[0].mxu0
        %670 = vmatprep.mubr.bf16.mxu0 %v515
        %671 = vmatmul.mubr.bf16.gmra.mrb[0].mxu0 %v514
        %v672 = vpop.f32.mrb[0].mxu0
        %v673 = vadd.f32 %v484, %v672
        %v674 = vpop.f32.mrb[0].mxu0
        %v675 = vpop.f32.mrb[0].mxu0
        %v676 = vadd.f32 %v484, %v675
        %v677 = vpop.f32.mrb[0].mxu0
        %678 = vmatprep.mubr.bf16.mxu0 %v517
        %679 = vmatmul.mubr.bf16.gmra.mrb[0].mxu0 %v516
        %v680 = vpop.f32.mrb[0].mxu0
        %v681 = vadd.f32 %v484, %v680
        %v682 = vpop.f32.mrb[0].mxu0
        %v683 = vpop.f32.mrb[0].mxu0
        %v684 = vadd.f32 %v484, %v683
        %v685 = vpop.f32.mrb[0].mxu0
        %686 = vdwg.mxu0
        %v687 = vmax.f32 %v657, 0.0
        %v688 = vmax.f32 %v660, 0.0
        %v689 = vmax.f32 %v665, 0.0
        %v690 = vmax.f32 %v668, 0.0
        %v691 = vmax.f32 %v673, 0.0
        %v692 = vmax.f32 %v676, 0.0
        %v693 = vmax.f32 %v681, 0.0
        %v694 = vmax.f32 %v684, 0.0
        %v695 = vpack.c.bf16 %v688, %v687
        %v696 = vpack.c.bf16 %v690, %v689
        %v697 = vpack.c.bf16 %v692, %v691
        %v698 = vpack.c.bf16 %v694, %v693
        %v699 = vld [vmem:[%s3] sm:$0xf]
        %v700 = vld [vmem:[%s3 + $0x4] sm:$0xf]
        %v701 = vld [vmem:[%s3 + $0x8] sm:$0xf]
        %v702 = vld [vmem:[%s3 + $0xc] sm:$0xf]
        %v703 = vld [vmem:[%s3 + $0x10] sm:$0xf]
        %v704 = vld [vmem:[%s3 + $0x14] sm:$0xf]
        %v705 = vld [vmem:[%s3 + $0x18] sm:$0xf]
        %v706 = vld [vmem:[%s3 + $0x1c] sm:$0xf]
        %v707 = vld [vmem:[%s3 + $0x20] sm:$0xf]
        %v708 = vld [vmem:[%s3 + $0x24] sm:$0xf]
        %v709 = vld [vmem:[%s3 + $0x28] sm:$0xf]
        %v710 = vld [vmem:[%s3 + $0x2c] sm:$0xf]
        %v711 = vld [vmem:[%s3 + $0x30] sm:$0xf]
        %v712 = vld [vmem:[%s3 + $0x34] sm:$0xf]
        %v713 = vld [vmem:[%s3 + $0x38] sm:$0xf]
        %v714 = vld [vmem:[%s3 + $0x3c] sm:$0xf]
        %v715 = vld [vmem:[%s3 + $0x40] sm:$0xf]
        %v716 = vld [vmem:[%s3 + $0x44] sm:$0xf]
        %v717 = vld [vmem:[%s3 + $0x48] sm:$0xf]
        %v718 = vld [vmem:[%s3 + $0x4c] sm:$0xf]
        %v719 = vld [vmem:[%s3 + $0x50] sm:$0xf]
        %v720 = vld [vmem:[%s3 + $0x54] sm:$0xf]
        %v721 = vld [vmem:[%s3 + $0x58] sm:$0xf]
        %v722 = vld [vmem:[%s3 + $0x5c] sm:$0xf]
        %v723 = vld [vmem:[%s3 + $0x60] sm:$0xf]
        %v724 = vld [vmem:[%s3 + $0x64] sm:$0xf]
        %v725 = vld [vmem:[%s3 + $0x68] sm:$0xf]
        %v726 = vld [vmem:[%s3 + $0x6c] sm:$0xf]
        %v727 = vld [vmem:[%s3 + $0x70] sm:$0xf]
        %v728 = vld [vmem:[%s3 + $0x74] sm:$0xf]
        %v729 = vld [vmem:[%s3 + $0x78] sm:$0xf]
        %v730 = vld [vmem:[%s3 + $0x7c] sm:$0xf]
        %v763 = vunpack.c.l.b16 %v699
        %v764 = vunpack.c.l.b16 %v700
        %v765 = vunpack.c.l.b16 %v701
        %v766 = vunpack.c.l.b16 %v702
        %v767 = vunpack.c.l.b16 %v703
        %v768 = vunpack.c.l.b16 %v704
        %v769 = vunpack.c.l.b16 %v705
        %v770 = vunpack.c.l.b16 %v706
        %v771 = vunpack.c.l.b16 %v707
        %v772 = vunpack.c.l.b16 %v708
        %v773 = vunpack.c.l.b16 %v709
        %v774 = vunpack.c.l.b16 %v710
        %v775 = vunpack.c.l.b16 %v711
        %v776 = vunpack.c.l.b16 %v712
        %v777 = vunpack.c.l.b16 %v713
        %v778 = vunpack.c.l.b16 %v714
        %v779 = vunpack.c.l.b16 %v715
        %v780 = vunpack.c.l.b16 %v716
        %v781 = vunpack.c.l.b16 %v717
        %v782 = vunpack.c.l.b16 %v718
        %v783 = vunpack.c.l.b16 %v719
        %v784 = vunpack.c.l.b16 %v720
        %v785 = vunpack.c.l.b16 %v721
        %v786 = vunpack.c.l.b16 %v722
        %v787 = vunpack.c.l.b16 %v723
        %v788 = vunpack.c.l.b16 %v724
        %v789 = vunpack.c.l.b16 %v725
        %v790 = vunpack.c.l.b16 %v726
        %v791 = vunpack.c.l.b16 %v727
        %v792 = vunpack.c.l.b16 %v728
        %v793 = vunpack.c.l.b16 %v729
        %v794 = vunpack.c.l.b16 %v730
        %v795 = vpack.c.b16 %v764, %v763
        %v796 = vpack.c.b16 %v766, %v765
        %v797 = vpack.c.b16 %v768, %v767
        %v798 = vpack.c.b16 %v770, %v769
        %v799 = vpack.c.b16 %v772, %v771
        %v800 = vpack.c.b16 %v774, %v773
        %v801 = vpack.c.b16 %v776, %v775
        %v802 = vpack.c.b16 %v778, %v777
        %v803 = vpack.c.b16 %v780, %v779
        %v804 = vpack.c.b16 %v782, %v781
        %v805 = vpack.c.b16 %v784, %v783
        %v806 = vpack.c.b16 %v786, %v785
        %v807 = vpack.c.b16 %v788, %v787
        %v808 = vpack.c.b16 %v790, %v789
        %v809 = vpack.c.b16 %v792, %v791
        %v810 = vpack.c.b16 %v794, %v793
        %vm811 = vcmask 523264
        %v813 = vsel %vm811, %v795, 0
        %v816 = vsel %vm811, %v796, 0
        %v819 = vsel %vm811, %v797, 0
        %v822 = vsel %vm811, %v798, 0
        %v825 = vsel %vm811, %v799, 0
        %v828 = vsel %vm811, %v800, 0
        %v831 = vsel %vm811, %v801, 0
        %v834 = vsel %vm811, %v802, 0
        %v837 = vsel %vm811, %v803, 0
        %v840 = vsel %vm811, %v804, 0
        %v843 = vsel %vm811, %v805, 0
        %v846 = vsel %vm811, %v806, 0
        %v849 = vsel %vm811, %v807, 0
        %v852 = vsel %vm811, %v808, 0
        %v855 = vsel %vm811, %v809, 0
        %v858 = vsel %vm811, %v810, 0
        %860 = vmatprep.subr.bf16.mxu0 0
        %861 = vmatpush1.bf16.msra.mxu0 %v695
        %862 = vmatprep.subr.bf16.mxu0 0
        %863 = vmatpush1.bf16.msra.mxu0 %v696
        %864 = vmatprep.subr.bf16.mxu0 0
        %865 = vmatpush1.bf16.msra.mxu0 %v697
        %866 = vmatprep.subr.bf16.mxu0 0
        %867 = vmatpush1.bf16.msra.mxu0 %v698
        %868 = vmatprep.subr.bf16.mxu0 0
        %869 = vmatpush1.bf16.msra.mxu0 0
        %870 = vmatprep.subr.bf16.mxu0 0
        %871 = vmatpush1.bf16.msra.mxu0 0
        %872 = vmatprep.subr.bf16.mxu0 0
        %873 = vmatpush1.bf16.msra.mxu0 0
        %874 = vmatprep.subr.bf16.mxu0 0
        %875 = vmatpush1.bf16.msra.mxu0 0
        %876 = vmatprep.subr.bf16.mxu0 0
        %877 = vmatpush1.bf16.msra.mxu0 0
        %878 = vmatprep.subr.bf16.mxu0 0
        %879 = vmatpush1.bf16.msra.mxu0 0
        %880 = vmatprep.subr.bf16.mxu0 0
        %881 = vmatpush1.bf16.msra.mxu0 0
        %882 = vmatprep.subr.bf16.mxu0 0
        %883 = vmatpush1.bf16.msra.mxu0 0
        %884 = vmatprep.subr.bf16.mxu0 0
        %885 = vmatpush1.bf16.msra.mxu0 0
        %886 = vmatprep.subr.bf16.mxu0 0
        %887 = vmatpush1.bf16.msra.mxu0 0
        %888 = vmatprep.subr.bf16.mxu0 0
        %889 = vmatpush1.bf16.msra.mxu0 0
        %890 = vmatprep.subr.bf16.mxu0 0
        %891 = vmatpush1.bf16.msra.mxu0 0
        %892 = vmatprep.mubr.bf16.mxu0 0
        %893 = vmatmul.mubr.bf16.gmra.mrb[0].mxu0 %v813
        %v894 = vpop.f32.mrb[0].mxu0
        %v895 = vadd.f32 0.0, %v894
        %v896 = vpop.f32.mrb[0].mxu0
        %v897 = vpop.f32.mrb[0].mxu0
        %v898 = vadd.f32 0.0, %v897
        %v899 = vpop.f32.mrb[0].mxu0
        %900 = vmatprep.mubr.bf16.mxu0 0
        %901 = vmatmul.mubr.bf16.gmra.mrb[0].mxu0 %v816
        %v902 = vpop.f32.mrb[0].mxu0
        %v903 = vadd.f32 0.0, %v902
        %v904 = vpop.f32.mrb[0].mxu0
        %v905 = vpop.f32.mrb[0].mxu0
        %v906 = vadd.f32 0.0, %v905
        %v907 = vpop.f32.mrb[0].mxu0
        %908 = vmatprep.mubr.bf16.mxu0 0
        %909 = vmatmul.mubr.bf16.gmra.mrb[0].mxu0 %v819
        %v910 = vpop.f32.mrb[0].mxu0
        %v911 = vadd.f32 0.0, %v910
        %v912 = vpop.f32.mrb[0].mxu0
        %v913 = vpop.f32.mrb[0].mxu0
        %v914 = vadd.f32 0.0, %v913
        %v915 = vpop.f32.mrb[0].mxu0
        %916 = vmatprep.mubr.bf16.mxu0 0
        %917 = vmatmul.mubr.bf16.gmra.mrb[0].mxu0 %v822
        %v918 = vpop.f32.mrb[0].mxu0
        %v919 = vadd.f32 0.0, %v918
        %v920 = vpop.f32.mrb[0].mxu0
        %v921 = vpop.f32.mrb[0].mxu0
        %v922 = vadd.f32 0.0, %v921
        %v923 = vpop.f32.mrb[0].mxu0
        %924 = vmatprep.mubr.bf16.mxu0 0
        %925 = vmatmul.mubr.bf16.gmra.mrb[0].mxu0 %v825
        %v926 = vpop.f32.mrb[0].mxu0
        %v927 = vadd.f32 0.0, %v926
        %v928 = vpop.f32.mrb[0].mxu0
        %v929 = vpop.f32.mrb[0].mxu0
        %v930 = vadd.f32 0.0, %v929
        %v931 = vpop.f32.mrb[0].mxu0
        %932 = vmatprep.mubr.bf16.mxu0 0
        %933 = vmatmul.mubr.bf16.gmra.mrb[0].mxu0 %v828
        %v934 = vpop.f32.mrb[0].mxu0
        %v935 = vadd.f32 0.0, %v934
        %v936 = vpop.f32.mrb[0].mxu0
        %v937 = vpop.f32.mrb[0].mxu0
        %v938 = vadd.f32 0.0, %v937
        %v939 = vpop.f32.mrb[0].mxu0
        %940 = vmatprep.mubr.bf16.mxu0 0
        %941 = vmatmul.mubr.bf16.gmra.mrb[0].mxu0 %v831
        %v942 = vpop.f32.mrb[0].mxu0
        %v943 = vadd.f32 0.0, %v942
        %v944 = vpop.f32.mrb[0].mxu0
        %v945 = vpop.f32.mrb[0].mxu0
        %v946 = vadd.f32 0.0, %v945
        %v947 = vpop.f32.mrb[0].mxu0
        %948 = vmatprep.mubr.bf16.mxu0 0
        %949 = vmatmul.mubr.bf16.gmra.mrb[0].mxu0 %v834
        %v950 = vpop.f32.mrb[0].mxu0
        %v951 = vadd.f32 0.0, %v950
        %v952 = vpop.f32.mrb[0].mxu0
        %v953 = vpop.f32.mrb[0].mxu0
        %v954 = vadd.f32 0.0, %v953
        %v955 = vpop.f32.mrb[0].mxu0
        %956 = vmatprep.mubr.bf16.mxu0 0
        %957 = vmatmul.mubr.bf16.gmra.mrb[0].mxu0 %v837
        %v958 = vpop.f32.mrb[0].mxu0
        %v959 = vadd.f32 0.0, %v958
        %v960 = vpop.f32.mrb[0].mxu0
        %v961 = vpop.f32.mrb[0].mxu0
        %v962 = vadd.f32 0.0, %v961
        %v963 = vpop.f32.mrb[0].mxu0
        %964 = vmatprep.mubr.bf16.mxu0 0
        %965 = vmatmul.mubr.bf16.gmra.mrb[0].mxu0 %v840
        %v966 = vpop.f32.mrb[0].mxu0
        %v967 = vadd.f32 0.0, %v966
        %v968 = vpop.f32.mrb[0].mxu0
        %v969 = vpop.f32.mrb[0].mxu0
        %v970 = vadd.f32 0.0, %v969
        %v971 = vpop.f32.mrb[0].mxu0
        %972 = vmatprep.mubr.bf16.mxu0 0
        %973 = vmatmul.mubr.bf16.gmra.mrb[0].mxu0 %v843
        %v974 = vpop.f32.mrb[0].mxu0
        %v975 = vadd.f32 0.0, %v974
        %v976 = vpop.f32.mrb[0].mxu0
        %v977 = vpop.f32.mrb[0].mxu0
        %v978 = vadd.f32 0.0, %v977
        %v979 = vpop.f32.mrb[0].mxu0
        %980 = vmatprep.mubr.bf16.mxu0 0
        %981 = vmatmul.mubr.bf16.gmra.mrb[0].mxu0 %v846
        %v982 = vpop.f32.mrb[0].mxu0
        %v983 = vadd.f32 0.0, %v982
        %v984 = vpop.f32.mrb[0].mxu0
        %v985 = vpop.f32.mrb[0].mxu0
        %v986 = vadd.f32 0.0, %v985
        %v987 = vpop.f32.mrb[0].mxu0
        %988 = vmatprep.mubr.bf16.mxu0 0
        %989 = vmatmul.mubr.bf16.gmra.mrb[0].mxu0 %v849
        %v990 = vpop.f32.mrb[0].mxu0
        %v991 = vadd.f32 0.0, %v990
        %v992 = vpop.f32.mrb[0].mxu0
        %v993 = vpop.f32.mrb[0].mxu0
        %v994 = vadd.f32 0.0, %v993
        %v995 = vpop.f32.mrb[0].mxu0
        %996 = vmatprep.mubr.bf16.mxu0 0
        %997 = vmatmul.mubr.bf16.gmra.mrb[0].mxu0 %v852
        %v998 = vpop.f32.mrb[0].mxu0
        %v999 = vadd.f32 0.0, %v998
        %v1000 = vpop.f32.mrb[0].mxu0
        %v1001 = vpop.f32.mrb[0].mxu0
        %v1002 = vadd.f32 0.0, %v1001
        %v1003 = vpop.f32.mrb[0].mxu0
        %1004 = vmatprep.mubr.bf16.mxu0 0
        %1005 = vmatmul.mubr.bf16.gmra.mrb[0].mxu0 %v855
        %v1006 = vpop.f32.mrb[0].mxu0
        %v1007 = vadd.f32 0.0, %v1006
        %v1008 = vpop.f32.mrb[0].mxu0
        %v1009 = vpop.f32.mrb[0].mxu0
        %v1010 = vadd.f32 0.0, %v1009
        %v1011 = vpop.f32.mrb[0].mxu0
        %1012 = vmatprep.mubr.bf16.mxu0 0
        %1013 = vmatmul.mubr.bf16.gmra.mrb[0].mxu0 %v858
        %v1014 = vpop.f32.mrb[0].mxu0
        %v1015 = vadd.f32 0.0, %v1014
        %v1016 = vpop.f32.mrb[0].mxu0
        %v1017 = vpop.f32.mrb[0].mxu0
        %v1018 = vadd.f32 0.0, %v1017
        %v1019 = vpop.f32.mrb[0].mxu0
        %1020 = vdwg.mxu0
        %v1021 = vpack.c.bf16 %v898, %v895
        %v1022 = vpack.c.bf16 %v906, %v903
        %v1023 = vpack.c.bf16 %v914, %v911
        %v1024 = vpack.c.bf16 %v922, %v919
        %v1025 = vpack.c.bf16 %v930, %v927
        %v1026 = vpack.c.bf16 %v938, %v935
        %v1027 = vpack.c.bf16 %v946, %v943
        %v1028 = vpack.c.bf16 %v954, %v951
        %v1029 = vpack.c.bf16 %v962, %v959
        %v1030 = vpack.c.bf16 %v970, %v967
        %v1031 = vpack.c.bf16 %v978, %v975
        %v1032 = vpack.c.bf16 %v986, %v983
        %v1033 = vpack.c.bf16 %v994, %v991
        %v1034 = vpack.c.bf16 %v1002, %v999
        %v1035 = vpack.c.bf16 %v1010, %v1007
        %v1036 = vpack.c.bf16 %v1018, %v1015
        %v1037 = vld [vmem:[%s4] sm:$0xf]
        %v1038 = vld [vmem:[%s4 + $0x4] sm:$0xf]
        %v1039 = vld [vmem:[%s4 + $0x8] sm:$0xf]
        %v1040 = vld [vmem:[%s4 + $0xc] sm:$0xf]
        %s1041 = scalar_lea.vmem %s4, 16
        %v1042 = vld [vmem:[%s1041] sm:$0xf]
        %v1043 = vld [vmem:[%s1041 + $0x4] sm:$0xf]
        %v1044 = vld [vmem:[%s1041 + $0x8] sm:$0xf]
        %v1045 = vld [vmem:[%s1041 + $0xc] sm:$0xf]
        %v1050 = vunpack.c.l.b16 %v1042
        %v1051 = vunpack.c.l.b16 %v1043
        %v1052 = vunpack.c.l.b16 %v1044
        %v1053 = vunpack.c.l.b16 %v1045
        %v1054 = vpack.c.b16 %v1051, %v1050
        %v1055 = vpack.c.b16 %v1053, %v1052
        %vm1058 = vcmask 261120
        %v1060 = vsel %vm1058, %v1022, 0
        %1062 = vmatprep.subr.bf16.mxu0 0
        %1063 = vmatpush1.bf16.msra.mxu0 %v1054
        %1064 = vmatprep.subr.bf16.mxu0 0
        %1065 = vmatpush1.bf16.msra.mxu0 %v1055
        %1066 = vmatprep.subr.bf16.mxu0 0
        %1067 = vmatpush1.bf16.msra.mxu0 0
        %1068 = vmatprep.subr.bf16.mxu0 0
        %1069 = vmatpush1.bf16.msra.mxu0 0
        %1070 = vmatprep.subr.bf16.mxu0 0
        %1071 = vmatpush1.bf16.msra.mxu0 0
        %1072 = vmatprep.subr.bf16.mxu0 0
        %1073 = vmatpush1.bf16.msra.mxu0 0
        %1074 = vmatprep.subr.bf16.mxu0 0
        %1075 = vmatpush1.bf16.msra.mxu0 0
        %1076 = vmatprep.subr.bf16.mxu0 0
        %1077 = vmatpush1.bf16.msra.mxu0 0
        %1078 = vmatprep.subr.bf16.mxu0 0
        %1079 = vmatpush1.bf16.msra.mxu0 0
        %1080 = vmatprep.subr.bf16.mxu0 0
        %1081 = vmatpush1.bf16.msra.mxu0 0
        %1082 = vmatprep.subr.bf16.mxu0 0
        %1083 = vmatpush1.bf16.msra.mxu0 0
        %1084 = vmatprep.subr.bf16.mxu0 0
        %1085 = vmatpush1.bf16.msra.mxu0 0
        %1086 = vmatprep.subr.bf16.mxu0 0
        %1087 = vmatpush1.bf16.msra.mxu0 0
        %1088 = vmatprep.subr.bf16.mxu0 0
        %1089 = vmatpush1.bf16.msra.mxu0 0
        %1090 = vmatprep.subr.bf16.mxu0 0
        %1091 = vmatpush1.bf16.msra.mxu0 0
        %1092 = vmatprep.subr.bf16.mxu0 0
        %1093 = vmatpush1.bf16.msra.mxu0 0
        %1094 = vmatprep.mubr.bf16.mxu0 0
        %1095 = vmatmul.mubr.bf16.gmra.mrb[0].mxu0 %v1060
        %v1096 = vpop.f32.mrb[0].mxu0
        %v1097 = vadd.f32 0.0, %v1096
        %v1098 = vpop.f32.mrb[0].mxu0
        %v1099 = vpop.f32.mrb[0].mxu0
        %v1100 = vadd.f32 0.0, %v1099
        %v1101 = vpop.f32.mrb[0].mxu0
        %1102 = vdwg.mxu0
        %v1107 = vunpack.c.l.b16 %v1037
        %v1108 = vunpack.c.l.b16 %v1038
        %v1109 = vunpack.c.l.b16 %v1039
        %v1110 = vunpack.c.l.b16 %v1040
        %v1111 = vpack.c.b16 %v1108, %v1107
        %v1112 = vpack.c.b16 %v1110, %v1109
        %v1116 = vsel %vm1058, %v1021, 0
        %1118 = vmatprep.subr.bf16.mxu0 0
        %1119 = vmatpush1.bf16.msra.mxu0 %v1111
        %1120 = vmatprep.subr.bf16.mxu0 0
        %1121 = vmatpush1.bf16.msra.mxu0 %v1112
        %1122 = vmatprep.subr.bf16.mxu0 0
        %1123 = vmatpush1.bf16.msra.mxu0 0
        %1124 = vmatprep.subr.bf16.mxu0 0
        %1125 = vmatpush1.bf16.msra.mxu0 0
        %1126 = vmatprep.subr.bf16.mxu0 0
        %1127 = vmatpush1.bf16.msra.mxu0 0
        %1128 = vmatprep.subr.bf16.mxu0 0
        %1129 = vmatpush1.bf16.msra.mxu0 0
        %1130 = vmatprep.subr.bf16.mxu0 0
        %1131 = vmatpush1.bf16.msra.mxu0 0
        %1132 = vmatprep.subr.bf16.mxu0 0
        %1133 = vmatpush1.bf16.msra.mxu0 0
        %1134 = vmatprep.subr.bf16.mxu0 0
        %1135 = vmatpush1.bf16.msra.mxu0 0
        %1136 = vmatprep.subr.bf16.mxu0 0
        %1137 = vmatpush1.bf16.msra.mxu0 0
        %1138 = vmatprep.subr.bf16.mxu0 0
        %1139 = vmatpush1.bf16.msra.mxu0 0
        %1140 = vmatprep.subr.bf16.mxu0 0
        %1141 = vmatpush1.bf16.msra.mxu0 0
        %1142 = vmatprep.subr.bf16.mxu0 0
        %1143 = vmatpush1.bf16.msra.mxu0 0
        %1144 = vmatprep.subr.bf16.mxu0 0
        %1145 = vmatpush1.bf16.msra.mxu0 0
        %1146 = vmatprep.subr.bf16.mxu0 0
        %1147 = vmatpush1.bf16.msra.mxu0 0
        %1148 = vmatprep.subr.bf16.mxu0 0
        %1149 = vmatpush1.bf16.msra.mxu0 0
        %1150 = vmatprep.mubr.bf16.mxu0 0
        %1151 = vmatmul.mubr.bf16.gmra.mrb[0].mxu0 %v1116
        %v1152 = vpop.f32.mrb[0].mxu0
        %v1153 = vadd.f32 %v1097, %v1152
        %v1154 = vpop.f32.mrb[0].mxu0
        %v1155 = vpop.f32.mrb[0].mxu0
        %v1156 = vadd.f32 %v1100, %v1155
        %v1157 = vpop.f32.mrb[0].mxu0
        %1158 = vdwg.mxu0
        %s1159 = scalar_lea.vmem %s4, 32
        %v1160 = vld [vmem:[%s1159] sm:$0xf]
        %v1161 = vld [vmem:[%s1159 + $0x4] sm:$0xf]
        %v1162 = vld [vmem:[%s1159 + $0x8] sm:$0xf]
        %v1163 = vld [vmem:[%s1159 + $0xc] sm:$0xf]
        %v1168 = vunpack.c.l.b16 %v1160
        %v1169 = vunpack.c.l.b16 %v1161
        %v1170 = vunpack.c.l.b16 %v1162
        %v1171 = vunpack.c.l.b16 %v1163
        %v1172 = vpack.c.b16 %v1169, %v1168
        %v1173 = vpack.c.b16 %v1171, %v1170
        %v1177 = vsel %vm1058, %v1023, 0
        %1179 = vmatprep.subr.bf16.mxu0 0
        %1180 = vmatpush1.bf16.msra.mxu0 %v1172
        %1181 = vmatprep.subr.bf16.mxu0 0
        %1182 = vmatpush1.bf16.msra.mxu0 %v1173
        %1183 = vmatprep.subr.bf16.mxu0 0
        %1184 = vmatpush1.bf16.msra.mxu0 0
        %1185 = vmatprep.subr.bf16.mxu0 0
        %1186 = vmatpush1.bf16.msra.mxu0 0
        %1187 = vmatprep.subr.bf16.mxu0 0
        %1188 = vmatpush1.bf16.msra.mxu0 0
        %1189 = vmatprep.subr.bf16.mxu0 0
        %1190 = vmatpush1.bf16.msra.mxu0 0
        %1191 = vmatprep.subr.bf16.mxu0 0
        %1192 = vmatpush1.bf16.msra.mxu0 0
        %1193 = vmatprep.subr.bf16.mxu0 0
        %1194 = vmatpush1.bf16.msra.mxu0 0
        %1195 = vmatprep.subr.bf16.mxu0 0
        %1196 = vmatpush1.bf16.msra.mxu0 0
        %1197 = vmatprep.subr.bf16.mxu0 0
        %1198 = vmatpush1.bf16.msra.mxu0 0
        %1199 = vmatprep.subr.bf16.mxu0 0
        %1200 = vmatpush1.bf16.msra.mxu0 0
        %1201 = vmatprep.subr.bf16.mxu0 0
        %1202 = vmatpush1.bf16.msra.mxu0 0
        %1203 = vmatprep.subr.bf16.mxu0 0
        %1204 = vmatpush1.bf16.msra.mxu0 0
        %1205 = vmatprep.subr.bf16.mxu0 0
        %1206 = vmatpush1.bf16.msra.mxu0 0
        %1207 = vmatprep.subr.bf16.mxu0 0
        %1208 = vmatpush1.bf16.msra.mxu0 0
        %1209 = vmatprep.subr.bf16.mxu0 0
        %1210 = vmatpush1.bf16.msra.mxu0 0
        %1211 = vmatprep.mubr.bf16.mxu0 0
        %1212 = vmatmul.mubr.bf16.gmra.mrb[0].mxu0 %v1177
        %v1213 = vpop.f32.mrb[0].mxu0
        %v1214 = vadd.f32 0.0, %v1213
        %v1215 = vpop.f32.mrb[0].mxu0
        %v1216 = vpop.f32.mrb[0].mxu0
        %v1217 = vadd.f32 0.0, %v1216
        %v1218 = vpop.f32.mrb[0].mxu0
        %1219 = vdwg.mxu0
        %v1220 = vadd.f32 %v1153, %v1214
        %v1221 = vadd.f32 %v1156, %v1217
        %s1222 = scalar_lea.vmem %s4, 48
        %v1223 = vld [vmem:[%s1222] sm:$0xf]
        %v1224 = vld [vmem:[%s1222 + $0x4] sm:$0xf]
        %v1225 = vld [vmem:[%s1222 + $0x8] sm:$0xf]
        %v1226 = vld [vmem:[%s1222 + $0xc] sm:$0xf]
        %v1231 = vunpack.c.l.b16 %v1223
        %v1232 = vunpack.c.l.b16 %v1224
        %v1233 = vunpack.c.l.b16 %v1225
        %v1234 = vunpack.c.l.b16 %v1226
        %v1235 = vpack.c.b16 %v1232, %v1231
        %v1236 = vpack.c.b16 %v1234, %v1233
        %v1240 = vsel %vm1058, %v1024, 0
        %1242 = vmatprep.subr.bf16.mxu0 0
        %1243 = vmatpush1.bf16.msra.mxu0 %v1235
        %1244 = vmatprep.subr.bf16.mxu0 0
        %1245 = vmatpush1.bf16.msra.mxu0 %v1236
        %1246 = vmatprep.subr.bf16.mxu0 0
        %1247 = vmatpush1.bf16.msra.mxu0 0
        %1248 = vmatprep.subr.bf16.mxu0 0
        %1249 = vmatpush1.bf16.msra.mxu0 0
        %1250 = vmatprep.subr.bf16.mxu0 0
        %1251 = vmatpush1.bf16.msra.mxu0 0
        %1252 = vmatprep.subr.bf16.mxu0 0
        %1253 = vmatpush1.bf16.msra.mxu0 0
        %1254 = vmatprep.subr.bf16.mxu0 0
        %1255 = vmatpush1.bf16.msra.mxu0 0
        %1256 = vmatprep.subr.bf16.mxu0 0
        %1257 = vmatpush1.bf16.msra.mxu0 0
        %1258 = vmatprep.subr.bf16.mxu0 0
        %1259 = vmatpush1.bf16.msra.mxu0 0
        %1260 = vmatprep.subr.bf16.mxu0 0
        %1261 = vmatpush1.bf16.msra.mxu0 0
        %1262 = vmatprep.subr.bf16.mxu0 0
        %1263 = vmatpush1.bf16.msra.mxu0 0
        %1264 = vmatprep.subr.bf16.mxu0 0
        %1265 = vmatpush1.bf16.msra.mxu0 0
        %1266 = vmatprep.subr.bf16.mxu0 0
        %1267 = vmatpush1.bf16.msra.mxu0 0
        %1268 = vmatprep.subr.bf16.mxu0 0
        %1269 = vmatpush1.bf16.msra.mxu0 0
        %1270 = vmatprep.subr.bf16.mxu0 0
        %1271 = vmatpush1.bf16.msra.mxu0 0
        %1272 = vmatprep.subr.bf16.mxu0 0
        %1273 = vmatpush1.bf16.msra.mxu0 0
        %1274 = vmatprep.mubr.bf16.mxu0 0
        %1275 = vmatmul.mubr.bf16.gmra.mrb[0].mxu0 %v1240
        %v1276 = vpop.f32.mrb[0].mxu0
        %v1277 = vadd.f32 0.0, %v1276
        %v1278 = vpop.f32.mrb[0].mxu0
        %v1279 = vpop.f32.mrb[0].mxu0
        %v1280 = vadd.f32 0.0, %v1279
        %v1281 = vpop.f32.mrb[0].mxu0
        %1282 = vdwg.mxu0
        %v1283 = vadd.f32 %v1220, %v1277
        %v1284 = vadd.f32 %v1221, %v1280
        %s1285 = scalar_lea.vmem %s4, 64
        %v1286 = vld [vmem:[%s1285] sm:$0xf]
        %v1287 = vld [vmem:[%s1285 + $0x4] sm:$0xf]
        %v1288 = vld [vmem:[%s1285 + $0x8] sm:$0xf]
        %v1289 = vld [vmem:[%s1285 + $0xc] sm:$0xf]
        %v1294 = vunpack.c.l.b16 %v1286
        %v1295 = vunpack.c.l.b16 %v1287
        %v1296 = vunpack.c.l.b16 %v1288
        %v1297 = vunpack.c.l.b16 %v1289
        %v1298 = vpack.c.b16 %v1295, %v1294
        %v1299 = vpack.c.b16 %v1297, %v1296
        %v1303 = vsel %vm1058, %v1025, 0
        %1305 = vmatprep.subr.bf16.mxu0 0
        %1306 = vmatpush1.bf16.msra.mxu0 %v1298
        %1307 = vmatprep.subr.bf16.mxu0 0
        %1308 = vmatpush1.bf16.msra.mxu0 %v1299
        %1309 = vmatprep.subr.bf16.mxu0 0
        %1310 = vmatpush1.bf16.msra.mxu0 0
        %1311 = vmatprep.subr.bf16.mxu0 0
        %1312 = vmatpush1.bf16.msra.mxu0 0
        %1313 = vmatprep.subr.bf16.mxu0 0
        %1314 = vmatpush1.bf16.msra.mxu0 0
        %1315 = vmatprep.subr.bf16.mxu0 0
        %1316 = vmatpush1.bf16.msra.mxu0 0
        %1317 = vmatprep.subr.bf16.mxu0 0
        %1318 = vmatpush1.bf16.msra.mxu0 0
        %1319 = vmatprep.subr.bf16.mxu0 0
        %1320 = vmatpush1.bf16.msra.mxu0 0
        %1321 = vmatprep.subr.bf16.mxu0 0
        %1322 = vmatpush1.bf16.msra.mxu0 0
        %1323 = vmatprep.subr.bf16.mxu0 0
        %1324 = vmatpush1.bf16.msra.mxu0 0
        %1325 = vmatprep.subr.bf16.mxu0 0
        %1326 = vmatpush1.bf16.msra.mxu0 0
        %1327 = vmatprep.subr.bf16.mxu0 0
        %1328 = vmatpush1.bf16.msra.mxu0 0
        %1329 = vmatprep.subr.bf16.mxu0 0
        %1330 = vmatpush1.bf16.msra.mxu0 0
        %1331 = vmatprep.subr.bf16.mxu0 0
        %1332 = vmatpush1.bf16.msra.mxu0 0
        %1333 = vmatprep.subr.bf16.mxu0 0
        %1334 = vmatpush1.bf16.msra.mxu0 0
        %1335 = vmatprep.subr.bf16.mxu0 0
        %1336 = vmatpush1.bf16.msra.mxu0 0
        %1337 = vmatprep.mubr.bf16.mxu0 0
        %1338 = vmatmul.mubr.bf16.gmra.mrb[0].mxu0 %v1303
        %v1339 = vpop.f32.mrb[0].mxu0
        %v1340 = vadd.f32 0.0, %v1339
        %v1341 = vpop.f32.mrb[0].mxu0
        %v1342 = vpop.f32.mrb[0].mxu0
        %v1343 = vadd.f32 0.0, %v1342
        %v1344 = vpop.f32.mrb[0].mxu0
        %1345 = vdwg.mxu0
        %v1346 = vadd.f32 %v1283, %v1340
        %v1347 = vadd.f32 %v1284, %v1343
        %s1348 = scalar_lea.vmem %s4, 80
        %v1349 = vld [vmem:[%s1348] sm:$0xf]
        %v1350 = vld [vmem:[%s1348 + $0x4] sm:$0xf]
        %v1351 = vld [vmem:[%s1348 + $0x8] sm:$0xf]
        %v1352 = vld [vmem:[%s1348 + $0xc] sm:$0xf]
        %v1357 = vunpack.c.l.b16 %v1349
        %v1358 = vunpack.c.l.b16 %v1350
        %v1359 = vunpack.c.l.b16 %v1351
        %v1360 = vunpack.c.l.b16 %v1352
        %v1361 = vpack.c.b16 %v1358, %v1357
        %v1362 = vpack.c.b16 %v1360, %v1359
        %v1366 = vsel %vm1058, %v1026, 0
        %1368 = vmatprep.subr.bf16.mxu0 0
        %1369 = vmatpush1.bf16.msra.mxu0 %v1361
        %1370 = vmatprep.subr.bf16.mxu0 0
        %1371 = vmatpush1.bf16.msra.mxu0 %v1362
        %1372 = vmatprep.subr.bf16.mxu0 0
        %1373 = vmatpush1.bf16.msra.mxu0 0
        %1374 = vmatprep.subr.bf16.mxu0 0
        %1375 = vmatpush1.bf16.msra.mxu0 0
        %1376 = vmatprep.subr.bf16.mxu0 0
        %1377 = vmatpush1.bf16.msra.mxu0 0
        %1378 = vmatprep.subr.bf16.mxu0 0
        %1379 = vmatpush1.bf16.msra.mxu0 0
        %1380 = vmatprep.subr.bf16.mxu0 0
        %1381 = vmatpush1.bf16.msra.mxu0 0
        %1382 = vmatprep.subr.bf16.mxu0 0
        %1383 = vmatpush1.bf16.msra.mxu0 0
        %1384 = vmatprep.subr.bf16.mxu0 0
        %1385 = vmatpush1.bf16.msra.mxu0 0
        %1386 = vmatprep.subr.bf16.mxu0 0
        %1387 = vmatpush1.bf16.msra.mxu0 0
        %1388 = vmatprep.subr.bf16.mxu0 0
        %1389 = vmatpush1.bf16.msra.mxu0 0
        %1390 = vmatprep.subr.bf16.mxu0 0
        %1391 = vmatpush1.bf16.msra.mxu0 0
        %1392 = vmatprep.subr.bf16.mxu0 0
        %1393 = vmatpush1.bf16.msra.mxu0 0
        %1394 = vmatprep.subr.bf16.mxu0 0
        %1395 = vmatpush1.bf16.msra.mxu0 0
        %1396 = vmatprep.subr.bf16.mxu0 0
        %1397 = vmatpush1.bf16.msra.mxu0 0
        %1398 = vmatprep.subr.bf16.mxu0 0
        %1399 = vmatpush1.bf16.msra.mxu0 0
        %1400 = vmatprep.mubr.bf16.mxu0 0
        %1401 = vmatmul.mubr.bf16.gmra.mrb[0].mxu0 %v1366
        %v1402 = vpop.f32.mrb[0].mxu0
        %v1403 = vadd.f32 0.0, %v1402
        %v1404 = vpop.f32.mrb[0].mxu0
        %v1405 = vpop.f32.mrb[0].mxu0
        %v1406 = vadd.f32 0.0, %v1405
        %v1407 = vpop.f32.mrb[0].mxu0
        %1408 = vdwg.mxu0
        %v1409 = vadd.f32 %v1346, %v1403
        %v1410 = vadd.f32 %v1347, %v1406
        %s1411 = scalar_lea.vmem %s4, 96
        %v1412 = vld [vmem:[%s1411] sm:$0xf]
        %v1413 = vld [vmem:[%s1411 + $0x4] sm:$0xf]
        %v1414 = vld [vmem:[%s1411 + $0x8] sm:$0xf]
        %v1415 = vld [vmem:[%s1411 + $0xc] sm:$0xf]
        %v1420 = vunpack.c.l.b16 %v1412
        %v1421 = vunpack.c.l.b16 %v1413
        %v1422 = vunpack.c.l.b16 %v1414
        %v1423 = vunpack.c.l.b16 %v1415
        %v1424 = vpack.c.b16 %v1421, %v1420
        %v1425 = vpack.c.b16 %v1423, %v1422
        %v1429 = vsel %vm1058, %v1027, 0
        %1431 = vmatprep.subr.bf16.mxu0 0
        %1432 = vmatpush1.bf16.msra.mxu0 %v1424
        %1433 = vmatprep.subr.bf16.mxu0 0
        %1434 = vmatpush1.bf16.msra.mxu0 %v1425
        %1435 = vmatprep.subr.bf16.mxu0 0
        %1436 = vmatpush1.bf16.msra.mxu0 0
        %1437 = vmatprep.subr.bf16.mxu0 0
        %1438 = vmatpush1.bf16.msra.mxu0 0
        %1439 = vmatprep.subr.bf16.mxu0 0
        %1440 = vmatpush1.bf16.msra.mxu0 0
        %1441 = vmatprep.subr.bf16.mxu0 0
        %1442 = vmatpush1.bf16.msra.mxu0 0
        %1443 = vmatprep.subr.bf16.mxu0 0
        %1444 = vmatpush1.bf16.msra.mxu0 0
        %1445 = vmatprep.subr.bf16.mxu0 0
        %1446 = vmatpush1.bf16.msra.mxu0 0
        %1447 = vmatprep.subr.bf16.mxu0 0
        %1448 = vmatpush1.bf16.msra.mxu0 0
        %1449 = vmatprep.subr.bf16.mxu0 0
        %1450 = vmatpush1.bf16.msra.mxu0 0
        %1451 = vmatprep.subr.bf16.mxu0 0
        %1452 = vmatpush1.bf16.msra.mxu0 0
        %1453 = vmatprep.subr.bf16.mxu0 0
        %1454 = vmatpush1.bf16.msra.mxu0 0
        %1455 = vmatprep.subr.bf16.mxu0 0
        %1456 = vmatpush1.bf16.msra.mxu0 0
        %1457 = vmatprep.subr.bf16.mxu0 0
        %1458 = vmatpush1.bf16.msra.mxu0 0
        %1459 = vmatprep.subr.bf16.mxu0 0
        %1460 = vmatpush1.bf16.msra.mxu0 0
        %1461 = vmatprep.subr.bf16.mxu0 0
        %1462 = vmatpush1.bf16.msra.mxu0 0
        %1463 = vmatprep.mubr.bf16.mxu0 0
        %1464 = vmatmul.mubr.bf16.gmra.mrb[0].mxu0 %v1429
        %v1465 = vpop.f32.mrb[0].mxu0
        %v1466 = vadd.f32 0.0, %v1465
        %v1467 = vpop.f32.mrb[0].mxu0
        %v1468 = vpop.f32.mrb[0].mxu0
        %v1469 = vadd.f32 0.0, %v1468
        %v1470 = vpop.f32.mrb[0].mxu0
        %1471 = vdwg.mxu0
        %v1472 = vadd.f32 %v1409, %v1466
        %v1473 = vadd.f32 %v1410, %v1469
        %s1474 = scalar_lea.vmem %s4, 112
        %v1475 = vld [vmem:[%s1474] sm:$0xf]
        %v1476 = vld [vmem:[%s1474 + $0x4] sm:$0xf]
        %v1477 = vld [vmem:[%s1474 + $0x8] sm:$0xf]
        %v1478 = vld [vmem:[%s1474 + $0xc] sm:$0xf]
        %v1483 = vunpack.c.l.b16 %v1475
        %v1484 = vunpack.c.l.b16 %v1476
        %v1485 = vunpack.c.l.b16 %v1477
        %v1486 = vunpack.c.l.b16 %v1478
        %v1487 = vpack.c.b16 %v1484, %v1483
        %v1488 = vpack.c.b16 %v1486, %v1485
        %v1492 = vsel %vm1058, %v1028, 0
        %1494 = vmatprep.subr.bf16.mxu0 0
        %1495 = vmatpush1.bf16.msra.mxu0 %v1487
        %1496 = vmatprep.subr.bf16.mxu0 0
        %1497 = vmatpush1.bf16.msra.mxu0 %v1488
        %1498 = vmatprep.subr.bf16.mxu0 0
        %1499 = vmatpush1.bf16.msra.mxu0 0
        %1500 = vmatprep.subr.bf16.mxu0 0
        %1501 = vmatpush1.bf16.msra.mxu0 0
        %1502 = vmatprep.subr.bf16.mxu0 0
        %1503 = vmatpush1.bf16.msra.mxu0 0
        %1504 = vmatprep.subr.bf16.mxu0 0
        %1505 = vmatpush1.bf16.msra.mxu0 0
        %1506 = vmatprep.subr.bf16.mxu0 0
        %1507 = vmatpush1.bf16.msra.mxu0 0
        %1508 = vmatprep.subr.bf16.mxu0 0
        %1509 = vmatpush1.bf16.msra.mxu0 0
        %1510 = vmatprep.subr.bf16.mxu0 0
        %1511 = vmatpush1.bf16.msra.mxu0 0
        %1512 = vmatprep.subr.bf16.mxu0 0
        %1513 = vmatpush1.bf16.msra.mxu0 0
        %1514 = vmatprep.subr.bf16.mxu0 0
        %1515 = vmatpush1.bf16.msra.mxu0 0
        %1516 = vmatprep.subr.bf16.mxu0 0
        %1517 = vmatpush1.bf16.msra.mxu0 0
        %1518 = vmatprep.subr.bf16.mxu0 0
        %1519 = vmatpush1.bf16.msra.mxu0 0
        %1520 = vmatprep.subr.bf16.mxu0 0
        %1521 = vmatpush1.bf16.msra.mxu0 0
        %1522 = vmatprep.subr.bf16.mxu0 0
        %1523 = vmatpush1.bf16.msra.mxu0 0
        %1524 = vmatprep.subr.bf16.mxu0 0
        %1525 = vmatpush1.bf16.msra.mxu0 0
        %1526 = vmatprep.mubr.bf16.mxu0 0
        %1527 = vmatmul.mubr.bf16.gmra.mrb[0].mxu0 %v1492
        %v1528 = vpop.f32.mrb[0].mxu0
        %v1529 = vadd.f32 0.0, %v1528
        %v1530 = vpop.f32.mrb[0].mxu0
        %v1531 = vpop.f32.mrb[0].mxu0
        %v1532 = vadd.f32 0.0, %v1531
        %v1533 = vpop.f32.mrb[0].mxu0
        %1534 = vdwg.mxu0
        %v1535 = vadd.f32 %v1472, %v1529
        %v1536 = vadd.f32 %v1473, %v1532
        %s1537 = scalar_lea.vmem %s4, 128
        %v1538 = vld [vmem:[%s1537] sm:$0xf]
        %v1539 = vld [vmem:[%s1537 + $0x4] sm:$0xf]
        %v1540 = vld [vmem:[%s1537 + $0x8] sm:$0xf]
        %v1541 = vld [vmem:[%s1537 + $0xc] sm:$0xf]
        %v1546 = vunpack.c.l.b16 %v1538
        %v1547 = vunpack.c.l.b16 %v1539
        %v1548 = vunpack.c.l.b16 %v1540
        %v1549 = vunpack.c.l.b16 %v1541
        %v1550 = vpack.c.b16 %v1547, %v1546
        %v1551 = vpack.c.b16 %v1549, %v1548
        %v1555 = vsel %vm1058, %v1029, 0
        %1557 = vmatprep.subr.bf16.mxu0 0
        %1558 = vmatpush1.bf16.msra.mxu0 %v1550
        %1559 = vmatprep.subr.bf16.mxu0 0
        %1560 = vmatpush1.bf16.msra.mxu0 %v1551
        %1561 = vmatprep.subr.bf16.mxu0 0
        %1562 = vmatpush1.bf16.msra.mxu0 0
        %1563 = vmatprep.subr.bf16.mxu0 0
        %1564 = vmatpush1.bf16.msra.mxu0 0
        %1565 = vmatprep.subr.bf16.mxu0 0
        %1566 = vmatpush1.bf16.msra.mxu0 0
        %1567 = vmatprep.subr.bf16.mxu0 0
        %1568 = vmatpush1.bf16.msra.mxu0 0
        %1569 = vmatprep.subr.bf16.mxu0 0
        %1570 = vmatpush1.bf16.msra.mxu0 0
        %1571 = vmatprep.subr.bf16.mxu0 0
        %1572 = vmatpush1.bf16.msra.mxu0 0
        %1573 = vmatprep.subr.bf16.mxu0 0
        %1574 = vmatpush1.bf16.msra.mxu0 0
        %1575 = vmatprep.subr.bf16.mxu0 0
        %1576 = vmatpush1.bf16.msra.mxu0 0
        %1577 = vmatprep.subr.bf16.mxu0 0
        %1578 = vmatpush1.bf16.msra.mxu0 0
        %1579 = vmatprep.subr.bf16.mxu0 0
        %1580 = vmatpush1.bf16.msra.mxu0 0
        %1581 = vmatprep.subr.bf16.mxu0 0
        %1582 = vmatpush1.bf16.msra.mxu0 0
        %1583 = vmatprep.subr.bf16.mxu0 0
        %1584 = vmatpush1.bf16.msra.mxu0 0
        %1585 = vmatprep.subr.bf16.mxu0 0
        %1586 = vmatpush1.bf16.msra.mxu0 0
        %1587 = vmatprep.subr.bf16.mxu0 0
        %1588 = vmatpush1.bf16.msra.mxu0 0
        %1589 = vmatprep.mubr.bf16.mxu0 0
        %1590 = vmatmul.mubr.bf16.gmra.mrb[0].mxu0 %v1555
        %v1591 = vpop.f32.mrb[0].mxu0
        %v1592 = vadd.f32 0.0, %v1591
        %v1593 = vpop.f32.mrb[0].mxu0
        %v1594 = vpop.f32.mrb[0].mxu0
        %v1595 = vadd.f32 0.0, %v1594
        %v1596 = vpop.f32.mrb[0].mxu0
        %1597 = vdwg.mxu0
        %v1598 = vadd.f32 %v1535, %v1592
        %v1599 = vadd.f32 %v1536, %v1595
        %s1600 = scalar_lea.vmem %s4, 144
        %v1601 = vld [vmem:[%s1600] sm:$0xf]
        %v1602 = vld [vmem:[%s1600 + $0x4] sm:$0xf]
        %v1603 = vld [vmem:[%s1600 + $0x8] sm:$0xf]
        %v1604 = vld [vmem:[%s1600 + $0xc] sm:$0xf]
        %v1609 = vunpack.c.l.b16 %v1601
        %v1610 = vunpack.c.l.b16 %v1602
        %v1611 = vunpack.c.l.b16 %v1603
        %v1612 = vunpack.c.l.b16 %v1604
        %v1613 = vpack.c.b16 %v1610, %v1609
        %v1614 = vpack.c.b16 %v1612, %v1611
        %v1618 = vsel %vm1058, %v1030, 0
        %1620 = vmatprep.subr.bf16.mxu0 0
        %1621 = vmatpush1.bf16.msra.mxu0 %v1613
        %1622 = vmatprep.subr.bf16.mxu0 0
        %1623 = vmatpush1.bf16.msra.mxu0 %v1614
        %1624 = vmatprep.subr.bf16.mxu0 0
        %1625 = vmatpush1.bf16.msra.mxu0 0
        %1626 = vmatprep.subr.bf16.mxu0 0
        %1627 = vmatpush1.bf16.msra.mxu0 0
        %1628 = vmatprep.subr.bf16.mxu0 0
        %1629 = vmatpush1.bf16.msra.mxu0 0
        %1630 = vmatprep.subr.bf16.mxu0 0
        %1631 = vmatpush1.bf16.msra.mxu0 0
        %1632 = vmatprep.subr.bf16.mxu0 0
        %1633 = vmatpush1.bf16.msra.mxu0 0
        %1634 = vmatprep.subr.bf16.mxu0 0
        %1635 = vmatpush1.bf16.msra.mxu0 0
        %1636 = vmatprep.subr.bf16.mxu0 0
        %1637 = vmatpush1.bf16.msra.mxu0 0
        %1638 = vmatprep.subr.bf16.mxu0 0
        %1639 = vmatpush1.bf16.msra.mxu0 0
        %1640 = vmatprep.subr.bf16.mxu0 0
        %1641 = vmatpush1.bf16.msra.mxu0 0
        %1642 = vmatprep.subr.bf16.mxu0 0
        %1643 = vmatpush1.bf16.msra.mxu0 0
        %1644 = vmatprep.subr.bf16.mxu0 0
        %1645 = vmatpush1.bf16.msra.mxu0 0
        %1646 = vmatprep.subr.bf16.mxu0 0
        %1647 = vmatpush1.bf16.msra.mxu0 0
        %1648 = vmatprep.subr.bf16.mxu0 0
        %1649 = vmatpush1.bf16.msra.mxu0 0
        %1650 = vmatprep.subr.bf16.mxu0 0
        %1651 = vmatpush1.bf16.msra.mxu0 0
        %1652 = vmatprep.mubr.bf16.mxu0 0
        %1653 = vmatmul.mubr.bf16.gmra.mrb[0].mxu0 %v1618
        %v1654 = vpop.f32.mrb[0].mxu0
        %v1655 = vadd.f32 0.0, %v1654
        %v1656 = vpop.f32.mrb[0].mxu0
        %v1657 = vpop.f32.mrb[0].mxu0
        %v1658 = vadd.f32 0.0, %v1657
        %v1659 = vpop.f32.mrb[0].mxu0
        %1660 = vdwg.mxu0
        %v1661 = vadd.f32 %v1598, %v1655
        %v1662 = vadd.f32 %v1599, %v1658
        %s1663 = scalar_lea.vmem %s4, 160
        %v1664 = vld [vmem:[%s1663] sm:$0xf]
        %v1665 = vld [vmem:[%s1663 + $0x4] sm:$0xf]
        %v1666 = vld [vmem:[%s1663 + $0x8] sm:$0xf]
        %v1667 = vld [vmem:[%s1663 + $0xc] sm:$0xf]
        %v1672 = vunpack.c.l.b16 %v1664
        %v1673 = vunpack.c.l.b16 %v1665
        %v1674 = vunpack.c.l.b16 %v1666
        %v1675 = vunpack.c.l.b16 %v1667
        %v1676 = vpack.c.b16 %v1673, %v1672
        %v1677 = vpack.c.b16 %v1675, %v1674
        %v1681 = vsel %vm1058, %v1031, 0
        %1683 = vmatprep.subr.bf16.mxu0 0
        %1684 = vmatpush1.bf16.msra.mxu0 %v1676
        %1685 = vmatprep.subr.bf16.mxu0 0
        %1686 = vmatpush1.bf16.msra.mxu0 %v1677
        %1687 = vmatprep.subr.bf16.mxu0 0
        %1688 = vmatpush1.bf16.msra.mxu0 0
        %1689 = vmatprep.subr.bf16.mxu0 0
        %1690 = vmatpush1.bf16.msra.mxu0 0
        %1691 = vmatprep.subr.bf16.mxu0 0
        %1692 = vmatpush1.bf16.msra.mxu0 0
        %1693 = vmatprep.subr.bf16.mxu0 0
        %1694 = vmatpush1.bf16.msra.mxu0 0
        %1695 = vmatprep.subr.bf16.mxu0 0
        %1696 = vmatpush1.bf16.msra.mxu0 0
        %1697 = vmatprep.subr.bf16.mxu0 0
        %1698 = vmatpush1.bf16.msra.mxu0 0
        %1699 = vmatprep.subr.bf16.mxu0 0
        %1700 = vmatpush1.bf16.msra.mxu0 0
        %1701 = vmatprep.subr.bf16.mxu0 0
        %1702 = vmatpush1.bf16.msra.mxu0 0
        %1703 = vmatprep.subr.bf16.mxu0 0
        %1704 = vmatpush1.bf16.msra.mxu0 0
        %1705 = vmatprep.subr.bf16.mxu0 0
        %1706 = vmatpush1.bf16.msra.mxu0 0
        %1707 = vmatprep.subr.bf16.mxu0 0
        %1708 = vmatpush1.bf16.msra.mxu0 0
        %1709 = vmatprep.subr.bf16.mxu0 0
        %1710 = vmatpush1.bf16.msra.mxu0 0
        %1711 = vmatprep.subr.bf16.mxu0 0
        %1712 = vmatpush1.bf16.msra.mxu0 0
        %1713 = vmatprep.subr.bf16.mxu0 0
        %1714 = vmatpush1.bf16.msra.mxu0 0
        %1715 = vmatprep.mubr.bf16.mxu0 0
        %1716 = vmatmul.mubr.bf16.gmra.mrb[0].mxu0 %v1681
        %v1717 = vpop.f32.mrb[0].mxu0
        %v1718 = vadd.f32 0.0, %v1717
        %v1719 = vpop.f32.mrb[0].mxu0
        %v1720 = vpop.f32.mrb[0].mxu0
        %v1721 = vadd.f32 0.0, %v1720
        %v1722 = vpop.f32.mrb[0].mxu0
        %1723 = vdwg.mxu0
        %v1724 = vadd.f32 %v1661, %v1718
        %v1725 = vadd.f32 %v1662, %v1721
        %s1726 = scalar_lea.vmem %s4, 176
        %v1727 = vld [vmem:[%s1726] sm:$0xf]
        %v1728 = vld [vmem:[%s1726 + $0x4] sm:$0xf]
        %v1729 = vld [vmem:[%s1726 + $0x8] sm:$0xf]
        %v1730 = vld [vmem:[%s1726 + $0xc] sm:$0xf]
        %v1735 = vunpack.c.l.b16 %v1727
        %v1736 = vunpack.c.l.b16 %v1728
        %v1737 = vunpack.c.l.b16 %v1729
        %v1738 = vunpack.c.l.b16 %v1730
        %v1739 = vpack.c.b16 %v1736, %v1735
        %v1740 = vpack.c.b16 %v1738, %v1737
        %v1744 = vsel %vm1058, %v1032, 0
        %1746 = vmatprep.subr.bf16.mxu0 0
        %1747 = vmatpush1.bf16.msra.mxu0 %v1739
        %1748 = vmatprep.subr.bf16.mxu0 0
        %1749 = vmatpush1.bf16.msra.mxu0 %v1740
        %1750 = vmatprep.subr.bf16.mxu0 0
        %1751 = vmatpush1.bf16.msra.mxu0 0
        %1752 = vmatprep.subr.bf16.mxu0 0
        %1753 = vmatpush1.bf16.msra.mxu0 0
        %1754 = vmatprep.subr.bf16.mxu0 0
        %1755 = vmatpush1.bf16.msra.mxu0 0
        %1756 = vmatprep.subr.bf16.mxu0 0
        %1757 = vmatpush1.bf16.msra.mxu0 0
        %1758 = vmatprep.subr.bf16.mxu0 0
        %1759 = vmatpush1.bf16.msra.mxu0 0
        %1760 = vmatprep.subr.bf16.mxu0 0
        %1761 = vmatpush1.bf16.msra.mxu0 0
        %1762 = vmatprep.subr.bf16.mxu0 0
        %1763 = vmatpush1.bf16.msra.mxu0 0
        %1764 = vmatprep.subr.bf16.mxu0 0
        %1765 = vmatpush1.bf16.msra.mxu0 0
        %1766 = vmatprep.subr.bf16.mxu0 0
        %1767 = vmatpush1.bf16.msra.mxu0 0
        %1768 = vmatprep.subr.bf16.mxu0 0
        %1769 = vmatpush1.bf16.msra.mxu0 0
        %1770 = vmatprep.subr.bf16.mxu0 0
        %1771 = vmatpush1.bf16.msra.mxu0 0
        %1772 = vmatprep.subr.bf16.mxu0 0
        %1773 = vmatpush1.bf16.msra.mxu0 0
        %1774 = vmatprep.subr.bf16.mxu0 0
        %1775 = vmatpush1.bf16.msra.mxu0 0
        %1776 = vmatprep.subr.bf16.mxu0 0
        %1777 = vmatpush1.bf16.msra.mxu0 0
        %1778 = vmatprep.mubr.bf16.mxu0 0
        %1779 = vmatmul.mubr.bf16.gmra.mrb[0].mxu0 %v1744
        %v1780 = vpop.f32.mrb[0].mxu0
        %v1781 = vadd.f32 0.0, %v1780
        %v1782 = vpop.f32.mrb[0].mxu0
        %v1783 = vpop.f32.mrb[0].mxu0
        %v1784 = vadd.f32 0.0, %v1783
        %v1785 = vpop.f32.mrb[0].mxu0
        %1786 = vdwg.mxu0
        %v1787 = vadd.f32 %v1724, %v1781
        %v1788 = vadd.f32 %v1725, %v1784
        %s1789 = scalar_lea.vmem %s4, 192
        %v1790 = vld [vmem:[%s1789] sm:$0xf]
        %v1791 = vld [vmem:[%s1789 + $0x4] sm:$0xf]
        %v1792 = vld [vmem:[%s1789 + $0x8] sm:$0xf]
        %v1793 = vld [vmem:[%s1789 + $0xc] sm:$0xf]
        %v1798 = vunpack.c.l.b16 %v1790
        %v1799 = vunpack.c.l.b16 %v1791
        %v1800 = vunpack.c.l.b16 %v1792
        %v1801 = vunpack.c.l.b16 %v1793
        %v1802 = vpack.c.b16 %v1799, %v1798
        %v1803 = vpack.c.b16 %v1801, %v1800
        %v1807 = vsel %vm1058, %v1033, 0
        %1809 = vmatprep.subr.bf16.mxu0 0
        %1810 = vmatpush1.bf16.msra.mxu0 %v1802
        %1811 = vmatprep.subr.bf16.mxu0 0
        %1812 = vmatpush1.bf16.msra.mxu0 %v1803
        %1813 = vmatprep.subr.bf16.mxu0 0
        %1814 = vmatpush1.bf16.msra.mxu0 0
        %1815 = vmatprep.subr.bf16.mxu0 0
        %1816 = vmatpush1.bf16.msra.mxu0 0
        %1817 = vmatprep.subr.bf16.mxu0 0
        %1818 = vmatpush1.bf16.msra.mxu0 0
        %1819 = vmatprep.subr.bf16.mxu0 0
        %1820 = vmatpush1.bf16.msra.mxu0 0
        %1821 = vmatprep.subr.bf16.mxu0 0
        %1822 = vmatpush1.bf16.msra.mxu0 0
        %1823 = vmatprep.subr.bf16.mxu0 0
        %1824 = vmatpush1.bf16.msra.mxu0 0
        %1825 = vmatprep.subr.bf16.mxu0 0
        %1826 = vmatpush1.bf16.msra.mxu0 0
        %1827 = vmatprep.subr.bf16.mxu0 0
        %1828 = vmatpush1.bf16.msra.mxu0 0
        %1829 = vmatprep.subr.bf16.mxu0 0
        %1830 = vmatpush1.bf16.msra.mxu0 0
        %1831 = vmatprep.subr.bf16.mxu0 0
        %1832 = vmatpush1.bf16.msra.mxu0 0
        %1833 = vmatprep.subr.bf16.mxu0 0
        %1834 = vmatpush1.bf16.msra.mxu0 0
        %1835 = vmatprep.subr.bf16.mxu0 0
        %1836 = vmatpush1.bf16.msra.mxu0 0
        %1837 = vmatprep.subr.bf16.mxu0 0
        %1838 = vmatpush1.bf16.msra.mxu0 0
        %1839 = vmatprep.subr.bf16.mxu0 0
        %1840 = vmatpush1.bf16.msra.mxu0 0
        %1841 = vmatprep.mubr.bf16.mxu0 0
        %1842 = vmatmul.mubr.bf16.gmra.mrb[0].mxu0 %v1807
        %v1843 = vpop.f32.mrb[0].mxu0
        %v1844 = vadd.f32 0.0, %v1843
        %v1845 = vpop.f32.mrb[0].mxu0
        %v1846 = vpop.f32.mrb[0].mxu0
        %v1847 = vadd.f32 0.0, %v1846
        %v1848 = vpop.f32.mrb[0].mxu0
        %1849 = vdwg.mxu0
        %v1850 = vadd.f32 %v1787, %v1844
        %v1851 = vadd.f32 %v1788, %v1847
        %s1852 = scalar_lea.vmem %s4, 208
        %v1853 = vld [vmem:[%s1852] sm:$0xf]
        %v1854 = vld [vmem:[%s1852 + $0x4] sm:$0xf]
        %v1855 = vld [vmem:[%s1852 + $0x8] sm:$0xf]
        %v1856 = vld [vmem:[%s1852 + $0xc] sm:$0xf]
        %v1861 = vunpack.c.l.b16 %v1853
        %v1862 = vunpack.c.l.b16 %v1854
        %v1863 = vunpack.c.l.b16 %v1855
        %v1864 = vunpack.c.l.b16 %v1856
        %v1865 = vpack.c.b16 %v1862, %v1861
        %v1866 = vpack.c.b16 %v1864, %v1863
        %v1870 = vsel %vm1058, %v1034, 0
        %1872 = vmatprep.subr.bf16.mxu0 0
        %1873 = vmatpush1.bf16.msra.mxu0 %v1865
        %1874 = vmatprep.subr.bf16.mxu0 0
        %1875 = vmatpush1.bf16.msra.mxu0 %v1866
        %1876 = vmatprep.subr.bf16.mxu0 0
        %1877 = vmatpush1.bf16.msra.mxu0 0
        %1878 = vmatprep.subr.bf16.mxu0 0
        %1879 = vmatpush1.bf16.msra.mxu0 0
        %1880 = vmatprep.subr.bf16.mxu0 0
        %1881 = vmatpush1.bf16.msra.mxu0 0
        %1882 = vmatprep.subr.bf16.mxu0 0
        %1883 = vmatpush1.bf16.msra.mxu0 0
        %1884 = vmatprep.subr.bf16.mxu0 0
        %1885 = vmatpush1.bf16.msra.mxu0 0
        %1886 = vmatprep.subr.bf16.mxu0 0
        %1887 = vmatpush1.bf16.msra.mxu0 0
        %1888 = vmatprep.subr.bf16.mxu0 0
        %1889 = vmatpush1.bf16.msra.mxu0 0
        %1890 = vmatprep.subr.bf16.mxu0 0
        %1891 = vmatpush1.bf16.msra.mxu0 0
        %1892 = vmatprep.subr.bf16.mxu0 0
        %1893 = vmatpush1.bf16.msra.mxu0 0
        %1894 = vmatprep.subr.bf16.mxu0 0
        %1895 = vmatpush1.bf16.msra.mxu0 0
        %1896 = vmatprep.subr.bf16.mxu0 0
        %1897 = vmatpush1.bf16.msra.mxu0 0
        %1898 = vmatprep.subr.bf16.mxu0 0
        %1899 = vmatpush1.bf16.msra.mxu0 0
        %1900 = vmatprep.subr.bf16.mxu0 0
        %1901 = vmatpush1.bf16.msra.mxu0 0
        %1902 = vmatprep.subr.bf16.mxu0 0
        %1903 = vmatpush1.bf16.msra.mxu0 0
        %1904 = vmatprep.mubr.bf16.mxu0 0
        %1905 = vmatmul.mubr.bf16.gmra.mrb[0].mxu0 %v1870
        %v1906 = vpop.f32.mrb[0].mxu0
        %v1907 = vadd.f32 0.0, %v1906
        %v1908 = vpop.f32.mrb[0].mxu0
        %v1909 = vpop.f32.mrb[0].mxu0
        %v1910 = vadd.f32 0.0, %v1909
        %v1911 = vpop.f32.mrb[0].mxu0
        %1912 = vdwg.mxu0
        %v1913 = vadd.f32 %v1850, %v1907
        %v1914 = vadd.f32 %v1851, %v1910
        %s1915 = scalar_lea.vmem %s4, 224
        %v1916 = vld [vmem:[%s1915] sm:$0xf]
        %v1917 = vld [vmem:[%s1915 + $0x4] sm:$0xf]
        %v1918 = vld [vmem:[%s1915 + $0x8] sm:$0xf]
        %v1919 = vld [vmem:[%s1915 + $0xc] sm:$0xf]
        %v1924 = vunpack.c.l.b16 %v1916
        %v1925 = vunpack.c.l.b16 %v1917
        %v1926 = vunpack.c.l.b16 %v1918
        %v1927 = vunpack.c.l.b16 %v1919
        %v1928 = vpack.c.b16 %v1925, %v1924
        %v1929 = vpack.c.b16 %v1927, %v1926
        %v1933 = vsel %vm1058, %v1035, 0
        %1935 = vmatprep.subr.bf16.mxu0 0
        %1936 = vmatpush1.bf16.msra.mxu0 %v1928
        %1937 = vmatprep.subr.bf16.mxu0 0
        %1938 = vmatpush1.bf16.msra.mxu0 %v1929
        %1939 = vmatprep.subr.bf16.mxu0 0
        %1940 = vmatpush1.bf16.msra.mxu0 0
        %1941 = vmatprep.subr.bf16.mxu0 0
        %1942 = vmatpush1.bf16.msra.mxu0 0
        %1943 = vmatprep.subr.bf16.mxu0 0
        %1944 = vmatpush1.bf16.msra.mxu0 0
        %1945 = vmatprep.subr.bf16.mxu0 0
        %1946 = vmatpush1.bf16.msra.mxu0 0
        %1947 = vmatprep.subr.bf16.mxu0 0
        %1948 = vmatpush1.bf16.msra.mxu0 0
        %1949 = vmatprep.subr.bf16.mxu0 0
        %1950 = vmatpush1.bf16.msra.mxu0 0
        %1951 = vmatprep.subr.bf16.mxu0 0
        %1952 = vmatpush1.bf16.msra.mxu0 0
        %1953 = vmatprep.subr.bf16.mxu0 0
        %1954 = vmatpush1.bf16.msra.mxu0 0
        %1955 = vmatprep.subr.bf16.mxu0 0
        %1956 = vmatpush1.bf16.msra.mxu0 0
        %1957 = vmatprep.subr.bf16.mxu0 0
        %1958 = vmatpush1.bf16.msra.mxu0 0
        %1959 = vmatprep.subr.bf16.mxu0 0
        %1960 = vmatpush1.bf16.msra.mxu0 0
        %1961 = vmatprep.subr.bf16.mxu0 0
        %1962 = vmatpush1.bf16.msra.mxu0 0
        %1963 = vmatprep.subr.bf16.mxu0 0
        %1964 = vmatpush1.bf16.msra.mxu0 0
        %1965 = vmatprep.subr.bf16.mxu0 0
        %1966 = vmatpush1.bf16.msra.mxu0 0
        %1967 = vmatprep.mubr.bf16.mxu0 0
        %1968 = vmatmul.mubr.bf16.gmra.mrb[0].mxu0 %v1933
        %v1969 = vpop.f32.mrb[0].mxu0
        %v1970 = vadd.f32 0.0, %v1969
        %v1971 = vpop.f32.mrb[0].mxu0
        %v1972 = vpop.f32.mrb[0].mxu0
        %v1973 = vadd.f32 0.0, %v1972
        %v1974 = vpop.f32.mrb[0].mxu0
        %1975 = vdwg.mxu0
        %v1976 = vadd.f32 %v1913, %v1970
        %v1977 = vadd.f32 %v1914, %v1973
        %s1978 = scalar_lea.vmem %s4, 240
        %v1979 = vld [vmem:[%s1978] sm:$0xf]
        %v1980 = vld [vmem:[%s1978 + $0x4] sm:$0xf]
        %v1981 = vld [vmem:[%s1978 + $0x8] sm:$0xf]
        %v1982 = vld [vmem:[%s1978 + $0xc] sm:$0xf]
        %v1987 = vunpack.c.l.b16 %v1979
        %v1988 = vunpack.c.l.b16 %v1980
        %v1989 = vunpack.c.l.b16 %v1981
        %v1990 = vunpack.c.l.b16 %v1982
        %v1991 = vpack.c.b16 %v1988, %v1987
        %v1992 = vpack.c.b16 %v1990, %v1989
        %v1996 = vsel %vm1058, %v1036, 0
        %1998 = vmatprep.subr.bf16.mxu0 0
        %1999 = vmatpush1.bf16.msra.mxu0 %v1991
        %2000 = vmatprep.subr.bf16.mxu0 0
        %2001 = vmatpush1.bf16.msra.mxu0 %v1992
        %2002 = vmatprep.subr.bf16.mxu0 0
        %2003 = vmatpush1.bf16.msra.mxu0 0
        %2004 = vmatprep.subr.bf16.mxu0 0
        %2005 = vmatpush1.bf16.msra.mxu0 0
        %2006 = vmatprep.subr.bf16.mxu0 0
        %2007 = vmatpush1.bf16.msra.mxu0 0
        %2008 = vmatprep.subr.bf16.mxu0 0
        %2009 = vmatpush1.bf16.msra.mxu0 0
        %2010 = vmatprep.subr.bf16.mxu0 0
        %2011 = vmatpush1.bf16.msra.mxu0 0
        %2012 = vmatprep.subr.bf16.mxu0 0
        %2013 = vmatpush1.bf16.msra.mxu0 0
        %2014 = vmatprep.subr.bf16.mxu0 0
        %2015 = vmatpush1.bf16.msra.mxu0 0
        %2016 = vmatprep.subr.bf16.mxu0 0
        %2017 = vmatpush1.bf16.msra.mxu0 0
        %2018 = vmatprep.subr.bf16.mxu0 0
        %2019 = vmatpush1.bf16.msra.mxu0 0
        %2020 = vmatprep.subr.bf16.mxu0 0
        %2021 = vmatpush1.bf16.msra.mxu0 0
        %2022 = vmatprep.subr.bf16.mxu0 0
        %2023 = vmatpush1.bf16.msra.mxu0 0
        %2024 = vmatprep.subr.bf16.mxu0 0
        %2025 = vmatpush1.bf16.msra.mxu0 0
        %2026 = vmatprep.subr.bf16.mxu0 0
        %2027 = vmatpush1.bf16.msra.mxu0 0
        %2028 = vmatprep.subr.bf16.mxu0 0
        %2029 = vmatpush1.bf16.msra.mxu0 0
        %2030 = vmatprep.mubr.bf16.mxu0 0
        %2031 = vmatmul.mubr.bf16.gmra.mrb[0].mxu0 %v1996
        %v2032 = vpop.f32.mrb[0].mxu0
        %v2033 = vadd.f32 0.0, %v2032
        %v2034 = vpop.f32.mrb[0].mxu0
        %v2035 = vpop.f32.mrb[0].mxu0
        %v2036 = vadd.f32 0.0, %v2035
        %v2037 = vpop.f32.mrb[0].mxu0
        %2038 = vdwg.mxu0
        %v2039 = vadd.f32 %v1976, %v2033
        %v2040 = vadd.f32 %v1977, %v2036
        %v2041 = vld [vmem:[%s5] sm:$0x1]
        %v2043 = vlaneseq
        %v2044 = vshrl.u32 %v2043, 7
        %v2045 = vsub.s32 0, %v2044
        %v2046 = vrot.slane %v2041, %v2045
        %v2048 = vadd.f32 %v2039, %v2046
        %v2049 = vadd.f32 %v2040, %v2046
        %v2050 = vmax.f32 %v2048, 0.0
        %v2051 = vmax.f32 %v2049, 0.0
        %v2052 = vpack.c.bf16 %v2051, %v2050
        %v2053 = vld [vmem:[%s6] sm:$0xf]
        %v2054 = vld [vmem:[%s6 + $0x4] sm:$0xf]
        %v2055 = vld [vmem:[%s6 + $0x8] sm:$0xf]
        %v2056 = vld [vmem:[%s6 + $0xc] sm:$0xf]
        %v2057 = vld [vmem:[%s6 + $0x10] sm:$0xf]
        %v2058 = vld [vmem:[%s6 + $0x14] sm:$0xf]
        %v2059 = vld [vmem:[%s6 + $0x18] sm:$0xf]
        %v2060 = vld [vmem:[%s6 + $0x1c] sm:$0xf]
        %v2061 = vld [vmem:[%s6 + $0x20] sm:$0xf]
        %v2062 = vld [vmem:[%s6 + $0x24] sm:$0xf]
        %v2063 = vld [vmem:[%s6 + $0x28] sm:$0xf]
        %v2064 = vld [vmem:[%s6 + $0x2c] sm:$0xf]
        %v2065 = vld [vmem:[%s6 + $0x30] sm:$0xf]
        %v2066 = vld [vmem:[%s6 + $0x34] sm:$0xf]
        %v2067 = vld [vmem:[%s6 + $0x38] sm:$0xf]
        %v2068 = vld [vmem:[%s6 + $0x3c] sm:$0xf]
        %v2069 = vld [vmem:[%s6 + $0x40] sm:$0xf]
        %v2070 = vld [vmem:[%s6 + $0x44] sm:$0xf]
        %v2089 = vunpack.c.l.b16 %v2053
        %v2090 = vunpack.c.l.b16 %v2054
        %v2091 = vunpack.c.l.b16 %v2055
        %v2092 = vunpack.c.l.b16 %v2056
        %v2093 = vunpack.c.l.b16 %v2057
        %v2094 = vunpack.c.l.b16 %v2058
        %v2095 = vunpack.c.l.b16 %v2059
        %v2096 = vunpack.c.l.b16 %v2060
        %v2097 = vunpack.c.l.b16 %v2061
        %v2098 = vunpack.c.l.b16 %v2062
        %v2099 = vunpack.c.l.b16 %v2063
        %v2100 = vunpack.c.l.b16 %v2064
        %v2101 = vunpack.c.l.b16 %v2065
        %v2102 = vunpack.c.l.b16 %v2066
        %v2103 = vunpack.c.l.b16 %v2067
        %v2104 = vunpack.c.l.b16 %v2068
        %v2105 = vunpack.c.l.b16 %v2069
        %v2106 = vunpack.c.l.b16 %v2070
        %v2107 = vpack.c.b16 %v2090, %v2089
        %v2108 = vpack.c.b16 %v2092, %v2091
        %v2109 = vpack.c.b16 %v2094, %v2093
        %v2110 = vpack.c.b16 %v2096, %v2095
        %v2111 = vpack.c.b16 %v2098, %v2097
        %v2112 = vpack.c.b16 %v2100, %v2099
        %v2113 = vpack.c.b16 %v2102, %v2101
        %v2114 = vpack.c.b16 %v2104, %v2103
        %v2115 = vpack.c.b16 %v2106, %v2105
        %vm2116 = vcmask 130048
        %v2118 = vsel %vm2116, %v2107, 0
        %v2121 = vsel %vm2116, %v2108, 0
        %v2124 = vsel %vm2116, %v2109, 0
        %v2127 = vsel %vm2116, %v2110, 0
        %v2130 = vsel %vm2116, %v2111, 0
        %v2133 = vsel %vm2116, %v2112, 0
        %v2136 = vsel %vm2116, %v2113, 0
        %v2139 = vsel %vm2116, %v2114, 0
        %v2142 = vsel %vm2116, %v2115, 0
        %2144 = vmatprep.subr.bf16.mxu0 0
        %2145 = vmatpush1.bf16.msra.mxu0 %v2052
        %2146 = vmatprep.subr.bf16.mxu0 0
        %2147 = vmatpush1.bf16.msra.mxu0 0
        %2148 = vmatprep.subr.bf16.mxu0 0
        %2149 = vmatpush1.bf16.msra.mxu0 0
        %2150 = vmatprep.subr.bf16.mxu0 0
        %2151 = vmatpush1.bf16.msra.mxu0 0
        %2152 = vmatprep.subr.bf16.mxu0 0
        %2153 = vmatpush1.bf16.msra.mxu0 0
        %2154 = vmatprep.subr.bf16.mxu0 0
        %2155 = vmatpush1.bf16.msra.mxu0 0
        %2156 = vmatprep.subr.bf16.mxu0 0
        %2157 = vmatpush1.bf16.msra.mxu0 0
        %2158 = vmatprep.subr.bf16.mxu0 0
        %2159 = vmatpush1.bf16.msra.mxu0 0
        %2160 = vmatprep.subr.bf16.mxu0 0
        %2161 = vmatpush1.bf16.msra.mxu0 0
        %2162 = vmatprep.subr.bf16.mxu0 0
        %2163 = vmatpush1.bf16.msra.mxu0 0
        %2164 = vmatprep.subr.bf16.mxu0 0
        %2165 = vmatpush1.bf16.msra.mxu0 0
        %2166 = vmatprep.subr.bf16.mxu0 0
        %2167 = vmatpush1.bf16.msra.mxu0 0
        %2168 = vmatprep.subr.bf16.mxu0 0
        %2169 = vmatpush1.bf16.msra.mxu0 0
        %2170 = vmatprep.subr.bf16.mxu0 0
        %2171 = vmatpush1.bf16.msra.mxu0 0
        %2172 = vmatprep.subr.bf16.mxu0 0
        %2173 = vmatpush1.bf16.msra.mxu0 0
        %2174 = vmatprep.subr.bf16.mxu0 0
        %2175 = vmatpush1.bf16.msra.mxu0 0
        %2176 = vmatprep.mubr.bf16.mxu0 0
        %2177 = vmatmul.mubr.bf16.gmra.mrb[0].mxu0 %v2118
        %v2178 = vpop.f32.mrb[0].mxu0
        %v2179 = vadd.f32 0.0, %v2178
        %v2180 = vpop.f32.mrb[0].mxu0
        %v2181 = vpop.f32.mrb[0].mxu0
        %v2182 = vadd.f32 0.0, %v2181
        %v2183 = vpop.f32.mrb[0].mxu0
        %2184 = vmatprep.mubr.bf16.mxu0 0
        %2185 = vmatmul.mubr.bf16.gmra.mrb[0].mxu0 %v2121
        %v2186 = vpop.f32.mrb[0].mxu0
        %v2187 = vadd.f32 0.0, %v2186
        %v2188 = vpop.f32.mrb[0].mxu0
        %v2189 = vpop.f32.mrb[0].mxu0
        %v2190 = vadd.f32 0.0, %v2189
        %v2191 = vpop.f32.mrb[0].mxu0
        %2192 = vmatprep.mubr.bf16.mxu0 0
        %2193 = vmatmul.mubr.bf16.gmra.mrb[0].mxu0 %v2124
        %v2194 = vpop.f32.mrb[0].mxu0
        %v2195 = vadd.f32 0.0, %v2194
        %v2196 = vpop.f32.mrb[0].mxu0
        %v2197 = vpop.f32.mrb[0].mxu0
        %v2198 = vadd.f32 0.0, %v2197
        %v2199 = vpop.f32.mrb[0].mxu0
        %2200 = vmatprep.mubr.bf16.mxu0 0
        %2201 = vmatmul.mubr.bf16.gmra.mrb[0].mxu0 %v2127
        %v2202 = vpop.f32.mrb[0].mxu0
        %v2203 = vadd.f32 0.0, %v2202
        %v2204 = vpop.f32.mrb[0].mxu0
        %v2205 = vpop.f32.mrb[0].mxu0
        %v2206 = vadd.f32 0.0, %v2205
        %v2207 = vpop.f32.mrb[0].mxu0
        %2208 = vmatprep.mubr.bf16.mxu0 0
        %2209 = vmatmul.mubr.bf16.gmra.mrb[0].mxu0 %v2130
        %v2210 = vpop.f32.mrb[0].mxu0
        %v2211 = vadd.f32 0.0, %v2210
        %v2212 = vpop.f32.mrb[0].mxu0
        %v2213 = vpop.f32.mrb[0].mxu0
        %v2214 = vadd.f32 0.0, %v2213
        %v2215 = vpop.f32.mrb[0].mxu0
        %2216 = vmatprep.mubr.bf16.mxu0 0
        %2217 = vmatmul.mubr.bf16.gmra.mrb[0].mxu0 %v2133
        %v2218 = vpop.f32.mrb[0].mxu0
        %v2219 = vadd.f32 0.0, %v2218
        %v2220 = vpop.f32.mrb[0].mxu0
        %v2221 = vpop.f32.mrb[0].mxu0
        %v2222 = vadd.f32 0.0, %v2221
        %v2223 = vpop.f32.mrb[0].mxu0
        %2224 = vmatprep.mubr.bf16.mxu0 0
        %2225 = vmatmul.mubr.bf16.gmra.mrb[0].mxu0 %v2136
        %v2226 = vpop.f32.mrb[0].mxu0
        %v2227 = vadd.f32 0.0, %v2226
        %v2228 = vpop.f32.mrb[0].mxu0
        %v2229 = vpop.f32.mrb[0].mxu0
        %v2230 = vadd.f32 0.0, %v2229
        %v2231 = vpop.f32.mrb[0].mxu0
        %2232 = vmatprep.mubr.bf16.mxu0 0
        %2233 = vmatmul.mubr.bf16.gmra.mrb[0].mxu0 %v2139
        %v2234 = vpop.f32.mrb[0].mxu0
        %v2235 = vadd.f32 0.0, %v2234
        %v2236 = vpop.f32.mrb[0].mxu0
        %v2237 = vpop.f32.mrb[0].mxu0
        %v2238 = vadd.f32 0.0, %v2237
        %v2239 = vpop.f32.mrb[0].mxu0
        %2240 = vmatprep.mubr.bf16.mxu0 0
        %2241 = vmatmul.mubr.bf16.gmra.mrb[0].mxu0 %v2142
        %v2242 = vpop.f32.mrb[0].mxu0
        %v2243 = vadd.f32 0.0, %v2242
        %v2244 = vpop.f32.mrb[0].mxu0
        %v2245 = vpop.f32.mrb[0].mxu0
        %v2246 = vadd.f32 0.0, %v2245
        %v2247 = vpop.f32.mrb[0].mxu0
        %2248 = vdwg.mxu0
        %v2249 = vpack.c.bf16 %v2182, %v2179
        %v2250 = vpack.c.bf16 %v2190, %v2187
        %v2251 = vpack.c.bf16 %v2198, %v2195
        %v2252 = vpack.c.bf16 %v2206, %v2203
        %v2253 = vpack.c.bf16 %v2214, %v2211
        %v2254 = vpack.c.bf16 %v2222, %v2219
        %v2255 = vpack.c.bf16 %v2230, %v2227
        %v2256 = vpack.c.bf16 %v2238, %v2235
        %v2257 = vpack.c.bf16 %v2246, %v2243
        %v2258 = vld [vmem:[%s7] sm:$0xf]
        %v2259 = vld [vmem:[%s7 + $0x4] sm:$0xf]
        %v2260 = vld [vmem:[%s7 + $0x8] sm:$0xf]
        %v2261 = vld [vmem:[%s7 + $0xc] sm:$0xf]
        %v2262 = vld [vmem:[%s7 + $0x10] sm:$0xf]
        %v2263 = vld [vmem:[%s7 + $0x14] sm:$0xf]
        %v2264 = vld [vmem:[%s7 + $0x18] sm:$0xf]
        %v2265 = vld [vmem:[%s7 + $0x1c] sm:$0xf]
        %s2266 = scalar_lea.vmem %s7, 32
        %v2267 = vld [vmem:[%s2266] sm:$0xf]
        %v2268 = vld [vmem:[%s2266 + $0x4] sm:$0xf]
        %v2269 = vld [vmem:[%s2266 + $0x8] sm:$0xf]
        %v2270 = vld [vmem:[%s2266 + $0xc] sm:$0xf]
        %v2271 = vld [vmem:[%s2266 + $0x10] sm:$0xf]
        %v2272 = vld [vmem:[%s2266 + $0x14] sm:$0xf]
        %v2273 = vld [vmem:[%s2266 + $0x18] sm:$0xf]
        %v2274 = vld [vmem:[%s2266 + $0x1c] sm:$0xf]
        %v2283 = vunpack.c.l.b16 %v2267
        %v2284 = vunpack.c.l.b16 %v2268
        %v2285 = vunpack.c.l.b16 %v2269
        %v2286 = vunpack.c.l.b16 %v2270
        %v2287 = vunpack.c.l.b16 %v2271
        %v2288 = vunpack.c.l.b16 %v2272
        %v2289 = vunpack.c.l.b16 %v2273
        %v2290 = vunpack.c.l.b16 %v2274
        %v2291 = vpack.c.b16 %v2284, %v2283
        %v2292 = vpack.c.b16 %v2286, %v2285
        %v2293 = vpack.c.b16 %v2288, %v2287
        %v2294 = vpack.c.b16 %v2290, %v2289
        %v2300 = vsel %vm811, %v2250, 0
        %2302 = vmatprep.subr.bf16.mxu0 0
        %2303 = vmatpush1.bf16.msra.mxu0 %v2291
        %2304 = vmatprep.subr.bf16.mxu0 0
        %2305 = vmatpush1.bf16.msra.mxu0 %v2292
        %2306 = vmatprep.subr.bf16.mxu0 0
        %2307 = vmatpush1.bf16.msra.mxu0 %v2293
        %2308 = vmatprep.subr.bf16.mxu0 0
        %2309 = vmatpush1.bf16.msra.mxu0 %v2294
        %2310 = vmatprep.subr.bf16.mxu0 0
        %2311 = vmatpush1.bf16.msra.mxu0 0
        %2312 = vmatprep.subr.bf16.mxu0 0
        %2313 = vmatpush1.bf16.msra.mxu0 0
        %2314 = vmatprep.subr.bf16.mxu0 0
        %2315 = vmatpush1.bf16.msra.mxu0 0
        %2316 = vmatprep.subr.bf16.mxu0 0
        %2317 = vmatpush1.bf16.msra.mxu0 0
        %2318 = vmatprep.subr.bf16.mxu0 0
        %2319 = vmatpush1.bf16.msra.mxu0 0
        %2320 = vmatprep.subr.bf16.mxu0 0
        %2321 = vmatpush1.bf16.msra.mxu0 0
        %2322 = vmatprep.subr.bf16.mxu0 0
        %2323 = vmatpush1.bf16.msra.mxu0 0
        %2324 = vmatprep.subr.bf16.mxu0 0
        %2325 = vmatpush1.bf16.msra.mxu0 0
        %2326 = vmatprep.subr.bf16.mxu0 0
        %2327 = vmatpush1.bf16.msra.mxu0 0
        %2328 = vmatprep.subr.bf16.mxu0 0
        %2329 = vmatpush1.bf16.msra.mxu0 0
        %2330 = vmatprep.subr.bf16.mxu0 0
        %2331 = vmatpush1.bf16.msra.mxu0 0
        %2332 = vmatprep.subr.bf16.mxu0 0
        %2333 = vmatpush1.bf16.msra.mxu0 0
        %2334 = vmatprep.mubr.bf16.mxu0 0
        %2335 = vmatmul.mubr.bf16.gmra.mrb[0].mxu0 %v2300
        %v2336 = vpop.f32.mrb[0].mxu0
        %v2337 = vadd.f32 0.0, %v2336
        %v2338 = vpop.f32.mrb[0].mxu0
        %v2339 = vpop.f32.mrb[0].mxu0
        %v2340 = vadd.f32 0.0, %v2339
        %v2341 = vpop.f32.mrb[0].mxu0
        %2342 = vdwg.mxu0
        %v2351 = vunpack.c.l.b16 %v2258
        %v2352 = vunpack.c.l.b16 %v2259
        %v2353 = vunpack.c.l.b16 %v2260
        %v2354 = vunpack.c.l.b16 %v2261
        %v2355 = vunpack.c.l.b16 %v2262
        %v2356 = vunpack.c.l.b16 %v2263
        %v2357 = vunpack.c.l.b16 %v2264
        %v2358 = vunpack.c.l.b16 %v2265
        %v2359 = vpack.c.b16 %v2352, %v2351
        %v2360 = vpack.c.b16 %v2354, %v2353
        %v2361 = vpack.c.b16 %v2356, %v2355
        %v2362 = vpack.c.b16 %v2358, %v2357
        %v2368 = vsel %vm811, %v2249, 0
        %2370 = vmatprep.subr.bf16.mxu0 0
        %2371 = vmatpush1.bf16.msra.mxu0 %v2359
        %2372 = vmatprep.subr.bf16.mxu0 0
        %2373 = vmatpush1.bf16.msra.mxu0 %v2360
        %2374 = vmatprep.subr.bf16.mxu0 0
        %2375 = vmatpush1.bf16.msra.mxu0 %v2361
        %2376 = vmatprep.subr.bf16.mxu0 0
        %2377 = vmatpush1.bf16.msra.mxu0 %v2362
        %2378 = vmatprep.subr.bf16.mxu0 0
        %2379 = vmatpush1.bf16.msra.mxu0 0
        %2380 = vmatprep.subr.bf16.mxu0 0
        %2381 = vmatpush1.bf16.msra.mxu0 0
        %2382 = vmatprep.subr.bf16.mxu0 0
        %2383 = vmatpush1.bf16.msra.mxu0 0
        %2384 = vmatprep.subr.bf16.mxu0 0
        %2385 = vmatpush1.bf16.msra.mxu0 0
        %2386 = vmatprep.subr.bf16.mxu0 0
        %2387 = vmatpush1.bf16.msra.mxu0 0
        %2388 = vmatprep.subr.bf16.mxu0 0
        %2389 = vmatpush1.bf16.msra.mxu0 0
        %2390 = vmatprep.subr.bf16.mxu0 0
        %2391 = vmatpush1.bf16.msra.mxu0 0
        %2392 = vmatprep.subr.bf16.mxu0 0
        %2393 = vmatpush1.bf16.msra.mxu0 0
        %2394 = vmatprep.subr.bf16.mxu0 0
        %2395 = vmatpush1.bf16.msra.mxu0 0
        %2396 = vmatprep.subr.bf16.mxu0 0
        %2397 = vmatpush1.bf16.msra.mxu0 0
        %2398 = vmatprep.subr.bf16.mxu0 0
        %2399 = vmatpush1.bf16.msra.mxu0 0
        %2400 = vmatprep.subr.bf16.mxu0 0
        %2401 = vmatpush1.bf16.msra.mxu0 0
        %2402 = vmatprep.mubr.bf16.mxu0 0
        %2403 = vmatmul.mubr.bf16.gmra.mrb[0].mxu0 %v2368
        %v2404 = vpop.f32.mrb[0].mxu0
        %v2405 = vadd.f32 %v2337, %v2404
        %v2406 = vpop.f32.mrb[0].mxu0
        %v2407 = vpop.f32.mrb[0].mxu0
        %v2408 = vadd.f32 %v2340, %v2407
        %v2409 = vpop.f32.mrb[0].mxu0
        %2410 = vdwg.mxu0
        %s2411 = scalar_lea.vmem %s7, 64
        %v2412 = vld [vmem:[%s2411] sm:$0xf]
        %v2413 = vld [vmem:[%s2411 + $0x4] sm:$0xf]
        %v2414 = vld [vmem:[%s2411 + $0x8] sm:$0xf]
        %v2415 = vld [vmem:[%s2411 + $0xc] sm:$0xf]
        %v2416 = vld [vmem:[%s2411 + $0x10] sm:$0xf]
        %v2417 = vld [vmem:[%s2411 + $0x14] sm:$0xf]
        %v2418 = vld [vmem:[%s2411 + $0x18] sm:$0xf]
        %v2419 = vld [vmem:[%s2411 + $0x1c] sm:$0xf]
        %v2428 = vunpack.c.l.b16 %v2412
        %v2429 = vunpack.c.l.b16 %v2413
        %v2430 = vunpack.c.l.b16 %v2414
        %v2431 = vunpack.c.l.b16 %v2415
        %v2432 = vunpack.c.l.b16 %v2416
        %v2433 = vunpack.c.l.b16 %v2417
        %v2434 = vunpack.c.l.b16 %v2418
        %v2435 = vunpack.c.l.b16 %v2419
        %v2436 = vpack.c.b16 %v2429, %v2428
        %v2437 = vpack.c.b16 %v2431, %v2430
        %v2438 = vpack.c.b16 %v2433, %v2432
        %v2439 = vpack.c.b16 %v2435, %v2434
        %v2445 = vsel %vm811, %v2251, 0
        %2447 = vmatprep.subr.bf16.mxu0 0
        %2448 = vmatpush1.bf16.msra.mxu0 %v2436
        %2449 = vmatprep.subr.bf16.mxu0 0
        %2450 = vmatpush1.bf16.msra.mxu0 %v2437
        %2451 = vmatprep.subr.bf16.mxu0 0
        %2452 = vmatpush1.bf16.msra.mxu0 %v2438
        %2453 = vmatprep.subr.bf16.mxu0 0
        %2454 = vmatpush1.bf16.msra.mxu0 %v2439
        %2455 = vmatprep.subr.bf16.mxu0 0
        %2456 = vmatpush1.bf16.msra.mxu0 0
        %2457 = vmatprep.subr.bf16.mxu0 0
        %2458 = vmatpush1.bf16.msra.mxu0 0
        %2459 = vmatprep.subr.bf16.mxu0 0
        %2460 = vmatpush1.bf16.msra.mxu0 0
        %2461 = vmatprep.subr.bf16.mxu0 0
        %2462 = vmatpush1.bf16.msra.mxu0 0
        %2463 = vmatprep.subr.bf16.mxu0 0
        %2464 = vmatpush1.bf16.msra.mxu0 0
        %2465 = vmatprep.subr.bf16.mxu0 0
        %2466 = vmatpush1.bf16.msra.mxu0 0
        %2467 = vmatprep.subr.bf16.mxu0 0
        %2468 = vmatpush1.bf16.msra.mxu0 0
        %2469 = vmatprep.subr.bf16.mxu0 0
        %2470 = vmatpush1.bf16.msra.mxu0 0
        %2471 = vmatprep.subr.bf16.mxu0 0
        %2472 = vmatpush1.bf16.msra.mxu0 0
        %2473 = vmatprep.subr.bf16.mxu0 0
        %2474 = vmatpush1.bf16.msra.mxu0 0
        %2475 = vmatprep.subr.bf16.mxu0 0
        %2476 = vmatpush1.bf16.msra.mxu0 0
        %2477 = vmatprep.subr.bf16.mxu0 0
        %2478 = vmatpush1.bf16.msra.mxu0 0
        %2479 = vmatprep.mubr.bf16.mxu0 0
        %2480 = vmatmul.mubr.bf16.gmra.mrb[0].mxu0 %v2445
        %v2481 = vpop.f32.mrb[0].mxu0
        %v2482 = vadd.f32 0.0, %v2481
        %v2483 = vpop.f32.mrb[0].mxu0
        %v2484 = vpop.f32.mrb[0].mxu0
        %v2485 = vadd.f32 0.0, %v2484
        %v2486 = vpop.f32.mrb[0].mxu0
        %2487 = vdwg.mxu0
        %v2488 = vadd.f32 %v2405, %v2482
        %v2489 = vadd.f32 %v2408, %v2485
        %s2490 = scalar_lea.vmem %s7, 96
        %v2491 = vld [vmem:[%s2490] sm:$0xf]
        %v2492 = vld [vmem:[%s2490 + $0x4] sm:$0xf]
        %v2493 = vld [vmem:[%s2490 + $0x8] sm:$0xf]
        %v2494 = vld [vmem:[%s2490 + $0xc] sm:$0xf]
        %v2495 = vld [vmem:[%s2490 + $0x10] sm:$0xf]
        %v2496 = vld [vmem:[%s2490 + $0x14] sm:$0xf]
        %v2497 = vld [vmem:[%s2490 + $0x18] sm:$0xf]
        %v2498 = vld [vmem:[%s2490 + $0x1c] sm:$0xf]
        %v2507 = vunpack.c.l.b16 %v2491
        %v2508 = vunpack.c.l.b16 %v2492
        %v2509 = vunpack.c.l.b16 %v2493
        %v2510 = vunpack.c.l.b16 %v2494
        %v2511 = vunpack.c.l.b16 %v2495
        %v2512 = vunpack.c.l.b16 %v2496
        %v2513 = vunpack.c.l.b16 %v2497
        %v2514 = vunpack.c.l.b16 %v2498
        %v2515 = vpack.c.b16 %v2508, %v2507
        %v2516 = vpack.c.b16 %v2510, %v2509
        %v2517 = vpack.c.b16 %v2512, %v2511
        %v2518 = vpack.c.b16 %v2514, %v2513
        %v2524 = vsel %vm811, %v2252, 0
        %2526 = vmatprep.subr.bf16.mxu0 0
        %2527 = vmatpush1.bf16.msra.mxu0 %v2515
        %2528 = vmatprep.subr.bf16.mxu0 0
        %2529 = vmatpush1.bf16.msra.mxu0 %v2516
        %2530 = vmatprep.subr.bf16.mxu0 0
        %2531 = vmatpush1.bf16.msra.mxu0 %v2517
        %2532 = vmatprep.subr.bf16.mxu0 0
        %2533 = vmatpush1.bf16.msra.mxu0 %v2518
        %2534 = vmatprep.subr.bf16.mxu0 0
        %2535 = vmatpush1.bf16.msra.mxu0 0
        %2536 = vmatprep.subr.bf16.mxu0 0
        %2537 = vmatpush1.bf16.msra.mxu0 0
        %2538 = vmatprep.subr.bf16.mxu0 0
        %2539 = vmatpush1.bf16.msra.mxu0 0
        %2540 = vmatprep.subr.bf16.mxu0 0
        %2541 = vmatpush1.bf16.msra.mxu0 0
        %2542 = vmatprep.subr.bf16.mxu0 0
        %2543 = vmatpush1.bf16.msra.mxu0 0
        %2544 = vmatprep.subr.bf16.mxu0 0
        %2545 = vmatpush1.bf16.msra.mxu0 0
        %2546 = vmatprep.subr.bf16.mxu0 0
        %2547 = vmatpush1.bf16.msra.mxu0 0
        %2548 = vmatprep.subr.bf16.mxu0 0
        %2549 = vmatpush1.bf16.msra.mxu0 0
        %2550 = vmatprep.subr.bf16.mxu0 0
        %2551 = vmatpush1.bf16.msra.mxu0 0
        %2552 = vmatprep.subr.bf16.mxu0 0
        %2553 = vmatpush1.bf16.msra.mxu0 0
        %2554 = vmatprep.subr.bf16.mxu0 0
        %2555 = vmatpush1.bf16.msra.mxu0 0
        %2556 = vmatprep.subr.bf16.mxu0 0
        %2557 = vmatpush1.bf16.msra.mxu0 0
        %2558 = vmatprep.mubr.bf16.mxu0 0
        %2559 = vmatmul.mubr.bf16.gmra.mrb[0].mxu0 %v2524
        %v2560 = vpop.f32.mrb[0].mxu0
        %v2561 = vadd.f32 0.0, %v2560
        %v2562 = vpop.f32.mrb[0].mxu0
        %v2563 = vpop.f32.mrb[0].mxu0
        %v2564 = vadd.f32 0.0, %v2563
        %v2565 = vpop.f32.mrb[0].mxu0
        %2566 = vdwg.mxu0
        %v2567 = vadd.f32 %v2488, %v2561
        %v2568 = vadd.f32 %v2489, %v2564
        %s2569 = scalar_lea.vmem %s7, 128
        %v2570 = vld [vmem:[%s2569] sm:$0xf]
        %v2571 = vld [vmem:[%s2569 + $0x4] sm:$0xf]
        %v2572 = vld [vmem:[%s2569 + $0x8] sm:$0xf]
        %v2573 = vld [vmem:[%s2569 + $0xc] sm:$0xf]
        %v2574 = vld [vmem:[%s2569 + $0x10] sm:$0xf]
        %v2575 = vld [vmem:[%s2569 + $0x14] sm:$0xf]
        %v2576 = vld [vmem:[%s2569 + $0x18] sm:$0xf]
        %v2577 = vld [vmem:[%s2569 + $0x1c] sm:$0xf]
        %v2586 = vunpack.c.l.b16 %v2570
        %v2587 = vunpack.c.l.b16 %v2571
        %v2588 = vunpack.c.l.b16 %v2572
        %v2589 = vunpack.c.l.b16 %v2573
        %v2590 = vunpack.c.l.b16 %v2574
        %v2591 = vunpack.c.l.b16 %v2575
        %v2592 = vunpack.c.l.b16 %v2576
        %v2593 = vunpack.c.l.b16 %v2577
        %v2594 = vpack.c.b16 %v2587, %v2586
        %v2595 = vpack.c.b16 %v2589, %v2588
        %v2596 = vpack.c.b16 %v2591, %v2590
        %v2597 = vpack.c.b16 %v2593, %v2592
        %v2603 = vsel %vm811, %v2253, 0
        %2605 = vmatprep.subr.bf16.mxu0 0
        %2606 = vmatpush1.bf16.msra.mxu0 %v2594
        %2607 = vmatprep.subr.bf16.mxu0 0
        %2608 = vmatpush1.bf16.msra.mxu0 %v2595
        %2609 = vmatprep.subr.bf16.mxu0 0
        %2610 = vmatpush1.bf16.msra.mxu0 %v2596
        %2611 = vmatprep.subr.bf16.mxu0 0
        %2612 = vmatpush1.bf16.msra.mxu0 %v2597
        %2613 = vmatprep.subr.bf16.mxu0 0
        %2614 = vmatpush1.bf16.msra.mxu0 0
        %2615 = vmatprep.subr.bf16.mxu0 0
        %2616 = vmatpush1.bf16.msra.mxu0 0
        %2617 = vmatprep.subr.bf16.mxu0 0
        %2618 = vmatpush1.bf16.msra.mxu0 0
        %2619 = vmatprep.subr.bf16.mxu0 0
        %2620 = vmatpush1.bf16.msra.mxu0 0
        %2621 = vmatprep.subr.bf16.mxu0 0
        %2622 = vmatpush1.bf16.msra.mxu0 0
        %2623 = vmatprep.subr.bf16.mxu0 0
        %2624 = vmatpush1.bf16.msra.mxu0 0
        %2625 = vmatprep.subr.bf16.mxu0 0
        %2626 = vmatpush1.bf16.msra.mxu0 0
        %2627 = vmatprep.subr.bf16.mxu0 0
        %2628 = vmatpush1.bf16.msra.mxu0 0
        %2629 = vmatprep.subr.bf16.mxu0 0
        %2630 = vmatpush1.bf16.msra.mxu0 0
        %2631 = vmatprep.subr.bf16.mxu0 0
        %2632 = vmatpush1.bf16.msra.mxu0 0
        %2633 = vmatprep.subr.bf16.mxu0 0
        %2634 = vmatpush1.bf16.msra.mxu0 0
        %2635 = vmatprep.subr.bf16.mxu0 0
        %2636 = vmatpush1.bf16.msra.mxu0 0
        %2637 = vmatprep.mubr.bf16.mxu0 0
        %2638 = vmatmul.mubr.bf16.gmra.mrb[0].mxu0 %v2603
        %v2639 = vpop.f32.mrb[0].mxu0
        %v2640 = vadd.f32 0.0, %v2639
        %v2641 = vpop.f32.mrb[0].mxu0
        %v2642 = vpop.f32.mrb[0].mxu0
        %v2643 = vadd.f32 0.0, %v2642
        %v2644 = vpop.f32.mrb[0].mxu0
        %2645 = vdwg.mxu0
        %v2646 = vadd.f32 %v2567, %v2640
        %v2647 = vadd.f32 %v2568, %v2643
        %s2648 = scalar_lea.vmem %s7, 160
        %v2649 = vld [vmem:[%s2648] sm:$0xf]
        %v2650 = vld [vmem:[%s2648 + $0x4] sm:$0xf]
        %v2651 = vld [vmem:[%s2648 + $0x8] sm:$0xf]
        %v2652 = vld [vmem:[%s2648 + $0xc] sm:$0xf]
        %v2653 = vld [vmem:[%s2648 + $0x10] sm:$0xf]
        %v2654 = vld [vmem:[%s2648 + $0x14] sm:$0xf]
        %v2655 = vld [vmem:[%s2648 + $0x18] sm:$0xf]
        %v2656 = vld [vmem:[%s2648 + $0x1c] sm:$0xf]
        %v2665 = vunpack.c.l.b16 %v2649
        %v2666 = vunpack.c.l.b16 %v2650
        %v2667 = vunpack.c.l.b16 %v2651
        %v2668 = vunpack.c.l.b16 %v2652
        %v2669 = vunpack.c.l.b16 %v2653
        %v2670 = vunpack.c.l.b16 %v2654
        %v2671 = vunpack.c.l.b16 %v2655
        %v2672 = vunpack.c.l.b16 %v2656
        %v2673 = vpack.c.b16 %v2666, %v2665
        %v2674 = vpack.c.b16 %v2668, %v2667
        %v2675 = vpack.c.b16 %v2670, %v2669
        %v2676 = vpack.c.b16 %v2672, %v2671
        %v2682 = vsel %vm811, %v2254, 0
        %2684 = vmatprep.subr.bf16.mxu0 0
        %2685 = vmatpush1.bf16.msra.mxu0 %v2673
        %2686 = vmatprep.subr.bf16.mxu0 0
        %2687 = vmatpush1.bf16.msra.mxu0 %v2674
        %2688 = vmatprep.subr.bf16.mxu0 0
        %2689 = vmatpush1.bf16.msra.mxu0 %v2675
        %2690 = vmatprep.subr.bf16.mxu0 0
        %2691 = vmatpush1.bf16.msra.mxu0 %v2676
        %2692 = vmatprep.subr.bf16.mxu0 0
        %2693 = vmatpush1.bf16.msra.mxu0 0
        %2694 = vmatprep.subr.bf16.mxu0 0
        %2695 = vmatpush1.bf16.msra.mxu0 0
        %2696 = vmatprep.subr.bf16.mxu0 0
        %2697 = vmatpush1.bf16.msra.mxu0 0
        %2698 = vmatprep.subr.bf16.mxu0 0
        %2699 = vmatpush1.bf16.msra.mxu0 0
        %2700 = vmatprep.subr.bf16.mxu0 0
        %2701 = vmatpush1.bf16.msra.mxu0 0
        %2702 = vmatprep.subr.bf16.mxu0 0
        %2703 = vmatpush1.bf16.msra.mxu0 0
        %2704 = vmatprep.subr.bf16.mxu0 0
        %2705 = vmatpush1.bf16.msra.mxu0 0
        %2706 = vmatprep.subr.bf16.mxu0 0
        %2707 = vmatpush1.bf16.msra.mxu0 0
        %2708 = vmatprep.subr.bf16.mxu0 0
        %2709 = vmatpush1.bf16.msra.mxu0 0
        %2710 = vmatprep.subr.bf16.mxu0 0
        %2711 = vmatpush1.bf16.msra.mxu0 0
        %2712 = vmatprep.subr.bf16.mxu0 0
        %2713 = vmatpush1.bf16.msra.mxu0 0
        %2714 = vmatprep.subr.bf16.mxu0 0
        %2715 = vmatpush1.bf16.msra.mxu0 0
        %2716 = vmatprep.mubr.bf16.mxu0 0
        %2717 = vmatmul.mubr.bf16.gmra.mrb[0].mxu0 %v2682
        %v2718 = vpop.f32.mrb[0].mxu0
        %v2719 = vadd.f32 0.0, %v2718
        %v2720 = vpop.f32.mrb[0].mxu0
        %v2721 = vpop.f32.mrb[0].mxu0
        %v2722 = vadd.f32 0.0, %v2721
        %v2723 = vpop.f32.mrb[0].mxu0
        %2724 = vdwg.mxu0
        %v2725 = vadd.f32 %v2646, %v2719
        %v2726 = vadd.f32 %v2647, %v2722
        %s2727 = scalar_lea.vmem %s7, 192
        %v2728 = vld [vmem:[%s2727] sm:$0xf]
        %v2729 = vld [vmem:[%s2727 + $0x4] sm:$0xf]
        %v2730 = vld [vmem:[%s2727 + $0x8] sm:$0xf]
        %v2731 = vld [vmem:[%s2727 + $0xc] sm:$0xf]
        %v2732 = vld [vmem:[%s2727 + $0x10] sm:$0xf]
        %v2733 = vld [vmem:[%s2727 + $0x14] sm:$0xf]
        %v2734 = vld [vmem:[%s2727 + $0x18] sm:$0xf]
        %v2735 = vld [vmem:[%s2727 + $0x1c] sm:$0xf]
        %v2744 = vunpack.c.l.b16 %v2728
        %v2745 = vunpack.c.l.b16 %v2729
        %v2746 = vunpack.c.l.b16 %v2730
        %v2747 = vunpack.c.l.b16 %v2731
        %v2748 = vunpack.c.l.b16 %v2732
        %v2749 = vunpack.c.l.b16 %v2733
        %v2750 = vunpack.c.l.b16 %v2734
        %v2751 = vunpack.c.l.b16 %v2735
        %v2752 = vpack.c.b16 %v2745, %v2744
        %v2753 = vpack.c.b16 %v2747, %v2746
        %v2754 = vpack.c.b16 %v2749, %v2748
        %v2755 = vpack.c.b16 %v2751, %v2750
        %v2761 = vsel %vm811, %v2255, 0
        %2763 = vmatprep.subr.bf16.mxu0 0
        %2764 = vmatpush1.bf16.msra.mxu0 %v2752
        %2765 = vmatprep.subr.bf16.mxu0 0
        %2766 = vmatpush1.bf16.msra.mxu0 %v2753
        %2767 = vmatprep.subr.bf16.mxu0 0
        %2768 = vmatpush1.bf16.msra.mxu0 %v2754
        %2769 = vmatprep.subr.bf16.mxu0 0
        %2770 = vmatpush1.bf16.msra.mxu0 %v2755
        %2771 = vmatprep.subr.bf16.mxu0 0
        %2772 = vmatpush1.bf16.msra.mxu0 0
        %2773 = vmatprep.subr.bf16.mxu0 0
        %2774 = vmatpush1.bf16.msra.mxu0 0
        %2775 = vmatprep.subr.bf16.mxu0 0
        %2776 = vmatpush1.bf16.msra.mxu0 0
        %2777 = vmatprep.subr.bf16.mxu0 0
        %2778 = vmatpush1.bf16.msra.mxu0 0
        %2779 = vmatprep.subr.bf16.mxu0 0
        %2780 = vmatpush1.bf16.msra.mxu0 0
        %2781 = vmatprep.subr.bf16.mxu0 0
        %2782 = vmatpush1.bf16.msra.mxu0 0
        %2783 = vmatprep.subr.bf16.mxu0 0
        %2784 = vmatpush1.bf16.msra.mxu0 0
        %2785 = vmatprep.subr.bf16.mxu0 0
        %2786 = vmatpush1.bf16.msra.mxu0 0
        %2787 = vmatprep.subr.bf16.mxu0 0
        %2788 = vmatpush1.bf16.msra.mxu0 0
        %2789 = vmatprep.subr.bf16.mxu0 0
        %2790 = vmatpush1.bf16.msra.mxu0 0
        %2791 = vmatprep.subr.bf16.mxu0 0
        %2792 = vmatpush1.bf16.msra.mxu0 0
        %2793 = vmatprep.subr.bf16.mxu0 0
        %2794 = vmatpush1.bf16.msra.mxu0 0
        %2795 = vmatprep.mubr.bf16.mxu0 0
        %2796 = vmatmul.mubr.bf16.gmra.mrb[0].mxu0 %v2761
        %v2797 = vpop.f32.mrb[0].mxu0
        %v2798 = vadd.f32 0.0, %v2797
        %v2799 = vpop.f32.mrb[0].mxu0
        %v2800 = vpop.f32.mrb[0].mxu0
        %v2801 = vadd.f32 0.0, %v2800
        %v2802 = vpop.f32.mrb[0].mxu0
        %2803 = vdwg.mxu0
        %v2804 = vadd.f32 %v2725, %v2798
        %v2805 = vadd.f32 %v2726, %v2801
        %s2806 = scalar_lea.vmem %s7, 224
        %v2807 = vld [vmem:[%s2806] sm:$0xf]
        %v2808 = vld [vmem:[%s2806 + $0x4] sm:$0xf]
        %v2809 = vld [vmem:[%s2806 + $0x8] sm:$0xf]
        %v2810 = vld [vmem:[%s2806 + $0xc] sm:$0xf]
        %v2811 = vld [vmem:[%s2806 + $0x10] sm:$0xf]
        %v2812 = vld [vmem:[%s2806 + $0x14] sm:$0xf]
        %v2813 = vld [vmem:[%s2806 + $0x18] sm:$0xf]
        %v2814 = vld [vmem:[%s2806 + $0x1c] sm:$0xf]
        %v2823 = vunpack.c.l.b16 %v2807
        %v2824 = vunpack.c.l.b16 %v2808
        %v2825 = vunpack.c.l.b16 %v2809
        %v2826 = vunpack.c.l.b16 %v2810
        %v2827 = vunpack.c.l.b16 %v2811
        %v2828 = vunpack.c.l.b16 %v2812
        %v2829 = vunpack.c.l.b16 %v2813
        %v2830 = vunpack.c.l.b16 %v2814
        %v2831 = vpack.c.b16 %v2824, %v2823
        %v2832 = vpack.c.b16 %v2826, %v2825
        %v2833 = vpack.c.b16 %v2828, %v2827
        %v2834 = vpack.c.b16 %v2830, %v2829
        %v2840 = vsel %vm811, %v2256, 0
        %2842 = vmatprep.subr.bf16.mxu0 0
        %2843 = vmatpush1.bf16.msra.mxu0 %v2831
        %2844 = vmatprep.subr.bf16.mxu0 0
        %2845 = vmatpush1.bf16.msra.mxu0 %v2832
        %2846 = vmatprep.subr.bf16.mxu0 0
        %2847 = vmatpush1.bf16.msra.mxu0 %v2833
        %2848 = vmatprep.subr.bf16.mxu0 0
        %2849 = vmatpush1.bf16.msra.mxu0 %v2834
        %2850 = vmatprep.subr.bf16.mxu0 0
        %2851 = vmatpush1.bf16.msra.mxu0 0
        %2852 = vmatprep.subr.bf16.mxu0 0
        %2853 = vmatpush1.bf16.msra.mxu0 0
        %2854 = vmatprep.subr.bf16.mxu0 0
        %2855 = vmatpush1.bf16.msra.mxu0 0
        %2856 = vmatprep.subr.bf16.mxu0 0
        %2857 = vmatpush1.bf16.msra.mxu0 0
        %2858 = vmatprep.subr.bf16.mxu0 0
        %2859 = vmatpush1.bf16.msra.mxu0 0
        %2860 = vmatprep.subr.bf16.mxu0 0
        %2861 = vmatpush1.bf16.msra.mxu0 0
        %2862 = vmatprep.subr.bf16.mxu0 0
        %2863 = vmatpush1.bf16.msra.mxu0 0
        %2864 = vmatprep.subr.bf16.mxu0 0
        %2865 = vmatpush1.bf16.msra.mxu0 0
        %2866 = vmatprep.subr.bf16.mxu0 0
        %2867 = vmatpush1.bf16.msra.mxu0 0
        %2868 = vmatprep.subr.bf16.mxu0 0
        %2869 = vmatpush1.bf16.msra.mxu0 0
        %2870 = vmatprep.subr.bf16.mxu0 0
        %2871 = vmatpush1.bf16.msra.mxu0 0
        %2872 = vmatprep.subr.bf16.mxu0 0
        %2873 = vmatpush1.bf16.msra.mxu0 0
        %2874 = vmatprep.mubr.bf16.mxu0 0
        %2875 = vmatmul.mubr.bf16.gmra.mrb[0].mxu0 %v2840
        %v2876 = vpop.f32.mrb[0].mxu0
        %v2877 = vadd.f32 0.0, %v2876
        %v2878 = vpop.f32.mrb[0].mxu0
        %v2879 = vpop.f32.mrb[0].mxu0
        %v2880 = vadd.f32 0.0, %v2879
        %v2881 = vpop.f32.mrb[0].mxu0
        %2882 = vdwg.mxu0
        %v2883 = vadd.f32 %v2804, %v2877
        %v2884 = vadd.f32 %v2805, %v2880
        %s2885 = scalar_lea.vmem %s7, 256
        %v2886 = vld [vmem:[%s2885] sm:$0xf]
        %v2887 = vld [vmem:[%s2885 + $0x4] sm:$0xf]
        %v2888 = vld [vmem:[%s2885 + $0x8] sm:$0xf]
        %v2889 = vld [vmem:[%s2885 + $0xc] sm:$0xf]
        %v2890 = vld [vmem:[%s2885 + $0x10] sm:$0xf]
        %v2891 = vld [vmem:[%s2885 + $0x14] sm:$0xf]
        %v2892 = vld [vmem:[%s2885 + $0x18] sm:$0xf]
        %v2893 = vld [vmem:[%s2885 + $0x1c] sm:$0xf]
        %v2902 = vunpack.c.l.b16 %v2886
        %v2903 = vunpack.c.l.b16 %v2887
        %v2904 = vunpack.c.l.b16 %v2888
        %v2905 = vunpack.c.l.b16 %v2889
        %v2906 = vunpack.c.l.b16 %v2890
        %v2907 = vunpack.c.l.b16 %v2891
        %v2908 = vunpack.c.l.b16 %v2892
        %v2909 = vunpack.c.l.b16 %v2893
        %v2910 = vpack.c.b16 %v2903, %v2902
        %v2911 = vpack.c.b16 %v2905, %v2904
        %v2912 = vpack.c.b16 %v2907, %v2906
        %v2913 = vpack.c.b16 %v2909, %v2908
        %v2919 = vsel %vm811, %v2257, 0
        %2921 = vmatprep.subr.bf16.mxu0 0
        %2922 = vmatpush1.bf16.msra.mxu0 %v2910
        %2923 = vmatprep.subr.bf16.mxu0 0
        %2924 = vmatpush1.bf16.msra.mxu0 %v2911
        %2925 = vmatprep.subr.bf16.mxu0 0
        %2926 = vmatpush1.bf16.msra.mxu0 %v2912
        %2927 = vmatprep.subr.bf16.mxu0 0
        %2928 = vmatpush1.bf16.msra.mxu0 %v2913
        %2929 = vmatprep.subr.bf16.mxu0 0
        %2930 = vmatpush1.bf16.msra.mxu0 0
        %2931 = vmatprep.subr.bf16.mxu0 0
        %2932 = vmatpush1.bf16.msra.mxu0 0
        %2933 = vmatprep.subr.bf16.mxu0 0
        %2934 = vmatpush1.bf16.msra.mxu0 0
        %2935 = vmatprep.subr.bf16.mxu0 0
        %2936 = vmatpush1.bf16.msra.mxu0 0
        %2937 = vmatprep.subr.bf16.mxu0 0
        %2938 = vmatpush1.bf16.msra.mxu0 0
        %2939 = vmatprep.subr.bf16.mxu0 0
        %2940 = vmatpush1.bf16.msra.mxu0 0
        %2941 = vmatprep.subr.bf16.mxu0 0
        %2942 = vmatpush1.bf16.msra.mxu0 0
        %2943 = vmatprep.subr.bf16.mxu0 0
        %2944 = vmatpush1.bf16.msra.mxu0 0
        %2945 = vmatprep.subr.bf16.mxu0 0
        %2946 = vmatpush1.bf16.msra.mxu0 0
        %2947 = vmatprep.subr.bf16.mxu0 0
        %2948 = vmatpush1.bf16.msra.mxu0 0
        %2949 = vmatprep.subr.bf16.mxu0 0
        %2950 = vmatpush1.bf16.msra.mxu0 0
        %2951 = vmatprep.subr.bf16.mxu0 0
        %2952 = vmatpush1.bf16.msra.mxu0 0
        %2953 = vmatprep.mubr.bf16.mxu0 0
        %2954 = vmatmul.mubr.bf16.gmra.mrb[0].mxu0 %v2919
        %v2955 = vpop.f32.mrb[0].mxu0
        %v2956 = vadd.f32 0.0, %v2955
        %v2957 = vpop.f32.mrb[0].mxu0
        %v2958 = vpop.f32.mrb[0].mxu0
        %v2959 = vadd.f32 0.0, %v2958
        %v2960 = vpop.f32.mrb[0].mxu0
        %2961 = vdwg.mxu0
        %v2962 = vadd.f32 %v2883, %v2956
        %v2963 = vadd.f32 %v2884, %v2959
        %v2964 = vld [vmem:[%s8] sm:$0x1]
        %v2966 = vlaneseq
        %v2967 = vshrl.u32 %v2966, 7
        %v2968 = vsub.s32 0, %v2967
        %v2969 = vrot.slane %v2964, %v2968
        %v2971 = vadd.f32 %v2962, %v2969
        %v2972 = vadd.f32 %v2963, %v2969
        %v2973 = vmax.f32 %v2971, 0.0
        %v2974 = vmax.f32 %v2972, 0.0
        %v2975 = vpack.c.bf16 %v2974, %v2973
        %v2976 = vld [vmem:[%s9] sm:$0xff]
        %v2977 = vld [vmem:[%s9 + $0x8] sm:$0xff]
        %v2978 = vld [vmem:[%s9 + $0x10] sm:$0xff]
        %v2979 = vld [vmem:[%s9 + $0x18] sm:$0xff]
        %v2980 = vld [vmem:[%s9 + $0x20] sm:$0xff]
        %v2981 = vld [vmem:[%s9 + $0x28] sm:$0xff]
        %v2982 = vld [vmem:[%s9 + $0x30] sm:$0xff]
        %v2983 = vld [vmem:[%s9 + $0x38] sm:$0xff]
        %v2984 = vld [vmem:[%s9 + $0x40] sm:$0xff]
        %v2985 = vld [vmem:[%s9 + $0x48] sm:$0xff]
        %v2986 = vld [vmem:[%s9 + $0x50] sm:$0xff]
        %v2987 = vld [vmem:[%s9 + $0x58] sm:$0xff]
        %v2988 = vld [vmem:[%s9 + $0x60] sm:$0xff]
        %v2989 = vld [vmem:[%s9 + $0x68] sm:$0xff]
        %v2990 = vld [vmem:[%s9 + $0x70] sm:$0xff]
        %v2991 = vld [vmem:[%s9 + $0x78] sm:$0xff]
        %v2992 = vld [vmem:[%s10] sm:$0xf]
        %v3009 = vunpack.c.l.b16 %v2976
        %v3010 = vunpack.c.h.b16 %v2976
        %v3011 = vunpack.c.l.b16 %v2977
        %v3012 = vunpack.c.h.b16 %v2977
        %v3013 = vunpack.c.l.b16 %v2978
        %v3014 = vunpack.c.h.b16 %v2978
        %v3015 = vunpack.c.l.b16 %v2979
        %v3016 = vunpack.c.h.b16 %v2979
        %v3017 = vunpack.c.l.b16 %v2980
        %v3018 = vunpack.c.h.b16 %v2980
        %v3019 = vunpack.c.l.b16 %v2981
        %v3020 = vunpack.c.h.b16 %v2981
        %v3021 = vunpack.c.l.b16 %v2982
        %v3022 = vunpack.c.h.b16 %v2982
        %v3023 = vunpack.c.l.b16 %v2983
        %v3024 = vunpack.c.h.b16 %v2983
        %v3025 = vunpack.c.l.b16 %v2984
        %v3026 = vunpack.c.h.b16 %v2984
        %v3027 = vunpack.c.l.b16 %v2985
        %v3028 = vunpack.c.h.b16 %v2985
        %v3029 = vunpack.c.l.b16 %v2986
        %v3030 = vunpack.c.h.b16 %v2986
        %v3031 = vunpack.c.l.b16 %v2987
        %v3032 = vunpack.c.h.b16 %v2987
        %v3033 = vunpack.c.l.b16 %v2988
        %v3034 = vunpack.c.h.b16 %v2988
        %v3035 = vunpack.c.l.b16 %v2989
        %v3036 = vunpack.c.h.b16 %v2989
        %v3037 = vunpack.c.l.b16 %v2990
        %v3038 = vunpack.c.h.b16 %v2990
        %v3039 = vunpack.c.l.b16 %v2991
        %v3040 = vunpack.c.h.b16 %v2991
        %v3041 = vpack.c.b16 %v3013, %v3009
        %v3042 = vpack.c.b16 %v3014, %v3010
        %v3043 = vpack.c.b16 %v3015, %v3011
        %v3044 = vpack.c.b16 %v3016, %v3012
        %v3045 = vpack.c.b16 %v3021, %v3017
        %v3046 = vpack.c.b16 %v3022, %v3018
        %v3047 = vpack.c.b16 %v3023, %v3019
        %v3048 = vpack.c.b16 %v3024, %v3020
        %v3049 = vpack.c.b16 %v3029, %v3025
        %v3050 = vpack.c.b16 %v3030, %v3026
        %v3051 = vpack.c.b16 %v3031, %v3027
        %v3052 = vpack.c.b16 %v3032, %v3028
        %v3053 = vpack.c.b16 %v3037, %v3033
        %v3054 = vpack.c.b16 %v3038, %v3034
        %v3055 = vpack.c.b16 %v3039, %v3035
        %v3056 = vpack.c.b16 %v3040, %v3036
        %v3074 = vlaneseq
        %v3075 = vshrl.u32 %v3074, 7
        %v3076 = vsub.s32 0, %v3075
        %v3077 = vrot.slane %v2992, %v3076
        %v3078 = vlaneseq
        %v3079 = vshrl.u32 %v3078, 7
        %v3080 = vsub.s32 1, %v3079
        %v3081 = vrot.slane %v2992, %v3080
        %v3082 = vlaneseq
        %v3083 = vshrl.u32 %v3082, 7
        %v3084 = vsub.s32 2, %v3083
        %v3085 = vrot.slane %v2992, %v3084
        %v3086 = vlaneseq
        %v3087 = vshrl.u32 %v3086, 7
        %v3088 = vsub.s32 3, %v3087
        %v3089 = vrot.slane %v2992, %v3088
        %v3095 = vsel %vm811, %v2975, 0
        %3097 = vmatprep.subr.bf16.mxu0 %v3042
        %3098 = vmatpush1.bf16.msra.mxu0 %v3041
        %3099 = vmatprep.subr.bf16.mxu0 %v3046
        %3100 = vmatpush1.bf16.msra.mxu0 %v3045
        %3101 = vmatprep.subr.bf16.mxu0 %v3050
        %3102 = vmatpush1.bf16.msra.mxu0 %v3049
        %3103 = vmatprep.subr.bf16.mxu0 %v3054
        %3104 = vmatpush1.bf16.msra.mxu0 %v3053
        %3105 = vmatprep.subr.bf16.mxu0 0
        %3106 = vmatpush1.bf16.msra.mxu0 0
        %3107 = vmatprep.subr.bf16.mxu0 0
        %3108 = vmatpush1.bf16.msra.mxu0 0
        %3109 = vmatprep.subr.bf16.mxu0 0
        %3110 = vmatpush1.bf16.msra.mxu0 0
        %3111 = vmatprep.subr.bf16.mxu0 0
        %3112 = vmatpush1.bf16.msra.mxu0 0
        %3113 = vmatprep.subr.bf16.mxu0 0
        %3114 = vmatpush1.bf16.msra.mxu0 0
        %3115 = vmatprep.subr.bf16.mxu0 0
        %3116 = vmatpush1.bf16.msra.mxu0 0
        %3117 = vmatprep.subr.bf16.mxu0 0
        %3118 = vmatpush1.bf16.msra.mxu0 0
        %3119 = vmatprep.subr.bf16.mxu0 0
        %3120 = vmatpush1.bf16.msra.mxu0 0
        %3121 = vmatprep.subr.bf16.mxu0 0
        %3122 = vmatpush1.bf16.msra.mxu0 0
        %3123 = vmatprep.subr.bf16.mxu0 0
        %3124 = vmatpush1.bf16.msra.mxu0 0
        %3125 = vmatprep.subr.bf16.mxu0 0
        %3126 = vmatpush1.bf16.msra.mxu0 0
        %3127 = vmatprep.subr.bf16.mxu0 0
        %3128 = vmatpush1.bf16.msra.mxu0 0
        %3129 = vmatprep.mubr.bf16.mxu0 0
        %3130 = vmatmul.mubr.bf16.gmra.mrb[0].mxu0 %v3095
        %v3131 = vpop.f32.mrb[0].mxu0
        %v3132 = vadd.f32 %v3077, %v3131
        %v3133 = vpop.f32.mrb[0].mxu0
        %v3134 = vadd.f32 %v3081, %v3133
        %v3135 = vpop.f32.mrb[0].mxu0
        %v3136 = vpop.f32.mrb[0].mxu0
        %3137 = vdwg.mxu0
        %3138 = vmatprep.subr.bf16.mxu0 %v3044
        %3139 = vmatpush1.bf16.msra.mxu0 %v3043
        %3140 = vmatprep.subr.bf16.mxu0 %v3048
        %3141 = vmatpush1.bf16.msra.mxu0 %v3047
        %3142 = vmatprep.subr.bf16.mxu0 %v3052
        %3143 = vmatpush1.bf16.msra.mxu0 %v3051
        %3144 = vmatprep.subr.bf16.mxu0 %v3056
        %3145 = vmatpush1.bf16.msra.mxu0 %v3055
        %3146 = vmatprep.subr.bf16.mxu0 0
        %3147 = vmatpush1.bf16.msra.mxu0 0
        %3148 = vmatprep.subr.bf16.mxu0 0
        %3149 = vmatpush1.bf16.msra.mxu0 0
        %3150 = vmatprep.subr.bf16.mxu0 0
        %3151 = vmatpush1.bf16.msra.mxu0 0
        %3152 = vmatprep.subr.bf16.mxu0 0
        %3153 = vmatpush1.bf16.msra.mxu0 0
        %3154 = vmatprep.subr.bf16.mxu0 0
        %3155 = vmatpush1.bf16.msra.mxu0 0
        %3156 = vmatprep.subr.bf16.mxu0 0
        %3157 = vmatpush1.bf16.msra.mxu0 0
        %3158 = vmatprep.subr.bf16.mxu0 0
        %3159 = vmatpush1.bf16.msra.mxu0 0
        %3160 = vmatprep.subr.bf16.mxu0 0
        %3161 = vmatpush1.bf16.msra.mxu0 0
        %3162 = vmatprep.subr.bf16.mxu0 0
        %3163 = vmatpush1.bf16.msra.mxu0 0
        %3164 = vmatprep.subr.bf16.mxu0 0
        %3165 = vmatpush1.bf16.msra.mxu0 0
        %3166 = vmatprep.subr.bf16.mxu0 0
        %3167 = vmatpush1.bf16.msra.mxu0 0
        %3168 = vmatprep.subr.bf16.mxu0 0
        %3169 = vmatpush1.bf16.msra.mxu0 0
        %3170 = vmatprep.mubr.bf16.mxu0 0
        %3171 = vmatmul.mubr.bf16.gmra.mrb[0].mxu0 %v3095
        %v3172 = vpop.f32.mrb[0].mxu0
        %v3173 = vadd.f32 %v3085, %v3172
        %v3174 = vpop.f32.mrb[0].mxu0
        %v3175 = vadd.f32 %v3089, %v3174
        %v3176 = vpop.f32.mrb[0].mxu0
        %v3177 = vpop.f32.mrb[0].mxu0
        %3178 = vdwg.mxu0
        %v3179 = vmax.f32 %v3132, 0.0
        %v3180 = vmax.f32 %v3134, 0.0
        %v3181 = vmax.f32 %v3173, 0.0
        %v3182 = vmax.f32 %v3175, 0.0
        %v3183 = vpack.c.bf16 %v3179, %v3179
        %v3184 = vpack.c.bf16 %v3180, %v3180
        %v3185 = vpack.c.bf16 %v3181, %v3181
        %v3186 = vpack.c.bf16 %v3182, %v3182
        %v3187 = vld [vmem:[%s11] sm:$0xf]
        %v3188 = vld [vmem:[%s11 + $0x4] sm:$0xf]
        %v3189 = vld [vmem:[%s11 + $0x8] sm:$0xf]
        %v3190 = vld [vmem:[%s11 + $0xc] sm:$0xf]
        %v3191 = vld [vmem:[%s11 + $0x10] sm:$0xf]
        %v3192 = vld [vmem:[%s11 + $0x14] sm:$0xf]
        %v3193 = vld [vmem:[%s11 + $0x18] sm:$0xf]
        %v3194 = vld [vmem:[%s11 + $0x1c] sm:$0xf]
        %v3195 = vld [vmem:[%s11 + $0x20] sm:$0xf]
        %v3196 = vld [vmem:[%s11 + $0x24] sm:$0xf]
        %v3197 = vld [vmem:[%s11 + $0x28] sm:$0xf]
        %v3198 = vld [vmem:[%s11 + $0x2c] sm:$0xf]
        %v3199 = vld [vmem:[%s11 + $0x30] sm:$0xf]
        %v3200 = vld [vmem:[%s11 + $0x34] sm:$0xf]
        %v3201 = vld [vmem:[%s11 + $0x38] sm:$0xf]
        %v3202 = vld [vmem:[%s11 + $0x3c] sm:$0xf]
        %v3203 = vld [vmem:[%s11 + $0x40] sm:$0xf]
        %v3204 = vld [vmem:[%s11 + $0x44] sm:$0xf]
        %v3205 = vld [vmem:[%s11 + $0x48] sm:$0xf]
        %v3206 = vld [vmem:[%s11 + $0x4c] sm:$0xf]
        %v3207 = vld [vmem:[%s11 + $0x50] sm:$0xf]
        %v3208 = vld [vmem:[%s11 + $0x54] sm:$0xf]
        %v3209 = vld [vmem:[%s11 + $0x58] sm:$0xf]
        %v3210 = vld [vmem:[%s11 + $0x5c] sm:$0xf]
        %v3211 = vld [vmem:[%s11 + $0x60] sm:$0xf]
        %v3212 = vld [vmem:[%s11 + $0x64] sm:$0xf]
        %v3213 = vld [vmem:[%s11 + $0x68] sm:$0xf]
        %v3214 = vld [vmem:[%s11 + $0x6c] sm:$0xf]
        %v3215 = vld [vmem:[%s11 + $0x70] sm:$0xf]
        %v3216 = vld [vmem:[%s11 + $0x74] sm:$0xf]
        %v3217 = vld [vmem:[%s11 + $0x78] sm:$0xf]
        %v3218 = vld [vmem:[%s11 + $0x7c] sm:$0xf]
        %v3219 = vld [vmem:[%s11 + $0x80] sm:$0xf]
        %v3220 = vld [vmem:[%s11 + $0x84] sm:$0xf]
        %v3221 = vld [vmem:[%s11 + $0x88] sm:$0xf]
        %v3222 = vld [vmem:[%s11 + $0x8c] sm:$0xf]
        %v3223 = vld [vmem:[%s11 + $0x90] sm:$0xf]
        %v3224 = vld [vmem:[%s11 + $0x94] sm:$0xf]
        %v3225 = vld [vmem:[%s11 + $0x98] sm:$0xf]
        %v3226 = vld [vmem:[%s11 + $0x9c] sm:$0xf]
        %v3227 = vld [vmem:[%s11 + $0xa0] sm:$0xf]
        %v3228 = vld [vmem:[%s11 + $0xa4] sm:$0xf]
        %v3229 = vld [vmem:[%s11 + $0xa8] sm:$0xf]
        %v3230 = vld [vmem:[%s11 + $0xac] sm:$0xf]
        %v3231 = vld [vmem:[%s11 + $0xb0] sm:$0xf]
        %v3232 = vld [vmem:[%s11 + $0xb4] sm:$0xf]
        %v3233 = vld [vmem:[%s11 + $0xb8] sm:$0xf]
        %v3234 = vld [vmem:[%s11 + $0xbc] sm:$0xf]
        %v3235 = vld [vmem:[%s11 + $0xc0] sm:$0xf]
        %v3236 = vld [vmem:[%s11 + $0xc4] sm:$0xf]
        %v3237 = vld [vmem:[%s11 + $0xc8] sm:$0xf]
        %v3238 = vld [vmem:[%s11 + $0xcc] sm:$0xf]
        %v3239 = vld [vmem:[%s11 + $0xd0] sm:$0xf]
        %v3240 = vld [vmem:[%s11 + $0xd4] sm:$0xf]
        %v3241 = vld [vmem:[%s11 + $0xd8] sm:$0xf]
        %v3242 = vld [vmem:[%s11 + $0xdc] sm:$0xf]
        %v3243 = vld [vmem:[%s11 + $0xe0] sm:$0xf]
        %v3244 = vld [vmem:[%s11 + $0xe4] sm:$0xf]
        %v3245 = vld [vmem:[%s11 + $0xe8] sm:$0xf]
        %v3246 = vld [vmem:[%s11 + $0xec] sm:$0xf]
        %v3247 = vld [vmem:[%s11 + $0xf0] sm:$0xf]
        %v3248 = vld [vmem:[%s11 + $0xf4] sm:$0xf]
        %v3249 = vld [vmem:[%s11 + $0xf8] sm:$0xf]
        %v3250 = vld [vmem:[%s11 + $0xfc] sm:$0xf]
        %v3251 = vld [vmem:[%s12] sm:$0x1]
        %v3316 = vunpack.c.l.b16 %v3187
        %v3317 = vunpack.c.l.b16 %v3188
        %v3318 = vunpack.c.l.b16 %v3189
        %v3319 = vunpack.c.l.b16 %v3190
        %v3320 = vunpack.c.l.b16 %v3191
        %v3321 = vunpack.c.l.b16 %v3192
        %v3322 = vunpack.c.l.b16 %v3193
        %v3323 = vunpack.c.l.b16 %v3194
        %v3324 = vunpack.c.l.b16 %v3195
        %v3325 = vunpack.c.l.b16 %v3196
        %v3326 = vunpack.c.l.b16 %v3197
        %v3327 = vunpack.c.l.b16 %v3198
        %v3328 = vunpack.c.l.b16 %v3199
        %v3329 = vunpack.c.l.b16 %v3200
        %v3330 = vunpack.c.l.b16 %v3201
        %v3331 = vunpack.c.l.b16 %v3202
        %v3332 = vunpack.c.l.b16 %v3203
        %v3333 = vunpack.c.l.b16 %v3204
        %v3334 = vunpack.c.l.b16 %v3205
        %v3335 = vunpack.c.l.b16 %v3206
        %v3336 = vunpack.c.l.b16 %v3207
        %v3337 = vunpack.c.l.b16 %v3208
        %v3338 = vunpack.c.l.b16 %v3209
        %v3339 = vunpack.c.l.b16 %v3210
        %v3340 = vunpack.c.l.b16 %v3211
        %v3341 = vunpack.c.l.b16 %v3212
        %v3342 = vunpack.c.l.b16 %v3213
        %v3343 = vunpack.c.l.b16 %v3214
        %v3344 = vunpack.c.l.b16 %v3215
        %v3345 = vunpack.c.l.b16 %v3216
        %v3346 = vunpack.c.l.b16 %v3217
        %v3347 = vunpack.c.l.b16 %v3218
        %v3348 = vunpack.c.l.b16 %v3219
        %v3349 = vunpack.c.l.b16 %v3220
        %v3350 = vunpack.c.l.b16 %v3221
        %v3351 = vunpack.c.l.b16 %v3222
        %v3352 = vunpack.c.l.b16 %v3223
        %v3353 = vunpack.c.l.b16 %v3224
        %v3354 = vunpack.c.l.b16 %v3225
        %v3355 = vunpack.c.l.b16 %v3226
        %v3356 = vunpack.c.l.b16 %v3227
        %v3357 = vunpack.c.l.b16 %v3228
        %v3358 = vunpack.c.l.b16 %v3229
        %v3359 = vunpack.c.l.b16 %v3230
        %v3360 = vunpack.c.l.b16 %v3231
        %v3361 = vunpack.c.l.b16 %v3232
        %v3362 = vunpack.c.l.b16 %v3233
        %v3363 = vunpack.c.l.b16 %v3234
        %v3364 = vunpack.c.l.b16 %v3235
        %v3365 = vunpack.c.l.b16 %v3236
        %v3366 = vunpack.c.l.b16 %v3237
        %v3367 = vunpack.c.l.b16 %v3238
        %v3368 = vunpack.c.l.b16 %v3239
        %v3369 = vunpack.c.l.b16 %v3240
        %v3370 = vunpack.c.l.b16 %v3241
        %v3371 = vunpack.c.l.b16 %v3242
        %v3372 = vunpack.c.l.b16 %v3243
        %v3373 = vunpack.c.l.b16 %v3244
        %v3374 = vunpack.c.l.b16 %v3245
        %v3375 = vunpack.c.l.b16 %v3246
        %v3376 = vunpack.c.l.b16 %v3247
        %v3377 = vunpack.c.l.b16 %v3248
        %v3378 = vunpack.c.l.b16 %v3249
        %v3379 = vunpack.c.l.b16 %v3250
        %v3380 = vpack.c.b16 %v3317, %v3316
        %v3381 = vpack.c.b16 %v3319, %v3318
        %v3382 = vpack.c.b16 %v3321, %v3320
        %v3383 = vpack.c.b16 %v3323, %v3322
        %v3384 = vpack.c.b16 %v3325, %v3324
        %v3385 = vpack.c.b16 %v3327, %v3326
        %v3386 = vpack.c.b16 %v3329, %v3328
        %v3387 = vpack.c.b16 %v3331, %v3330
        %v3388 = vpack.c.b16 %v3333, %v3332
        %v3389 = vpack.c.b16 %v3335, %v3334
        %v3390 = vpack.c.b16 %v3337, %v3336
        %v3391 = vpack.c.b16 %v3339, %v3338
        %v3392 = vpack.c.b16 %v3341, %v3340
        %v3393 = vpack.c.b16 %v3343, %v3342
        %v3394 = vpack.c.b16 %v3345, %v3344
        %v3395 = vpack.c.b16 %v3347, %v3346
        %v3396 = vpack.c.b16 %v3349, %v3348
        %v3397 = vpack.c.b16 %v3351, %v3350
        %v3398 = vpack.c.b16 %v3353, %v3352
        %v3399 = vpack.c.b16 %v3355, %v3354
        %v3400 = vpack.c.b16 %v3357, %v3356
        %v3401 = vpack.c.b16 %v3359, %v3358
        %v3402 = vpack.c.b16 %v3361, %v3360
        %v3403 = vpack.c.b16 %v3363, %v3362
        %v3404 = vpack.c.b16 %v3365, %v3364
        %v3405 = vpack.c.b16 %v3367, %v3366
        %v3406 = vpack.c.b16 %v3369, %v3368
        %v3407 = vpack.c.b16 %v3371, %v3370
        %v3408 = vpack.c.b16 %v3373, %v3372
        %v3409 = vpack.c.b16 %v3375, %v3374
        %v3410 = vpack.c.b16 %v3377, %v3376
        %v3411 = vpack.c.b16 %v3379, %v3378
        %3444 = vmatprep.subr.bf16.mxu0 0
        %3445 = vmatpush1.bf16.msra.mxu0 %v3380
        %3446 = vmatprep.subr.bf16.mxu0 0
        %3447 = vmatpush1.bf16.msra.mxu0 %v3381
        %3448 = vmatprep.subr.bf16.mxu0 0
        %3449 = vmatpush1.bf16.msra.mxu0 %v3382
        %3450 = vmatprep.subr.bf16.mxu0 0
        %3451 = vmatpush1.bf16.msra.mxu0 %v3383
        %3452 = vmatprep.subr.bf16.mxu0 0
        %3453 = vmatpush1.bf16.msra.mxu0 %v3384
        %3454 = vmatprep.subr.bf16.mxu0 0
        %3455 = vmatpush1.bf16.msra.mxu0 %v3385
        %3456 = vmatprep.subr.bf16.mxu0 0
        %3457 = vmatpush1.bf16.msra.mxu0 %v3386
        %3458 = vmatprep.subr.bf16.mxu0 0
        %3459 = vmatpush1.bf16.msra.mxu0 %v3387
        %3460 = vmatprep.subr.bf16.mxu0 0
        %3461 = vmatpush1.bf16.msra.mxu0 %v3388
        %3462 = vmatprep.subr.bf16.mxu0 0
        %3463 = vmatpush1.bf16.msra.mxu0 %v3389
        %3464 = vmatprep.subr.bf16.mxu0 0
        %3465 = vmatpush1.bf16.msra.mxu0 %v3390
        %3466 = vmatprep.subr.bf16.mxu0 0
        %3467 = vmatpush1.bf16.msra.mxu0 %v3391
        %3468 = vmatprep.subr.bf16.mxu0 0
        %3469 = vmatpush1.bf16.msra.mxu0 %v3392
        %3470 = vmatprep.subr.bf16.mxu0 0
        %3471 = vmatpush1.bf16.msra.mxu0 %v3393
        %3472 = vmatprep.subr.bf16.mxu0 0
        %3473 = vmatpush1.bf16.msra.mxu0 %v3394
        %3474 = vmatprep.subr.bf16.mxu0 0
        %3475 = vmatpush1.bf16.msra.mxu0 %v3395
        %3476 = vmatprep.mubr.bf16.mxu0 %v3184
        %3477 = vmatmul.mubr.bf16.gmra.mrb[0].mxu0 %v3183
        %v3478 = vpop.f32.mrb[0].mxu0
        %v3479 = vadd.f32 %v3251, %v3478
        %v3480 = vpop.f32.mrb[0].mxu0
        %v3481 = vpop.f32.mrb[0].mxu0
        %v3482 = vpop.f32.mrb[0].mxu0
        %3483 = vdwg.mxu0
        %3484 = vmatprep.subr.bf16.mxu0 0
        %3485 = vmatpush1.bf16.msra.mxu0 %v3396
        %3486 = vmatprep.subr.bf16.mxu0 0
        %3487 = vmatpush1.bf16.msra.mxu0 %v3397
        %3488 = vmatprep.subr.bf16.mxu0 0
        %3489 = vmatpush1.bf16.msra.mxu0 %v3398
        %3490 = vmatprep.subr.bf16.mxu0 0
        %3491 = vmatpush1.bf16.msra.mxu0 %v3399
        %3492 = vmatprep.subr.bf16.mxu0 0
        %3493 = vmatpush1.bf16.msra.mxu0 %v3400
        %3494 = vmatprep.subr.bf16.mxu0 0
        %3495 = vmatpush1.bf16.msra.mxu0 %v3401
        %3496 = vmatprep.subr.bf16.mxu0 0
        %3497 = vmatpush1.bf16.msra.mxu0 %v3402
        %3498 = vmatprep.subr.bf16.mxu0 0
        %3499 = vmatpush1.bf16.msra.mxu0 %v3403
        %3500 = vmatprep.subr.bf16.mxu0 0
        %3501 = vmatpush1.bf16.msra.mxu0 %v3404
        %3502 = vmatprep.subr.bf16.mxu0 0
        %3503 = vmatpush1.bf16.msra.mxu0 %v3405
        %3504 = vmatprep.subr.bf16.mxu0 0
        %3505 = vmatpush1.bf16.msra.mxu0 %v3406
        %3506 = vmatprep.subr.bf16.mxu0 0
        %3507 = vmatpush1.bf16.msra.mxu0 %v3407
        %3508 = vmatprep.subr.bf16.mxu0 0
        %3509 = vmatpush1.bf16.msra.mxu0 %v3408
        %3510 = vmatprep.subr.bf16.mxu0 0
        %3511 = vmatpush1.bf16.msra.mxu0 %v3409
        %3512 = vmatprep.subr.bf16.mxu0 0
        %3513 = vmatpush1.bf16.msra.mxu0 %v3410
        %3514 = vmatprep.subr.bf16.mxu0 0
        %3515 = vmatpush1.bf16.msra.mxu0 %v3411
        %3516 = vmatprep.mubr.bf16.mxu0 %v3186
        %3517 = vmatmul.mubr.bf16.gmra.mrb[0].mxu0 %v3185
        %v3518 = vpop.f32.mrb[0].mxu0
        %v3519 = vadd.f32 %v3479, %v3518
        %v3520 = vpop.f32.mrb[0].mxu0
        %v3521 = vpop.f32.mrb[0].mxu0
        %v3522 = vpop.f32.mrb[0].mxu0
        %3523 = vdwg.mxu0
        %3524 = vst [vmem:[%s432] sm:$0x1] %v3519
        %s3525 = sand.u32 %s313, 1
        %s3526 = scalar_lea.sflag [#allocation3], %s3525
        %s3527 = sand.u32 %s313, 1
        %s3528 = scalar_lea.vmem [#allocation2], %s3527
        // Predicated region
        $region73: #{forward.1} parent=71 // pred_check
          %p3529 = pneg %p323
        $region74: #{forward.1} parent=71 // pred_check_branch
          %3531 = sbr.rel (%p3529) target = $region76
        $region75: #{forward.1} parent=71 // pred_region
          %s3533 = ssub.s32 16, 16
          %3534 = vsyncadd %s3526, %s3533
          %s3535 = smul.addr %s27, 16
          %s3536 = scalar_lea.hbm %s13, %s3535
          %s3538 = sshll.u32 %s3528, 4
          %s3539 = int_to_ptr.vmem [resolvable:$true] %s3538
          %3541 = dma.vmem_to_hbm [thread:$0]  %s3539, 16, %s3536, %s3526
        $region76: #{forward.1} parent=71 // pred_fallthru
          _
      $region72: #{forward.1} parent=5 // pred_fallthru
        _
      %p3542 = scmp.le.s32.totalorder 2, %s22
      // Predicated region
      $region77: #{forward.1} parent=5 // pred_check
        %p3543 = pneg %p3542
      $region78: #{forward.1} parent=5 // pred_check_branch
        %3545 = sbr.rel (%p3543) target = $region80
      $region79: #{forward.1} parent=5 // pred_region
        %s3546 = ssub.s32 %s22, 2
        // Predicated region
        $region81: #{forward.1} parent=79 // pred_check
          %p3547 = pneg %p329
        $region82: #{forward.1} parent=79 // pred_check_branch
          %3549 = sbr.rel (%p3547) target = $region84
        $region83: #{forward.1} parent=79 // pred_region
          %s3550 = sand.u32 %s314, 1
          %s3551 = scalar_lea.sflag [#allocation3], %s3550
          %s3552 = sand.u32 %s314, 1
          %s3553 = scalar_lea.vmem [#allocation2], %s3552
          %3554 = dma.done %s3551, 16
        $region84: #{forward.1} parent=79 // pred_fallthru
          _
      $region80: #{forward.1} parent=5 // pred_fallthru
        _
    $region6: #{forward.1} parent=1 // loop_footer
      %s26 = sadd.s32 1, %s22
    $region7: #{forward.1} parent=1 // loop_footer_branch
      %21 = sbr.rel target = $region3
    $region8: #{forward.1} parent=1 // loop_exit
      _
    %3555 = vsyncpa [#allocation3], 1
    %s3556 = scalar_lea.sflag [#allocation3], 1
    %3557 = vsyncpa %s3556, 1

</llo_original>
